<compile_context>
chip_gen: v7x
topology: tpu7x:2x2x1
jax: 0.10.0
libtpu: 0.0.40
codegen_flags: <defaults>
</compile_context>

<pallas_src>
import math

import jax
import jax.numpy as jnp
from jax.experimental import pallas as pl
from jax.experimental.pallas import tpu as pltpu

# ----------------------------- model sizes --------------------------------
B = 4          # batch
F = 16         # raw feature width
S = 8          # embedding_left.seq_len
D = 16         # embedding_left.d_model
SD = S * D     # embedding_left.hidden_dim = 128
P = 32         # pretrained_model.projection_dim
H = SD + P     # model hidden_dim = 160
L = 3          # trgt_layers
W_T = 0.5
AUX_W = 0.5
OUT_W = 128    # packed, lane-dense output slab width
SQRT_EPS = float(math.sqrt(1.1920929e-07))   # sqrt(float32 eps)

_VSPEC = pl.BlockSpec(memory_space=pltpu.MemorySpace.VMEM)


# ------------------------------ fused kernel --------------------------------
def _fused_kernel(
    # data
    x_ref, ltv3_ref, l3h_ref, l6h_ref,
    # embeddings / encoder / pretrained projection
    embl_w, embl_b, embr_w, embr_b,
    enc_w, enc_b, cls_w, cls_b,
    # TRGT (block-diagonal, 128-wide) + gate classifier heads
    trgt_w, trgt_b, trgt_g,
    gate_w, gate_b,
    # main MLP (first layer split: [output | cls])
    m_w1a, m_w1b, m_b1, m_w2, m_b2, m_w3, m_b3, m_w4, m_b4,
    # teacher MLP (first layer split: [output | r_p], r_p slice zero-padded)
    t_w1a, t_w1b, t_b1, t_w2, t_b2, t_w3, t_b3, t_w4, t_b4,
    # single lane-dense output slab
    out_ref,
):
    x = x_ref[...]                 # (B, F)
    ltv3 = ltv3_ref[...]           # (B, 1)
    l3h = l3h_ref[...]
    l6h = l6h_ref[...]
    bsz = x.shape[0]

    # ---- embedding_left: (B, F) -> (B, S*D), tanh ---------------------------
    h = jnp.tanh(jnp.dot(x, embl_w[...], preferred_element_type=jnp.float32)
                 + embl_b[...])                                   # (B, 128)

    # ---- TRGT stack: block-diagonal 128-wide matmuls, lane-dense gates ------
    cls_logits = []
    for l in range(L):
        h = jnp.tanh(
            jnp.dot(h, trgt_w[l], preferred_element_type=jnp.float32)
            + trgt_b[l])                                          # (B, 128)
        gate = jax.nn.sigmoid(
            jnp.dot(h, trgt_g[l], preferred_element_type=jnp.float32))  # (B, S)
        # per-layer gate classifier head (DNN([S, 4]))
        cls_logits.append(
            jnp.dot(gate, gate_w[l], preferred_element_type=jnp.float32)
            + gate_b[l])                                          # (B, 4)
    out_flat = h                                                  # (B, 128)

    # ---- frozen pretrained left_cls projection ------------------------------
    cls = jnp.dot(x, cls_w[...], preferred_element_type=jnp.float32) + cls_b[...]

    # ---- main MLP on [output | cls] via split first-layer matmul ------------
    h1 = jnp.maximum(
        jnp.dot(out_flat, m_w1a[...], preferred_element_type=jnp.float32)
        + jnp.dot(cls, m_w1b[...], preferred_element_type=jnp.float32)
        + m_b1[...], 0.0)
    h2 = jnp.maximum(
        jnp.dot(h1, m_w2[...], preferred_element_type=jnp.float32) + m_b2[...], 0.0)
    h3 = jnp.maximum(
        jnp.dot(h2, m_w3[...], preferred_element_type=jnp.float32) + m_b3[...], 0.0)
    logits = jnp.dot(h3, m_w4[...], preferred_element_type=jnp.float32) + m_b4[...]

    # ---- right branch: embedding_right -> right_encoder ---------------------
    hr = jnp.tanh(jnp.dot(x, embr_w[...], preferred_element_type=jnp.float32)
                  + embr_b[...])                                  # (B, 128)
    hr_enc = jnp.tanh(jnp.dot(hr, enc_w[...], preferred_element_type=jnp.float32)
                      + enc_b[...])                               # (B, 128)
    # r_p = hr_enc[:, :P] is folded into t_w1b (rows >= P zeroed) => no slice.
    t1 = jnp.maximum(
        jnp.dot(out_flat, t_w1a[...], preferred_element_type=jnp.float32)
        + jnp.dot(hr_enc, t_w1b[...], preferred_element_type=jnp.float32)
        + t_b1[...], 0.0)
    t2 = jnp.maximum(
        jnp.dot(t1, t_w2[...], preferred_element_type=jnp.float32) + t_b2[...], 0.0)
    t3 = jnp.maximum(
        jnp.dot(t2, t_w3[...], preferred_element_type=jnp.float32) + t_b3[...], 0.0)
    logits_t = jnp.dot(t3, t_w4[...], preferred_element_type=jnp.float32) + t_b4[...]

    # ---- ZILN loss (main + teacher) ------------------------------------------
    def ziln_loss(lg):
        p_pred = lg[:, 0:1]
        p_ground = (ltv3 > 0.0).astype(jnp.float32)
        # BCEWithLogitsLoss(reduction='none')
        cls_loss = (jnp.maximum(p_pred, 0.0) - p_pred * p_ground
                    + jnp.log1p(jnp.exp(-jnp.abs(p_pred))))
        mu = lg[:, 1:2]
        sigma = jnp.maximum(jax.nn.softplus(lg[:, 2:3]), SQRT_EPS)
        safe = p_ground * ltv3 + (1.0 - p_ground)
        log_x = jnp.log(safe)
        log_prob = (-log_x - jnp.log(sigma) - 0.5 * jnp.log(2.0 * jnp.pi)
                    - jnp.square(log_x - mu) / (2.0 * jnp.square(sigma)))
        reg_loss = -p_ground * log_prob
        return jnp.mean(cls_loss + reg_loss, keepdims=True)        # (1, 1)

    loss = ziln_loss(logits) + W_T * ziln_loss(logits_t)           # (1, 1)

    # ---- ZILN predict (matches torch reference: no sigma clamp here) --------
    p_pred = jax.nn.sigmoid(logits[:, 0:1])
    mu_p = logits[:, 1:2]
    sigma_p = jax.nn.softplus(logits[:, 2:3])
    value = p_pred * jnp.exp(mu_p + 0.5 * jnp.square(sigma_p))     # (B, 1)

    # ---- cls_label = argmax over clamped ltv deltas --------------------------
    delta = jnp.concatenate(
        [jnp.zeros_like(l3h), l3h, l6h - l3h, ltv3 - l6h], axis=1)  # (B, 4)
    delta = jnp.maximum(delta, 0.0)
    max_val = jnp.max(delta, axis=1, keepdims=True)
    idx = jax.lax.broadcasted_iota(jnp.int32, delta.shape, 1)
    first_max = jnp.min(jnp.where(delta == max_val, idx, 4),
                        axis=1, keepdims=True)                     # (B, 1)
    onehot = (idx == first_max).astype(jnp.float32)                # (B, 4)

    # ---- aux cross-entropy losses --------------------------------------------
    for cl in cls_logits:
        m = jnp.max(cl, axis=1, keepdims=True)
        lse = m + jnp.log(jnp.sum(jnp.exp(cl - m), axis=1, keepdims=True))
        ce = jnp.mean(jnp.sum(onehot * (lse - cl), axis=1, keepdims=True),
                      keepdims=True)                               # (1, 1)
        loss = loss + AUX_W * ce

    # ---- pack everything into one lane-dense slab; single full-width store --
    loss_col = jnp.broadcast_to(loss, (bsz, 1))
    out_ref[...] = jnp.concatenate(
        [logits,                                   # cols 0..2
         p_pred,                                   # col 3
         value,                                    # col 4
         loss_col,                                 # col 5
         jnp.zeros((bsz, OUT_W - 6), jnp.float32)],
        axis=1)


# -------------------------- parameter init ---------------------------------
def _init_linear(key, fan_in, fan_out):
    kw, kb = jax.random.split(key)
    scale = 1.0 / math.sqrt(fan_in)
    w = jax.random.normal(kw, (fan_in, fan_out), jnp.float32) * scale
    b = jax.random.normal(kb, (1, fan_out), jnp.float32) * 0.01
    return w, b


def init_params(key):
    keys = jax.random.split(key, 32)
    p = {}
    p["emb_l_w"], p["emb_l_b"] = _init_linear(keys[0], F, SD)
    p["emb_r_w"], p["emb_r_b"] = _init_linear(keys[1], F, SD)
    p["enc_w"], p["enc_b"] = _init_linear(keys[2], D, D)
    p["cls_w"], p["cls_b"] = _init_linear(keys[3], F, P)     # frozen pretrained proj

    tw, tb, tg = [], [], []
    for l in range(L):
        w, b = _init_linear(keys[4 + l], D, D)
        g, _ = _init_linear(keys[8 + l], D, 1)
        tw.append(w); tb.append(b); tg.append(g)
    p["trgt_w"] = jnp.stack(tw)          # (L, D, D)
    p["trgt_b"] = jnp.stack(tb)          # (L, 1, D)
    p["trgt_g"] = jnp.stack(tg)          # (L, D, 1)

    dims = [H, H // 2, H // 4, H // 8, 3]
    p["mlp"] = [_init_linear(keys[12 + i], dims[i], dims[i + 1]) for i in range(4)]
    p["mlp_teacher"] = [_init_linear(keys[16 + i], dims[i], dims[i + 1])
                        for i in range(4)]

    gw, gb = [], []
    for l in range(L):
        w, b = _init_linear(keys[20 + l], S, 4)
        gw.append(w); gb.append(b)
    p["gate_w"] = jnp.stack(gw)          # (L, S, 4)
    p["gate_b"] = jnp.stack(gb)          # (L, 1, 4)
    return p


def prepare_fused(p):
    """One-time (plain JAX) reshaping of params for the fused kernel:
    block-diagonal 128-wide TRGT / encoder weights, tiled biases, split +
    zero-padded MLP first-layer weights (concat-free kernel)."""
    eye_s = jnp.eye(S, dtype=jnp.float32)
    f = {}
    f["embl_w"], f["embl_b"] = p["emb_l_w"], p["emb_l_b"]
    f["embr_w"], f["embr_b"] = p["emb_r_w"], p["emb_r_b"]

    f["enc_w"] = jnp.kron(eye_s, p["enc_w"])                 # (SD, SD)
    f["enc_b"] = jnp.tile(p["enc_b"], (1, S))                # (1, SD)
    f["cls_w"], f["cls_b"] = p["cls_w"], p["cls_b"]

    f["trgt_w"] = jnp.stack([jnp.kron(eye_s, p["trgt_w"][l]) for l in range(L)])
    f["trgt_b"] = jnp.tile(p["trgt_b"], (1, 1, S))           # (L, 1, SD)
    f["trgt_g"] = jnp.stack([jnp.kron(eye_s, p["trgt_g"][l]) for l in range(L)])
    f["gate_w"], f["gate_b"] = p["gate_w"], p["gate_b"]

    (w1, b1), (w2, b2), (w3, b3), (w4, b4) = p["mlp"]
    f["m_w1a"], f["m_w1b"] = w1[:SD], w1[SD:]                # (SD,80), (P,80)
    f["m_b1"], f["m_w2"], f["m_b2"] = b1, w2, b2
    f["m_w3"], f["m_b3"], f["m_w4"], f["m_b4"] = w3, b3, w4, b4

    (w1, b1), (w2, b2), (w3, b3), (w4, b4) = p["mlp_teacher"]
    f["t_w1a"] = w1[:SD]                                     # (SD, 80)
    # r_p = hr_enc[:, :P]  =>  zero-pad the (P,80) block to (SD,80)
    f["t_w1b"] = jnp.concatenate(
        [w1[SD:], jnp.zeros((SD - P, w1.shape[1]), jnp.float32)], axis=0)
    f["t_b1"], f["t_w2"], f["t_b2"] = b1, w2, b2
    f["t_w3"], f["t_b3"], f["t_w4"], f["t_b4"] = w3, b3, w4, b4
    return f


# ------------------------------ forward -------------------------------------
def trtg_cls_forward(fused, x_feat, ltv3, ltv_3h, ltv_6h):
    n = x_feat.shape[0]
    args = (
        x_feat, ltv3, ltv_3h, ltv_6h,
        fused["embl_w"], fused["embl_b"], fused["embr_w"], fused["embr_b"],
        fused["enc_w"], fused["enc_b"], fused["cls_w"], fused["cls_b"],
        fused["trgt_w"], fused["trgt_b"], fused["trgt_g"],
        fused["gate_w"], fused["gate_b"],
        fused["m_w1a"], fused["m_w1b"], fused["m_b1"],
        fused["m_w2"], fused["m_b2"], fused["m_w3"], fused["m_b3"],
        fused["m_w4"], fused["m_b4"],
        fused["t_w1a"], fused["t_w1b"], fused["t_b1"],
        fused["t_w2"], fused["t_b2"], fused["t_w3"], fused["t_b3"],
        fused["t_w4"], fused["t_b4"],
    )
    out = pl.pallas_call(
        _fused_kernel,
        out_shape=jax.ShapeDtypeStruct((n, OUT_W), jnp.float32),
        in_specs=[_VSPEC] * len(args),
        out_specs=_VSPEC,
        cost_estimate=pl.CostEstimate(
            flops=1_000_000, transcendentals=5_000, bytes_accessed=600_000),
    )(*args)

    return {
        "logit": out[:, 0:3],
        "loss": out[0, 5],
        "prediction_p": out[:, 3],
        "prediction_v": out[:, 4],
    }


# -------------------------------- main ---------------------------------------
if __name__ == "__main__":
    key = jax.random.PRNGKey(0)
    k_param, k_x, k_l1, k_l2, k_l3 = jax.random.split(key, 5)

    params = init_params(k_param)
    fused = prepare_fused(params)

    x_feat = jax.random.normal(k_x, (B, F), jnp.float32)
    ltv_3h = jnp.maximum(jax.random.normal(k_l1, (B, 1), jnp.float32), 0.0) * 2.0
    ltv_6h = ltv_3h + jnp.maximum(jax.random.normal(k_l2, (B, 1), jnp.float32), 0.0)
    ltv3 = ltv_6h + jnp.maximum(jax.random.normal(k_l3, (B, 1), jnp.float32), 0.0)

    fwd = jax.jit(trtg_cls_forward)
    out = fwd(fused, x_feat, ltv3, ltv_3h, ltv_6h)
    jax.block_until_ready(out["loss"])

    assert out["logit"].shape == (B, 3)
    assert out["prediction_p"].shape == (B,)
    assert out["prediction_v"].shape == (B,)
    assert jnp.isfinite(out["loss"])
    print("KERNEL_OK")
</pallas_src>

<mosaic_0001>
module attributes {stable_mosaic.version = 11 : i64} {
  func.func @_fused_kernel(%arg0: memref<4x16xf32, #tpu.memory_space<vmem>>, %arg1: memref<4x1xf32, #tpu.memory_space<vmem>>, %arg2: memref<4x1xf32, #tpu.memory_space<vmem>>, %arg3: memref<4x1xf32, #tpu.memory_space<vmem>>, %arg4: memref<16x128xf32, #tpu.memory_space<vmem>>, %arg5: memref<1x128xf32, #tpu.memory_space<vmem>>, %arg6: memref<16x128xf32, #tpu.memory_space<vmem>>, %arg7: memref<1x128xf32, #tpu.memory_space<vmem>>, %arg8: memref<128x128xf32, #tpu.memory_space<vmem>>, %arg9: memref<1x128xf32, #tpu.memory_space<vmem>>, %arg10: memref<16x32xf32, #tpu.memory_space<vmem>>, %arg11: memref<1x32xf32, #tpu.memory_space<vmem>>, %arg12: memref<3x128x128xf32, #tpu.memory_space<vmem>>, %arg13: memref<3x1x128xf32, #tpu.memory_space<vmem>>, %arg14: memref<3x128x8xf32, #tpu.memory_space<vmem>>, %arg15: memref<3x8x4xf32, #tpu.memory_space<vmem>>, %arg16: memref<3x1x4xf32, #tpu.memory_space<vmem>>, %arg17: memref<128x80xf32, #tpu.memory_space<vmem>>, %arg18: memref<32x80xf32, #tpu.memory_space<vmem>>, %arg19: memref<1x80xf32, #tpu.memory_space<vmem>>, %arg20: memref<80x40xf32, #tpu.memory_space<vmem>>, %arg21: memref<1x40xf32, #tpu.memory_space<vmem>>, %arg22: memref<40x20xf32, #tpu.memory_space<vmem>>, %arg23: memref<1x20xf32, #tpu.memory_space<vmem>>, %arg24: memref<20x3xf32, #tpu.memory_space<vmem>>, %arg25: memref<1x3xf32, #tpu.memory_space<vmem>>, %arg26: memref<128x80xf32, #tpu.memory_space<vmem>>, %arg27: memref<128x80xf32, #tpu.memory_space<vmem>>, %arg28: memref<1x80xf32, #tpu.memory_space<vmem>>, %arg29: memref<80x40xf32, #tpu.memory_space<vmem>>, %arg30: memref<1x40xf32, #tpu.memory_space<vmem>>, %arg31: memref<40x20xf32, #tpu.memory_space<vmem>>, %arg32: memref<1x20xf32, #tpu.memory_space<vmem>>, %arg33: memref<20x3xf32, #tpu.memory_space<vmem>>, %arg34: memref<1x3xf32, #tpu.memory_space<vmem>>, %arg35: memref<4x128xf32, #tpu.memory_space<vmem>>) attributes {dimension_semantics = [], scalar_prefetch = 0 : i64, scratch_operands = 0 : i64, tpu.core_type = #tpu.core_type<tc>} {
    %c0 = arith.constant 0 : index
    %c0_0 = arith.constant 0 : index
    %0 = vector.load %arg0[%c0, %c0_0] : memref<4x16xf32, #tpu.memory_space<vmem>>, vector<4x16xf32>
    %c0_1 = arith.constant 0 : index
    %c0_2 = arith.constant 0 : index
    %1 = vector.load %arg1[%c0_1, %c0_2] : memref<4x1xf32, #tpu.memory_space<vmem>>, vector<4x1xf32>
    %c0_3 = arith.constant 0 : index
    %c0_4 = arith.constant 0 : index
    %2 = vector.load %arg2[%c0_3, %c0_4] : memref<4x1xf32, #tpu.memory_space<vmem>>, vector<4x1xf32>
    %c0_5 = arith.constant 0 : index
    %c0_6 = arith.constant 0 : index
    %3 = vector.load %arg3[%c0_5, %c0_6] : memref<4x1xf32, #tpu.memory_space<vmem>>, vector<4x1xf32>
    %c0_7 = arith.constant 0 : index
    %c0_8 = arith.constant 0 : index
    %4 = vector.load %arg4[%c0_7, %c0_8] : memref<16x128xf32, #tpu.memory_space<vmem>>, vector<16x128xf32>
    %cst = arith.constant dense<0.000000e+00> : vector<4x128xf32>
    %5 = tpu.matmul %0, %4, %cst {dimension_numbers = #tpu.dot_dimension_numbers<[1], [0], [0], [1], [0, 0, 1, 1], [], []>} : vector<4x16xf32>, vector<16x128xf32>, vector<4x128xf32> -> vector<4x128xf32>
    %c0_9 = arith.constant 0 : index
    %c0_10 = arith.constant 0 : index
    %6 = vector.load %arg5[%c0_9, %c0_10] : memref<1x128xf32, #tpu.memory_space<vmem>>, vector<1x128xf32>
    %7 = vector.broadcast %6 : vector<1x128xf32> to vector<4x128xf32>
    %8 = arith.addf %5, %7 : vector<4x128xf32>
    %9 = math.tanh %8 : vector<4x128xf32>
    %c0_11 = arith.constant 0 : index
    %c0_12 = arith.constant 0 : index
    %c0_13 = arith.constant 0 : index
    %10 = vector.load %arg12[%c0_11, %c0_12, %c0_13] : memref<3x128x128xf32, #tpu.memory_space<vmem>>, vector<1x128x128xf32>
    %11 = vector.shape_cast %10 : vector<1x128x128xf32> to vector<128x128xf32>
    %cst_14 = arith.constant dense<0.000000e+00> : vector<4x128xf32>
    %12 = tpu.matmul %9, %11, %cst_14 {dimension_numbers = #tpu.dot_dimension_numbers<[1], [0], [0], [1], [0, 0, 1, 1], [], []>} : vector<4x128xf32>, vector<128x128xf32>, vector<4x128xf32> -> vector<4x128xf32>
    %c0_15 = arith.constant 0 : index
    %c0_16 = arith.constant 0 : index
    %c0_17 = arith.constant 0 : index
    %13 = vector.load %arg13[%c0_15, %c0_16, %c0_17] : memref<3x1x128xf32, #tpu.memory_space<vmem>>, vector<1x1x128xf32>
    %14 = vector.shape_cast %13 : vector<1x1x128xf32> to vector<1x128xf32>
    %15 = vector.broadcast %14 : vector<1x128xf32> to vector<4x128xf32>
    %16 = arith.addf %12, %15 : vector<4x128xf32>
    %17 = math.tanh %16 : vector<4x128xf32>
    %c0_18 = arith.constant 0 : index
    %c0_19 = arith.constant 0 : index
    %c0_20 = arith.constant 0 : index
    %18 = vector.load %arg14[%c0_18, %c0_19, %c0_20] : memref<3x128x8xf32, #tpu.memory_space<vmem>>, vector<1x128x8xf32>
    %19 = vector.shape_cast %18 : vector<1x128x8xf32> to vector<128x8xf32>
    %cst_21 = arith.constant dense<0.000000e+00> : vector<4x8xf32>
    %20 = tpu.matmul %17, %19, %cst_21 {dimension_numbers = #tpu.dot_dimension_numbers<[1], [0], [0], [1], [0, 0, 1, 1], [], []>} : vector<4x128xf32>, vector<128x8xf32>, vector<4x8xf32> -> vector<4x8xf32>
    %21 = arith.negf %20 : vector<4x8xf32>
    %22 = math.exp %21 : vector<4x8xf32>
    %cst_22 = arith.constant 1.000000e+00 : f32
    %23 = vector.broadcast %cst_22 : f32 to vector<4x8xf32>
    %24 = arith.addf %23, %22 : vector<4x8xf32>
    %25 = arith.divf %23, %24 : vector<4x8xf32>
    %c0_23 = arith.constant 0 : index
    %c0_24 = arith.constant 0 : index
    %c0_25 = arith.constant 0 : index
    %26 = vector.load %arg15[%c0_23, %c0_24, %c0_25] : memref<3x8x4xf32, #tpu.memory_space<vmem>>, vector<1x8x4xf32>
    %27 = vector.shape_cast %26 : vector<1x8x4xf32> to vector<8x4xf32>
    %cst_26 = arith.constant dense<0.000000e+00> : vector<4x4xf32>
    %28 = tpu.matmul %25, %27, %cst_26 {dimension_numbers = #tpu.dot_dimension_numbers<[1], [0], [0], [1], [0, 0, 1, 1], [], []>} : vector<4x8xf32>, vector<8x4xf32>, vector<4x4xf32> -> vector<4x4xf32>
    %c0_27 = arith.constant 0 : index
    %c0_28 = arith.constant 0 : index
    %c0_29 = arith.constant 0 : index
    %29 = vector.load %arg16[%c0_27, %c0_28, %c0_29] : memref<3x1x4xf32, #tpu.memory_space<vmem>>, vector<1x1x4xf32>
    %30 = vector.shape_cast %29 : vector<1x1x4xf32> to vector<1x4xf32>
    %31 = vector.broadcast %30 : vector<1x4xf32> to vector<4x4xf32>
    %32 = arith.addf %28, %31 : vector<4x4xf32>
    %c1 = arith.constant 1 : index
    %c0_30 = arith.constant 0 : index
    %c0_31 = arith.constant 0 : index
    %33 = vector.load %arg12[%c1, %c0_30, %c0_31] : memref<3x128x128xf32, #tpu.memory_space<vmem>>, vector<1x128x128xf32>
    %34 = vector.shape_cast %33 : vector<1x128x128xf32> to vector<128x128xf32>
    %cst_32 = arith.constant dense<0.000000e+00> : vector<4x128xf32>
    %35 = tpu.matmul %17, %34, %cst_32 {dimension_numbers = #tpu.dot_dimension_numbers<[1], [0], [0], [1], [0, 0, 1, 1], [], []>} : vector<4x128xf32>, vector<128x128xf32>, vector<4x128xf32> -> vector<4x128xf32>
    %c1_33 = arith.constant 1 : index
    %c0_34 = arith.constant 0 : index
    %c0_35 = arith.constant 0 : index
    %36 = vector.load %arg13[%c1_33, %c0_34, %c0_35] : memref<3x1x128xf32, #tpu.memory_space<vmem>>, vector<1x1x128xf32>
    %37 = vector.shape_cast %36 : vector<1x1x128xf32> to vector<1x128xf32>
    %38 = vector.broadcast %37 : vector<1x128xf32> to vector<4x128xf32>
    %39 = arith.addf %35, %38 : vector<4x128xf32>
    %40 = math.tanh %39 : vector<4x128xf32>
    %c1_36 = arith.constant 1 : index
    %c0_37 = arith.constant 0 : index
    %c0_38 = arith.constant 0 : index
    %41 = vector.load %arg14[%c1_36, %c0_37, %c0_38] : memref<3x128x8xf32, #tpu.memory_space<vmem>>, vector<1x128x8xf32>
    %42 = vector.shape_cast %41 : vector<1x128x8xf32> to vector<128x8xf32>
    %cst_39 = arith.constant dense<0.000000e+00> : vector<4x8xf32>
    %43 = tpu.matmul %40, %42, %cst_39 {dimension_numbers = #tpu.dot_dimension_numbers<[1], [0], [0], [1], [0, 0, 1, 1], [], []>} : vector<4x128xf32>, vector<128x8xf32>, vector<4x8xf32> -> vector<4x8xf32>
    %44 = arith.negf %43 : vector<4x8xf32>
    %45 = math.exp %44 : vector<4x8xf32>
    %cst_40 = arith.constant 1.000000e+00 : f32
    %46 = vector.broadcast %cst_40 : f32 to vector<4x8xf32>
    %47 = arith.addf %46, %45 : vector<4x8xf32>
    %48 = arith.divf %46, %47 : vector<4x8xf32>
    %c1_41 = arith.constant 1 : index
    %c0_42 = arith.constant 0 : index
    %c0_43 = arith.constant 0 : index
    %49 = vector.load %arg15[%c1_41, %c0_42, %c0_43] : memref<3x8x4xf32, #tpu.memory_space<vmem>>, vector<1x8x4xf32>
    %50 = vector.shape_cast %49 : vector<1x8x4xf32> to vector<8x4xf32>
    %cst_44 = arith.constant dense<0.000000e+00> : vector<4x4xf32>
    %51 = tpu.matmul %48, %50, %cst_44 {dimension_numbers = #tpu.dot_dimension_numbers<[1], [0], [0], [1], [0, 0, 1, 1], [], []>} : vector<4x8xf32>, vector<8x4xf32>, vector<4x4xf32> -> vector<4x4xf32>
    %c1_45 = arith.constant 1 : index
    %c0_46 = arith.constant 0 : index
    %c0_47 = arith.constant 0 : index
    %52 = vector.load %arg16[%c1_45, %c0_46, %c0_47] : memref<3x1x4xf32, #tpu.memory_space<vmem>>, vector<1x1x4xf32>
    %53 = vector.shape_cast %52 : vector<1x1x4xf32> to vector<1x4xf32>
    %54 = vector.broadcast %53 : vector<1x4xf32> to vector<4x4xf32>
    %55 = arith.addf %51, %54 : vector<4x4xf32>
    %c2 = arith.constant 2 : index
    %c0_48 = arith.constant 0 : index
    %c0_49 = arith.constant 0 : index
    %56 = vector.load %arg12[%c2, %c0_48, %c0_49] : memref<3x128x128xf32, #tpu.memory_space<vmem>>, vector<1x128x128xf32>
    %57 = vector.shape_cast %56 : vector<1x128x128xf32> to vector<128x128xf32>
    %cst_50 = arith.constant dense<0.000000e+00> : vector<4x128xf32>
    %58 = tpu.matmul %40, %57, %cst_50 {dimension_numbers = #tpu.dot_dimension_numbers<[1], [0], [0], [1], [0, 0, 1, 1], [], []>} : vector<4x128xf32>, vector<128x128xf32>, vector<4x128xf32> -> vector<4x128xf32>
    %c2_51 = arith.constant 2 : index
    %c0_52 = arith.constant 0 : index
    %c0_53 = arith.constant 0 : index
    %59 = vector.load %arg13[%c2_51, %c0_52, %c0_53] : memref<3x1x128xf32, #tpu.memory_space<vmem>>, vector<1x1x128xf32>
    %60 = vector.shape_cast %59 : vector<1x1x128xf32> to vector<1x128xf32>
    %61 = vector.broadcast %60 : vector<1x128xf32> to vector<4x128xf32>
    %62 = arith.addf %58, %61 : vector<4x128xf32>
    %63 = math.tanh %62 : vector<4x128xf32>
    %c2_54 = arith.constant 2 : index
    %c0_55 = arith.constant 0 : index
    %c0_56 = arith.constant 0 : index
    %64 = vector.load %arg14[%c2_54, %c0_55, %c0_56] : memref<3x128x8xf32, #tpu.memory_space<vmem>>, vector<1x128x8xf32>
    %65 = vector.shape_cast %64 : vector<1x128x8xf32> to vector<128x8xf32>
    %cst_57 = arith.constant dense<0.000000e+00> : vector<4x8xf32>
    %66 = tpu.matmul %63, %65, %cst_57 {dimension_numbers = #tpu.dot_dimension_numbers<[1], [0], [0], [1], [0, 0, 1, 1], [], []>} : vector<4x128xf32>, vector<128x8xf32>, vector<4x8xf32> -> vector<4x8xf32>
    %67 = arith.negf %66 : vector<4x8xf32>
    %68 = math.exp %67 : vector<4x8xf32>
    %cst_58 = arith.constant 1.000000e+00 : f32
    %69 = vector.broadcast %cst_58 : f32 to vector<4x8xf32>
    %70 = arith.addf %69, %68 : vector<4x8xf32>
    %71 = arith.divf %69, %70 : vector<4x8xf32>
    %c2_59 = arith.constant 2 : index
    %c0_60 = arith.constant 0 : index
    %c0_61 = arith.constant 0 : index
    %72 = vector.load %arg15[%c2_59, %c0_60, %c0_61] : memref<3x8x4xf32, #tpu.memory_space<vmem>>, vector<1x8x4xf32>
    %73 = vector.shape_cast %72 : vector<1x8x4xf32> to vector<8x4xf32>
    %cst_62 = arith.constant dense<0.000000e+00> : vector<4x4xf32>
    %74 = tpu.matmul %71, %73, %cst_62 {dimension_numbers = #tpu.dot_dimension_numbers<[1], [0], [0], [1], [0, 0, 1, 1], [], []>} : vector<4x8xf32>, vector<8x4xf32>, vector<4x4xf32> -> vector<4x4xf32>
    %c2_63 = arith.constant 2 : index
    %c0_64 = arith.constant 0 : index
    %c0_65 = arith.constant 0 : index
    %75 = vector.load %arg16[%c2_63, %c0_64, %c0_65] : memref<3x1x4xf32, #tpu.memory_space<vmem>>, vector<1x1x4xf32>
    %76 = vector.shape_cast %75 : vector<1x1x4xf32> to vector<1x4xf32>
    %77 = vector.broadcast %76 : vector<1x4xf32> to vector<4x4xf32>
    %78 = arith.addf %74, %77 : vector<4x4xf32>
    %c0_66 = arith.constant 0 : index
    %c0_67 = arith.constant 0 : index
    %79 = vector.load %arg10[%c0_66, %c0_67] : memref<16x32xf32, #tpu.memory_space<vmem>>, vector<16x32xf32>
    %cst_68 = arith.constant dense<0.000000e+00> : vector<4x32xf32>
    %80 = tpu.matmul %0, %79, %cst_68 {dimension_numbers = #tpu.dot_dimension_numbers<[1], [0], [0], [1], [0, 0, 1, 1], [], []>} : vector<4x16xf32>, vector<16x32xf32>, vector<4x32xf32> -> vector<4x32xf32>
    %c0_69 = arith.constant 0 : index
    %c0_70 = arith.constant 0 : index
    %81 = vector.load %arg11[%c0_69, %c0_70] : memref<1x32xf32, #tpu.memory_space<vmem>>, vector<1x32xf32>
    %82 = vector.broadcast %81 : vector<1x32xf32> to vector<4x32xf32>
    %83 = arith.addf %80, %82 : vector<4x32xf32>
    %c0_71 = arith.constant 0 : index
    %c0_72 = arith.constant 0 : index
    %84 = vector.load %arg17[%c0_71, %c0_72] : memref<128x80xf32, #tpu.memory_space<vmem>>, vector<128x80xf32>
    %cst_73 = arith.constant dense<0.000000e+00> : vector<4x80xf32>
    %85 = tpu.matmul %63, %84, %cst_73 {dimension_numbers = #tpu.dot_dimension_numbers<[1], [0], [0], [1], [0, 0, 1, 1], [], []>} : vector<4x128xf32>, vector<128x80xf32>, vector<4x80xf32> -> vector<4x80xf32>
    %c0_74 = arith.constant 0 : index
    %c0_75 = arith.constant 0 : index
    %86 = vector.load %arg18[%c0_74, %c0_75] : memref<32x80xf32, #tpu.memory_space<vmem>>, vector<32x80xf32>
    %cst_76 = arith.constant dense<0.000000e+00> : vector<4x80xf32>
    %87 = tpu.matmul %83, %86, %cst_76 {dimension_numbers = #tpu.dot_dimension_numbers<[1], [0], [0], [1], [0, 0, 1, 1], [], []>} : vector<4x32xf32>, vector<32x80xf32>, vector<4x80xf32> -> vector<4x80xf32>
    %88 = arith.addf %85, %87 : vector<4x80xf32>
    %c0_77 = arith.constant 0 : index
    %c0_78 = arith.constant 0 : index
    %89 = vector.load %arg19[%c0_77, %c0_78] : memref<1x80xf32, #tpu.memory_space<vmem>>, vector<1x80xf32>
    %90 = vector.broadcast %89 : vector<1x80xf32> to vector<4x80xf32>
    %91 = arith.addf %88, %90 : vector<4x80xf32>
    %cst_79 = arith.constant 0.000000e+00 : f32
    %92 = vector.broadcast %cst_79 : f32 to vector<4x80xf32>
    %93 = arith.maximumf %91, %92 : vector<4x80xf32>
    %c0_80 = arith.constant 0 : index
    %c0_81 = arith.constant 0 : index
    %94 = vector.load %arg20[%c0_80, %c0_81] : memref<80x40xf32, #tpu.memory_space<vmem>>, vector<80x40xf32>
    %cst_82 = arith.constant dense<0.000000e+00> : vector<4x40xf32>
    %95 = tpu.matmul %93, %94, %cst_82 {dimension_numbers = #tpu.dot_dimension_numbers<[1], [0], [0], [1], [0, 0, 1, 1], [], []>} : vector<4x80xf32>, vector<80x40xf32>, vector<4x40xf32> -> vector<4x40xf32>
    %c0_83 = arith.constant 0 : index
    %c0_84 = arith.constant 0 : index
    %96 = vector.load %arg21[%c0_83, %c0_84] : memref<1x40xf32, #tpu.memory_space<vmem>>, vector<1x40xf32>
    %97 = vector.broadcast %96 : vector<1x40xf32> to vector<4x40xf32>
    %98 = arith.addf %95, %97 : vector<4x40xf32>
    %cst_85 = arith.constant 0.000000e+00 : f32
    %99 = vector.broadcast %cst_85 : f32 to vector<4x40xf32>
    %100 = arith.maximumf %98, %99 : vector<4x40xf32>
    %c0_86 = arith.constant 0 : index
    %c0_87 = arith.constant 0 : index
    %101 = vector.load %arg22[%c0_86, %c0_87] : memref<40x20xf32, #tpu.memory_space<vmem>>, vector<40x20xf32>
    %cst_88 = arith.constant dense<0.000000e+00> : vector<4x20xf32>
    %102 = tpu.matmul %100, %101, %cst_88 {dimension_numbers = #tpu.dot_dimension_numbers<[1], [0], [0], [1], [0, 0, 1, 1], [], []>} : vector<4x40xf32>, vector<40x20xf32>, vector<4x20xf32> -> vector<4x20xf32>
    %c0_89 = arith.constant 0 : index
    %c0_90 = arith.constant 0 : index
    %103 = vector.load %arg23[%c0_89, %c0_90] : memref<1x20xf32, #tpu.memory_space<vmem>>, vector<1x20xf32>
    %104 = vector.broadcast %103 : vector<1x20xf32> to vector<4x20xf32>
    %105 = arith.addf %102, %104 : vector<4x20xf32>
    %cst_91 = arith.constant 0.000000e+00 : f32
    %106 = vector.broadcast %cst_91 : f32 to vector<4x20xf32>
    %107 = arith.maximumf %105, %106 : vector<4x20xf32>
    %c0_92 = arith.constant 0 : index
    %c0_93 = arith.constant 0 : index
    %108 = vector.load %arg24[%c0_92, %c0_93] : memref<20x3xf32, #tpu.memory_space<vmem>>, vector<20x3xf32>
    %cst_94 = arith.constant dense<0.000000e+00> : vector<4x3xf32>
    %109 = tpu.matmul %107, %108, %cst_94 {dimension_numbers = #tpu.dot_dimension_numbers<[1], [0], [0], [1], [0, 0, 1, 1], [], []>} : vector<4x20xf32>, vector<20x3xf32>, vector<4x3xf32> -> vector<4x3xf32>
    %c0_95 = arith.constant 0 : index
    %c0_96 = arith.constant 0 : index
    %110 = vector.load %arg25[%c0_95, %c0_96] : memref<1x3xf32, #tpu.memory_space<vmem>>, vector<1x3xf32>
    %111 = vector.broadcast %110 : vector<1x3xf32> to vector<4x3xf32>
    %112 = arith.addf %109, %111 : vector<4x3xf32>
    %c0_97 = arith.constant 0 : index
    %c0_98 = arith.constant 0 : index
    %113 = vector.load %arg6[%c0_97, %c0_98] : memref<16x128xf32, #tpu.memory_space<vmem>>, vector<16x128xf32>
    %cst_99 = arith.constant dense<0.000000e+00> : vector<4x128xf32>
    %114 = tpu.matmul %0, %113, %cst_99 {dimension_numbers = #tpu.dot_dimension_numbers<[1], [0], [0], [1], [0, 0, 1, 1], [], []>} : vector<4x16xf32>, vector<16x128xf32>, vector<4x128xf32> -> vector<4x128xf32>
    %c0_100 = arith.constant 0 : index
    %c0_101 = arith.constant 0 : index
    %115 = vector.load %arg7[%c0_100, %c0_101] : memref<1x128xf32, #tpu.memory_space<vmem>>, vector<1x128xf32>
    %116 = vector.broadcast %115 : vector<1x128xf32> to vector<4x128xf32>
    %117 = arith.addf %114, %116 : vector<4x128xf32>
    %118 = math.tanh %117 : vector<4x128xf32>
    %c0_102 = arith.constant 0 : index
    %c0_103 = arith.constant 0 : index
    %119 = vector.load %arg8[%c0_102, %c0_103] : memref<128x128xf32, #tpu.memory_space<vmem>>, vector<128x128xf32>
    %cst_104 = arith.constant dense<0.000000e+00> : vector<4x128xf32>
    %120 = tpu.matmul %118, %119, %cst_104 {dimension_numbers = #tpu.dot_dimension_numbers<[1], [0], [0], [1], [0, 0, 1, 1], [], []>} : vector<4x128xf32>, vector<128x128xf32>, vector<4x128xf32> -> vector<4x128xf32>
    %c0_105 = arith.constant 0 : index
    %c0_106 = arith.constant 0 : index
    %121 = vector.load %arg9[%c0_105, %c0_106] : memref<1x128xf32, #tpu.memory_space<vmem>>, vector<1x128xf32>
    %122 = vector.broadcast %121 : vector<1x128xf32> to vector<4x128xf32>
    %123 = arith.addf %120, %122 : vector<4x128xf32>
    %124 = math.tanh %123 : vector<4x128xf32>
    %c0_107 = arith.constant 0 : index
    %c0_108 = arith.constant 0 : index
    %125 = vector.load %arg26[%c0_107, %c0_108] : memref<128x80xf32, #tpu.memory_space<vmem>>, vector<128x80xf32>
    %cst_109 = arith.constant dense<0.000000e+00> : vector<4x80xf32>
    %126 = tpu.matmul %63, %125, %cst_109 {dimension_numbers = #tpu.dot_dimension_numbers<[1], [0], [0], [1], [0, 0, 1, 1], [], []>} : vector<4x128xf32>, vector<128x80xf32>, vector<4x80xf32> -> vector<4x80xf32>
    %c0_110 = arith.constant 0 : index
    %c0_111 = arith.constant 0 : index
    %127 = vector.load %arg27[%c0_110, %c0_111] : memref<128x80xf32, #tpu.memory_space<vmem>>, vector<128x80xf32>
    %cst_112 = arith.constant dense<0.000000e+00> : vector<4x80xf32>
    %128 = tpu.matmul %124, %127, %cst_112 {dimension_numbers = #tpu.dot_dimension_numbers<[1], [0], [0], [1], [0, 0, 1, 1], [], []>} : vector<4x128xf32>, vector<128x80xf32>, vector<4x80xf32> -> vector<4x80xf32>
    %129 = arith.addf %126, %128 : vector<4x80xf32>
    %c0_113 = arith.constant 0 : index
    %c0_114 = arith.constant 0 : index
    %130 = vector.load %arg28[%c0_113, %c0_114] : memref<1x80xf32, #tpu.memory_space<vmem>>, vector<1x80xf32>
    %131 = vector.broadcast %130 : vector<1x80xf32> to vector<4x80xf32>
    %132 = arith.addf %129, %131 : vector<4x80xf32>
    %cst_115 = arith.constant 0.000000e+00 : f32
    %133 = vector.broadcast %cst_115 : f32 to vector<4x80xf32>
    %134 = arith.maximumf %132, %133 : vector<4x80xf32>
    %c0_116 = arith.constant 0 : index
    %c0_117 = arith.constant 0 : index
    %135 = vector.load %arg29[%c0_116, %c0_117] : memref<80x40xf32, #tpu.memory_space<vmem>>, vector<80x40xf32>
    %cst_118 = arith.constant dense<0.000000e+00> : vector<4x40xf32>
    %136 = tpu.matmul %134, %135, %cst_118 {dimension_numbers = #tpu.dot_dimension_numbers<[1], [0], [0], [1], [0, 0, 1, 1], [], []>} : vector<4x80xf32>, vector<80x40xf32>, vector<4x40xf32> -> vector<4x40xf32>
    %c0_119 = arith.constant 0 : index
    %c0_120 = arith.constant 0 : index
    %137 = vector.load %arg30[%c0_119, %c0_120] : memref<1x40xf32, #tpu.memory_space<vmem>>, vector<1x40xf32>
    %138 = vector.broadcast %137 : vector<1x40xf32> to vector<4x40xf32>
    %139 = arith.addf %136, %138 : vector<4x40xf32>
    %cst_121 = arith.constant 0.000000e+00 : f32
    %140 = vector.broadcast %cst_121 : f32 to vector<4x40xf32>
    %141 = arith.maximumf %139, %140 : vector<4x40xf32>
    %c0_122 = arith.constant 0 : index
    %c0_123 = arith.constant 0 : index
    %142 = vector.load %arg31[%c0_122, %c0_123] : memref<40x20xf32, #tpu.memory_space<vmem>>, vector<40x20xf32>
    %cst_124 = arith.constant dense<0.000000e+00> : vector<4x20xf32>
    %143 = tpu.matmul %141, %142, %cst_124 {dimension_numbers = #tpu.dot_dimension_numbers<[1], [0], [0], [1], [0, 0, 1, 1], [], []>} : vector<4x40xf32>, vector<40x20xf32>, vector<4x20xf32> -> vector<4x20xf32>
    %c0_125 = arith.constant 0 : index
    %c0_126 = arith.constant 0 : index
    %144 = vector.load %arg32[%c0_125, %c0_126] : memref<1x20xf32, #tpu.memory_space<vmem>>, vector<1x20xf32>
    %145 = vector.broadcast %144 : vector<1x20xf32> to vector<4x20xf32>
    %146 = arith.addf %143, %145 : vector<4x20xf32>
    %cst_127 = arith.constant 0.000000e+00 : f32
    %147 = vector.broadcast %cst_127 : f32 to vector<4x20xf32>
    %148 = arith.maximumf %146, %147 : vector<4x20xf32>
    %c0_128 = arith.constant 0 : index
    %c0_129 = arith.constant 0 : index
    %149 = vector.load %arg33[%c0_128, %c0_129] : memref<20x3xf32, #tpu.memory_space<vmem>>, vector<20x3xf32>
    %cst_130 = arith.constant dense<0.000000e+00> : vector<4x3xf32>
    %150 = tpu.matmul %148, %149, %cst_130 {dimension_numbers = #tpu.dot_dimension_numbers<[1], [0], [0], [1], [0, 0, 1, 1], [], []>} : vector<4x20xf32>, vector<20x3xf32>, vector<4x3xf32> -> vector<4x3xf32>
    %c0_131 = arith.constant 0 : index
    %c0_132 = arith.constant 0 : index
    %151 = vector.load %arg34[%c0_131, %c0_132] : memref<1x3xf32, #tpu.memory_space<vmem>>, vector<1x3xf32>
    %152 = vector.broadcast %151 : vector<1x3xf32> to vector<4x3xf32>
    %153 = arith.addf %150, %152 : vector<4x3xf32>
    %154 = vector.extract_strided_slice %112 {offsets = [0, 0], sizes = [4, 1], strides = [1, 1]} : vector<4x3xf32> to vector<4x1xf32>
    %cst_133 = arith.constant 0.000000e+00 : f32
    %155 = vector.broadcast %cst_133 : f32 to vector<4x1xf32>
    %156 = arith.cmpf ogt, %1, %155 : vector<4x1xf32>
    %157 = arith.extui %156 : vector<4x1xi1> to vector<4x1xi32>
    %158 = arith.sitofp %157 : vector<4x1xi32> to vector<4x1xf32>
    %cst_134 = arith.constant 0.000000e+00 : f32
    %159 = vector.broadcast %cst_134 : f32 to vector<4x1xf32>
    %160 = arith.maximumf %154, %159 : vector<4x1xf32>
    %161 = arith.mulf %154, %158 : vector<4x1xf32>
    %162 = arith.subf %160, %161 : vector<4x1xf32>
    %163 = math.absf %154 : vector<4x1xf32>
    %cst_135 = arith.constant 0.000000e+00 : f32
    %164 = vector.broadcast %cst_135 : f32 to vector<4x1xf32>
    %165 = arith.subf %164, %163 : vector<4x1xf32>
    %166 = math.exp %165 : vector<4x1xf32>
    %167 = math.log1p %166 : vector<4x1xf32>
    %168 = arith.addf %162, %167 : vector<4x1xf32>
    %169 = vector.extract_strided_slice %112 {offsets = [0, 1], sizes = [4, 1], strides = [1, 1]} : vector<4x3xf32> to vector<4x1xf32>
    %170 = vector.extract_strided_slice %112 {offsets = [0, 2], sizes = [4, 1], strides = [1, 1]} : vector<4x3xf32> to vector<4x1xf32>
    %cst_136 = arith.constant 0.000000e+00 : f32
    %171 = vector.broadcast %cst_136 : f32 to vector<4x1xf32>
    %172 = arith.maximumf %170, %171 : vector<4x1xf32>
    %173 = vector.broadcast %cst_136 : f32 to vector<4x1xf32>
    %174 = arith.subf %170, %173 : vector<4x1xf32>
    %175 = arith.cmpf one, %174, %174 : vector<4x1xf32>
    %176 = vector.broadcast %cst_136 : f32 to vector<4x1xf32>
    %177 = arith.addf %170, %176 : vector<4x1xf32>
    %178 = math.absf %174 : vector<4x1xf32>
    %cst_137 = arith.constant 0.000000e+00 : f32
    %179 = vector.broadcast %cst_137 : f32 to vector<4x1xf32>
    %180 = arith.subf %179, %178 : vector<4x1xf32>
    %181 = math.exp %180 : vector<4x1xf32>
    %182 = math.log1p %181 : vector<4x1xf32>
    %183 = arith.addf %172, %182 : vector<4x1xf32>
    %184 = arith.select %175, %177, %183 : vector<4x1xi1>, vector<4x1xf32>
    %cst_138 = arith.constant 3.45266977E-4 : f32
    %185 = vector.broadcast %cst_138 : f32 to vector<4x1xf32>
    %186 = arith.maximumf %184, %185 : vector<4x1xf32>
    %187 = arith.mulf %158, %1 : vector<4x1xf32>
    %cst_139 = arith.constant 1.000000e+00 : f32
    %188 = vector.broadcast %cst_139 : f32 to vector<4x1xf32>
    %189 = arith.subf %188, %158 : vector<4x1xf32>
    %190 = arith.addf %187, %189 : vector<4x1xf32>
    %191 = math.log %190 : vector<4x1xf32>
    %cst_140 = arith.constant 0.000000e+00 : f32
    %192 = vector.broadcast %cst_140 : f32 to vector<4x1xf32>
    %193 = arith.subf %192, %191 : vector<4x1xf32>
    %194 = math.log %186 : vector<4x1xf32>
    %195 = arith.subf %193, %194 : vector<4x1xf32>
    %cst_141 = arith.constant 6.28318548 : f32
    %196 = math.log %cst_141 : f32
    %cst_142 = arith.constant 5.000000e-01 : f32
    %197 = arith.mulf %cst_142, %196 : f32
    %198 = vector.broadcast %197 : f32 to vector<4x1xf32>
    %199 = arith.subf %195, %198 : vector<4x1xf32>
    %200 = arith.subf %191, %169 : vector<4x1xf32>
    %201 = arith.mulf %200, %200 : vector<4x1xf32>
    %202 = arith.mulf %186, %186 : vector<4x1xf32>
    %cst_143 = arith.constant 2.000000e+00 : f32
    %203 = vector.broadcast %cst_143 : f32 to vector<4x1xf32>
    %204 = arith.mulf %203, %202 : vector<4x1xf32>
    %205 = arith.divf %201, %204 : vector<4x1xf32>
    %206 = arith.subf %199, %205 : vector<4x1xf32>
    %cst_144 = arith.constant 0.000000e+00 : f32
    %207 = vector.broadcast %cst_144 : f32 to vector<4x1xf32>
    %208 = arith.subf %207, %158 : vector<4x1xf32>
    %209 = arith.mulf %208, %206 : vector<4x1xf32>
    %210 = arith.addf %168, %209 : vector<4x1xf32>
    %211 = vector.shape_cast %210 : vector<4x1xf32> to vector<1x4x1xf32>
    %cst_145 = arith.constant dense<0.000000e+00> : vector<1xf32>
    %212 = vector.multi_reduction <add>, %211, %cst_145 [1, 2] : vector<1x4x1xf32> to vector<1xf32>
    %213 = vector.shape_cast %212 : vector<1xf32> to vector<1x1x1xf32>
    %214 = vector.extract %213[0, 0, 0] : f32 from vector<1x1x1xf32>
    %215 = vector.broadcast %214 : f32 to vector<1x1xf32>
    %cst_146 = arith.constant 4.000000e+00 : f32
    %216 = vector.broadcast %cst_146 : f32 to vector<1x1xf32>
    %217 = arith.divf %215, %216 : vector<1x1xf32>
    %218 = vector.extract_strided_slice %153 {offsets = [0, 0], sizes = [4, 1], strides = [1, 1]} : vector<4x3xf32> to vector<4x1xf32>
    %cst_147 = arith.constant 0.000000e+00 : f32
    %219 = vector.broadcast %cst_147 : f32 to vector<4x1xf32>
    %220 = arith.cmpf ogt, %1, %219 : vector<4x1xf32>
    %221 = arith.extui %220 : vector<4x1xi1> to vector<4x1xi32>
    %222 = arith.sitofp %221 : vector<4x1xi32> to vector<4x1xf32>
    %cst_148 = arith.constant 0.000000e+00 : f32
    %223 = vector.broadcast %cst_148 : f32 to vector<4x1xf32>
    %224 = arith.maximumf %218, %223 : vector<4x1xf32>
    %225 = arith.mulf %218, %222 : vector<4x1xf32>
    %226 = arith.subf %224, %225 : vector<4x1xf32>
    %227 = math.absf %218 : vector<4x1xf32>
    %cst_149 = arith.constant 0.000000e+00 : f32
    %228 = vector.broadcast %cst_149 : f32 to vector<4x1xf32>
    %229 = arith.subf %228, %227 : vector<4x1xf32>
    %230 = math.exp %229 : vector<4x1xf32>
    %231 = math.log1p %230 : vector<4x1xf32>
    %232 = arith.addf %226, %231 : vector<4x1xf32>
    %233 = vector.extract_strided_slice %153 {offsets = [0, 1], sizes = [4, 1], strides = [1, 1]} : vector<4x3xf32> to vector<4x1xf32>
    %234 = vector.extract_strided_slice %153 {offsets = [0, 2], sizes = [4, 1], strides = [1, 1]} : vector<4x3xf32> to vector<4x1xf32>
    %cst_150 = arith.constant 0.000000e+00 : f32
    %235 = vector.broadcast %cst_150 : f32 to vector<4x1xf32>
    %236 = arith.maximumf %234, %235 : vector<4x1xf32>
    %237 = vector.broadcast %cst_150 : f32 to vector<4x1xf32>
    %238 = arith.subf %234, %237 : vector<4x1xf32>
    %239 = arith.cmpf one, %238, %238 : vector<4x1xf32>
    %240 = vector.broadcast %cst_150 : f32 to vector<4x1xf32>
    %241 = arith.addf %234, %240 : vector<4x1xf32>
    %242 = math.absf %238 : vector<4x1xf32>
    %cst_151 = arith.constant 0.000000e+00 : f32
    %243 = vector.broadcast %cst_151 : f32 to vector<4x1xf32>
    %244 = arith.subf %243, %242 : vector<4x1xf32>
    %245 = math.exp %244 : vector<4x1xf32>
    %246 = math.log1p %245 : vector<4x1xf32>
    %247 = arith.addf %236, %246 : vector<4x1xf32>
    %248 = arith.select %239, %241, %247 : vector<4x1xi1>, vector<4x1xf32>
    %cst_152 = arith.constant 3.45266977E-4 : f32
    %249 = vector.broadcast %cst_152 : f32 to vector<4x1xf32>
    %250 = arith.maximumf %248, %249 : vector<4x1xf32>
    %251 = arith.mulf %222, %1 : vector<4x1xf32>
    %cst_153 = arith.constant 1.000000e+00 : f32
    %252 = vector.broadcast %cst_153 : f32 to vector<4x1xf32>
    %253 = arith.subf %252, %222 : vector<4x1xf32>
    %254 = arith.addf %251, %253 : vector<4x1xf32>
    %255 = math.log %254 : vector<4x1xf32>
    %cst_154 = arith.constant 0.000000e+00 : f32
    %256 = vector.broadcast %cst_154 : f32 to vector<4x1xf32>
    %257 = arith.subf %256, %255 : vector<4x1xf32>
    %258 = math.log %250 : vector<4x1xf32>
    %259 = arith.subf %257, %258 : vector<4x1xf32>
    %cst_155 = arith.constant 6.28318548 : f32
    %260 = math.log %cst_155 : f32
    %cst_156 = arith.constant 5.000000e-01 : f32
    %261 = arith.mulf %cst_156, %260 : f32
    %262 = vector.broadcast %261 : f32 to vector<4x1xf32>
    %263 = arith.subf %259, %262 : vector<4x1xf32>
    %264 = arith.subf %255, %233 : vector<4x1xf32>
    %265 = arith.mulf %264, %264 : vector<4x1xf32>
    %266 = arith.mulf %250, %250 : vector<4x1xf32>
    %cst_157 = arith.constant 2.000000e+00 : f32
    %267 = vector.broadcast %cst_157 : f32 to vector<4x1xf32>
    %268 = arith.mulf %267, %266 : vector<4x1xf32>
    %269 = arith.divf %265, %268 : vector<4x1xf32>
    %270 = arith.subf %263, %269 : vector<4x1xf32>
    %cst_158 = arith.constant 0.000000e+00 : f32
    %271 = vector.broadcast %cst_158 : f32 to vector<4x1xf32>
    %272 = arith.subf %271, %222 : vector<4x1xf32>
    %273 = arith.mulf %272, %270 : vector<4x1xf32>
    %274 = arith.addf %232, %273 : vector<4x1xf32>
    %275 = vector.shape_cast %274 : vector<4x1xf32> to vector<1x4x1xf32>
    %cst_159 = arith.constant dense<0.000000e+00> : vector<1xf32>
    %276 = vector.multi_reduction <add>, %275, %cst_159 [1, 2] : vector<1x4x1xf32> to vector<1xf32>
    %277 = vector.shape_cast %276 : vector<1xf32> to vector<1x1x1xf32>
    %278 = vector.extract %277[0, 0, 0] : f32 from vector<1x1x1xf32>
    %279 = vector.broadcast %278 : f32 to vector<1x1xf32>
    %cst_160 = arith.constant 4.000000e+00 : f32
    %280 = vector.broadcast %cst_160 : f32 to vector<1x1xf32>
    %281 = arith.divf %279, %280 : vector<1x1xf32>
    %cst_161 = arith.constant 5.000000e-01 : f32
    %282 = vector.broadcast %cst_161 : f32 to vector<1x1xf32>
    %283 = arith.mulf %282, %281 : vector<1x1xf32>
    %284 = arith.addf %217, %283 : vector<1x1xf32>
    %285 = vector.extract_strided_slice %112 {offsets = [0, 0], sizes = [4, 1], strides = [1, 1]} : vector<4x3xf32> to vector<4x1xf32>
    %286 = arith.negf %285 : vector<4x1xf32>
    %287 = math.exp %286 : vector<4x1xf32>
    %cst_162 = arith.constant 1.000000e+00 : f32
    %288 = vector.broadcast %cst_162 : f32 to vector<4x1xf32>
    %289 = arith.addf %288, %287 : vector<4x1xf32>
    %290 = arith.divf %288, %289 : vector<4x1xf32>
    %291 = vector.extract_strided_slice %112 {offsets = [0, 1], sizes = [4, 1], strides = [1, 1]} : vector<4x3xf32> to vector<4x1xf32>
    %292 = vector.extract_strided_slice %112 {offsets = [0, 2], sizes = [4, 1], strides = [1, 1]} : vector<4x3xf32> to vector<4x1xf32>
    %cst_163 = arith.constant 0.000000e+00 : f32
    %293 = vector.broadcast %cst_163 : f32 to vector<4x1xf32>
    %294 = arith.maximumf %292, %293 : vector<4x1xf32>
    %295 = vector.broadcast %cst_163 : f32 to vector<4x1xf32>
    %296 = arith.subf %292, %295 : vector<4x1xf32>
    %297 = arith.cmpf one, %296, %296 : vector<4x1xf32>
    %298 = vector.broadcast %cst_163 : f32 to vector<4x1xf32>
    %299 = arith.addf %292, %298 : vector<4x1xf32>
    %300 = math.absf %296 : vector<4x1xf32>
    %cst_164 = arith.constant 0.000000e+00 : f32
    %301 = vector.broadcast %cst_164 : f32 to vector<4x1xf32>
    %302 = arith.subf %301, %300 : vector<4x1xf32>
    %303 = math.exp %302 : vector<4x1xf32>
    %304 = math.log1p %303 : vector<4x1xf32>
    %305 = arith.addf %294, %304 : vector<4x1xf32>
    %306 = arith.select %297, %299, %305 : vector<4x1xi1>, vector<4x1xf32>
    %307 = arith.mulf %306, %306 : vector<4x1xf32>
    %cst_165 = arith.constant 5.000000e-01 : f32
    %308 = vector.broadcast %cst_165 : f32 to vector<4x1xf32>
    %309 = arith.mulf %308, %307 : vector<4x1xf32>
    %310 = arith.addf %291, %309 : vector<4x1xf32>
    %311 = math.exp %310 : vector<4x1xf32>
    %312 = arith.mulf %290, %311 : vector<4x1xf32>
    %cst_166 = arith.constant 0.000000e+00 : f32
    %313 = vector.broadcast %cst_166 : f32 to vector<4x1xf32>
    %314 = arith.subf %3, %2 : vector<4x1xf32>
    %315 = arith.subf %1, %3 : vector<4x1xf32>
    %316 = tpu.concatenate %313, %2, %314, %315 in 1 : vector<4x1xf32>, vector<4x1xf32>, vector<4x1xf32>, vector<4x1xf32> -> vector<4x4xf32>
    %cst_167 = arith.constant 0.000000e+00 : f32
    %317 = vector.broadcast %cst_167 : f32 to vector<4x4xf32>
    %318 = arith.maximumf %316, %317 : vector<4x4xf32>
    %cst_168 = arith.constant dense<0xFF800000> : vector<4xf32>
    %319 = vector.multi_reduction <maximumf>, %318, %cst_168 [1] : vector<4x4xf32> to vector<4xf32>
    %320 = vector.shape_cast %319 : vector<4xf32> to vector<4x1xf32>
    %321 = tpu.iota {dimensions = array<i32: 1>} : vector<4x4xi32>
    %322 = vector.broadcast %320 : vector<4x1xf32> to vector<4x4xf32>
    %323 = arith.cmpf oeq, %318, %322 : vector<4x4xf32>
    %c4_i32 = arith.constant 4 : i32
    %324 = vector.broadcast %c4_i32 : i32 to vector<4x4xi32>
    %325 = arith.select %323, %321, %324 : vector<4x4xi1>, vector<4x4xi32>
    %cst_169 = arith.constant dense<2147483647> : vector<4xi32>
    %326 = vector.multi_reduction <minsi>, %325, %cst_169 [1] : vector<4x4xi32> to vector<4xi32>
    %327 = vector.shape_cast %326 : vector<4xi32> to vector<4x1xi32>
    %328 = vector.broadcast %327 : vector<4x1xi32> to vector<4x4xi32>
    %329 = arith.cmpi eq, %321, %328 : vector<4x4xi32>
    %330 = arith.extui %329 : vector<4x4xi1> to vector<4x4xi32>
    %331 = arith.sitofp %330 : vector<4x4xi32> to vector<4x4xf32>
    %cst_170 = arith.constant dense<0xFF800000> : vector<4xf32>
    %332 = vector.multi_reduction <maximumf>, %32, %cst_170 [1] : vector<4x4xf32> to vector<4xf32>
    %333 = vector.shape_cast %332 : vector<4xf32> to vector<4x1xf32>
    %334 = vector.broadcast %333 : vector<4x1xf32> to vector<4x4xf32>
    %335 = arith.subf %32, %334 : vector<4x4xf32>
    %336 = math.exp %335 : vector<4x4xf32>
    %cst_171 = arith.constant dense<0.000000e+00> : vector<4xf32>
    %337 = vector.multi_reduction <add>, %336, %cst_171 [1] : vector<4x4xf32> to vector<4xf32>
    %338 = vector.shape_cast %337 : vector<4xf32> to vector<4x1xf32>
    %339 = math.log %338 : vector<4x1xf32>
    %340 = arith.addf %333, %339 : vector<4x1xf32>
    %341 = vector.broadcast %340 : vector<4x1xf32> to vector<4x4xf32>
    %342 = arith.subf %341, %32 : vector<4x4xf32>
    %343 = arith.mulf %331, %342 : vector<4x4xf32>
    %cst_172 = arith.constant dense<0.000000e+00> : vector<4xf32>
    %344 = vector.multi_reduction <add>, %343, %cst_172 [1] : vector<4x4xf32> to vector<4xf32>
    %345 = vector.shape_cast %344 : vector<4xf32> to vector<4x1xf32>
    %346 = vector.shape_cast %345 : vector<4x1xf32> to vector<1x4x1xf32>
    %cst_173 = arith.constant dense<0.000000e+00> : vector<1xf32>
    %347 = vector.multi_reduction <add>, %346, %cst_173 [1, 2] : vector<1x4x1xf32> to vector<1xf32>
    %348 = vector.shape_cast %347 : vector<1xf32> to vector<1x1x1xf32>
    %349 = vector.extract %348[0, 0, 0] : f32 from vector<1x1x1xf32>
    %350 = vector.broadcast %349 : f32 to vector<1x1xf32>
    %cst_174 = arith.constant 4.000000e+00 : f32
    %351 = vector.broadcast %cst_174 : f32 to vector<1x1xf32>
    %352 = arith.divf %350, %351 : vector<1x1xf32>
    %cst_175 = arith.constant 5.000000e-01 : f32
    %353 = vector.broadcast %cst_175 : f32 to vector<1x1xf32>
    %354 = arith.mulf %353, %352 : vector<1x1xf32>
    %355 = arith.addf %284, %354 : vector<1x1xf32>
    %cst_176 = arith.constant dense<0xFF800000> : vector<4xf32>
    %356 = vector.multi_reduction <maximumf>, %55, %cst_176 [1] : vector<4x4xf32> to vector<4xf32>
    %357 = vector.shape_cast %356 : vector<4xf32> to vector<4x1xf32>
    %358 = vector.broadcast %357 : vector<4x1xf32> to vector<4x4xf32>
    %359 = arith.subf %55, %358 : vector<4x4xf32>
    %360 = math.exp %359 : vector<4x4xf32>
    %cst_177 = arith.constant dense<0.000000e+00> : vector<4xf32>
    %361 = vector.multi_reduction <add>, %360, %cst_177 [1] : vector<4x4xf32> to vector<4xf32>
    %362 = vector.shape_cast %361 : vector<4xf32> to vector<4x1xf32>
    %363 = math.log %362 : vector<4x1xf32>
    %364 = arith.addf %357, %363 : vector<4x1xf32>
    %365 = vector.broadcast %364 : vector<4x1xf32> to vector<4x4xf32>
    %366 = arith.subf %365, %55 : vector<4x4xf32>
    %367 = arith.mulf %331, %366 : vector<4x4xf32>
    %cst_178 = arith.constant dense<0.000000e+00> : vector<4xf32>
    %368 = vector.multi_reduction <add>, %367, %cst_178 [1] : vector<4x4xf32> to vector<4xf32>
    %369 = vector.shape_cast %368 : vector<4xf32> to vector<4x1xf32>
    %370 = vector.shape_cast %369 : vector<4x1xf32> to vector<1x4x1xf32>
    %cst_179 = arith.constant dense<0.000000e+00> : vector<1xf32>
    %371 = vector.multi_reduction <add>, %370, %cst_179 [1, 2] : vector<1x4x1xf32> to vector<1xf32>
    %372 = vector.shape_cast %371 : vector<1xf32> to vector<1x1x1xf32>
    %373 = vector.extract %372[0, 0, 0] : f32 from vector<1x1x1xf32>
    %374 = vector.broadcast %373 : f32 to vector<1x1xf32>
    %cst_180 = arith.constant 4.000000e+00 : f32
    %375 = vector.broadcast %cst_180 : f32 to vector<1x1xf32>
    %376 = arith.divf %374, %375 : vector<1x1xf32>
    %cst_181 = arith.constant 5.000000e-01 : f32
    %377 = vector.broadcast %cst_181 : f32 to vector<1x1xf32>
    %378 = arith.mulf %377, %376 : vector<1x1xf32>
    %379 = arith.addf %355, %378 : vector<1x1xf32>
    %cst_182 = arith.constant dense<0xFF800000> : vector<4xf32>
    %380 = vector.multi_reduction <maximumf>, %78, %cst_182 [1] : vector<4x4xf32> to vector<4xf32>
    %381 = vector.shape_cast %380 : vector<4xf32> to vector<4x1xf32>
    %382 = vector.broadcast %381 : vector<4x1xf32> to vector<4x4xf32>
    %383 = arith.subf %78, %382 : vector<4x4xf32>
    %384 = math.exp %383 : vector<4x4xf32>
    %cst_183 = arith.constant dense<0.000000e+00> : vector<4xf32>
    %385 = vector.multi_reduction <add>, %384, %cst_183 [1] : vector<4x4xf32> to vector<4xf32>
    %386 = vector.shape_cast %385 : vector<4xf32> to vector<4x1xf32>
    %387 = math.log %386 : vector<4x1xf32>
    %388 = arith.addf %381, %387 : vector<4x1xf32>
    %389 = vector.broadcast %388 : vector<4x1xf32> to vector<4x4xf32>
    %390 = arith.subf %389, %78 : vector<4x4xf32>
    %391 = arith.mulf %331, %390 : vector<4x4xf32>
    %cst_184 = arith.constant dense<0.000000e+00> : vector<4xf32>
    %392 = vector.multi_reduction <add>, %391, %cst_184 [1] : vector<4x4xf32> to vector<4xf32>
    %393 = vector.shape_cast %392 : vector<4xf32> to vector<4x1xf32>
    %394 = vector.shape_cast %393 : vector<4x1xf32> to vector<1x4x1xf32>
    %cst_185 = arith.constant dense<0.000000e+00> : vector<1xf32>
    %395 = vector.multi_reduction <add>, %394, %cst_185 [1, 2] : vector<1x4x1xf32> to vector<1xf32>
    %396 = vector.shape_cast %395 : vector<1xf32> to vector<1x1x1xf32>
    %397 = vector.extract %396[0, 0, 0] : f32 from vector<1x1x1xf32>
    %398 = vector.broadcast %397 : f32 to vector<1x1xf32>
    %cst_186 = arith.constant 4.000000e+00 : f32
    %399 = vector.broadcast %cst_186 : f32 to vector<1x1xf32>
    %400 = arith.divf %398, %399 : vector<1x1xf32>
    %cst_187 = arith.constant 5.000000e-01 : f32
    %401 = vector.broadcast %cst_187 : f32 to vector<1x1xf32>
    %402 = arith.mulf %401, %400 : vector<1x1xf32>
    %403 = arith.addf %379, %402 : vector<1x1xf32>
    %404 = vector.shape_cast %403 : vector<1x1xf32> to vector<1x1xf32>
    %405 = vector.broadcast %404 : vector<1x1xf32> to vector<4x1xf32>
    %cst_188 = arith.constant 0.000000e+00 : f32
    %406 = vector.broadcast %cst_188 : f32 to vector<4x122xf32>
    %407 = tpu.concatenate %112, %290, %312, %405, %406 in 1 : vector<4x3xf32>, vector<4x1xf32>, vector<4x1xf32>, vector<4x1xf32>, vector<4x122xf32> -> vector<4x128xf32>
    %c0_189 = arith.constant 0 : index
    %c0_190 = arith.constant 0 : index
    %408 = vector.load %arg35[%c0_189, %c0_190] : memref<4x128xf32, #tpu.memory_space<vmem>>, vector<4x128xf32>
    tpu.vector_store %arg35[%c0_189, %c0_190], %407 {strides = array<i32>} : memref<4x128xf32, #tpu.memory_space<vmem>>, vector<4x128xf32>,
    return
  }
}

</mosaic_0001>

<llo_original>
// kernel: trtg_cls_forward.1
$region0: #{trtg_cls_forward.1}
  #allocation0 [shape = 'u32[]', space=smem, size = 0x4, offset = 0x4, fixed_abs, tag = 'smem constant byte address 0x4 - core index']
  #allocation1 [shape = 'u32[144,128]{1,0:T(1,128)}', space=vmem, size = 0x12000, scoped, tag = 'internal scratch']
  %s0 = inlined_call_operand.smem [shape: u32[36], index: -1, kind: input, shape index: {}]
  %s1 = sld [smem:[%s0]]
  %s2 = scalar_lea.smem %s0, 1
  %s3 = sld [smem:[%s2]]
  %s4 = scalar_lea.smem %s0, 2
  %s5 = sld [smem:[%s4]]
  %s6 = scalar_lea.smem %s0, 3
  %s7 = sld [smem:[%s6]]
  %s8 = scalar_lea.smem %s0, 4
  %s9 = sld [smem:[%s8]]
  %s10 = scalar_lea.smem %s0, 5
  %s11 = sld [smem:[%s10]]
  %s12 = scalar_lea.smem %s0, 6
  %s13 = sld [smem:[%s12]]
  %s14 = scalar_lea.smem %s0, 7
  %s15 = sld [smem:[%s14]]
  %s16 = scalar_lea.smem %s0, 8
  %s17 = sld [smem:[%s16]]
  %s18 = scalar_lea.smem %s0, 9
  %s19 = sld [smem:[%s18]]
  %s20 = scalar_lea.smem %s0, 10
  %s21 = sld [smem:[%s20]]
  %s22 = scalar_lea.smem %s0, 11
  %s23 = sld [smem:[%s22]]
  %s24 = scalar_lea.smem %s0, 12
  %s25 = sld [smem:[%s24]]
  %s26 = scalar_lea.smem %s0, 13
  %s27 = sld [smem:[%s26]]
  %s28 = scalar_lea.smem %s0, 14
  %s29 = sld [smem:[%s28]]
  %s30 = scalar_lea.smem %s0, 15
  %s31 = sld [smem:[%s30]]
  %s32 = scalar_lea.smem %s0, 16
  %s33 = sld [smem:[%s32]]
  %s34 = scalar_lea.smem %s0, 17
  %s35 = sld [smem:[%s34]]
  %s36 = scalar_lea.smem %s0, 18
  %s37 = sld [smem:[%s36]]
  %s38 = scalar_lea.smem %s0, 19
  %s39 = sld [smem:[%s38]]
  %s40 = scalar_lea.smem %s0, 20
  %s41 = sld [smem:[%s40]]
  %s42 = scalar_lea.smem %s0, 21
  %s43 = sld [smem:[%s42]]
  %s44 = scalar_lea.smem %s0, 22
  %s45 = sld [smem:[%s44]]
  %s46 = scalar_lea.smem %s0, 23
  %s47 = sld [smem:[%s46]]
  %s48 = scalar_lea.smem %s0, 24
  %s49 = sld [smem:[%s48]]
  %s50 = scalar_lea.smem %s0, 25
  %s51 = sld [smem:[%s50]]
  %s52 = scalar_lea.smem %s0, 26
  %s53 = sld [smem:[%s52]]
  %s54 = scalar_lea.smem %s0, 27
  %s55 = sld [smem:[%s54]]
  %s56 = scalar_lea.smem %s0, 28
  %s57 = sld [smem:[%s56]]
  %s58 = scalar_lea.smem %s0, 29
  %s59 = sld [smem:[%s58]]
  %s60 = scalar_lea.smem %s0, 30
  %s61 = sld [smem:[%s60]]
  %s62 = scalar_lea.smem %s0, 31
  %s63 = sld [smem:[%s62]]
  %s64 = scalar_lea.smem %s0, 32
  %s65 = sld [smem:[%s64]]
  %s66 = scalar_lea.smem %s0, 33
  %s67 = sld [smem:[%s66]]
  %s68 = scalar_lea.smem %s0, 34
  %s69 = sld [smem:[%s68]]
  %s70 = scalar_lea.smem %s0, 35
  %s71 = sld [smem:[%s70]]
  %s72 = sld [smem:[#allocation0]]
  $region150: #{trtg_cls_forward.1} parent=0
    _
  %s74 = ssub.s32 1, %s72
  %s75 = scalar_select 0, %s74, %s72
  // Predicated region
  $region2: #{trtg_cls_forward.1} parent=0 // pred_check
    _
  $region3: #{trtg_cls_forward.1} parent=0 // pred_check_branch
    %77 = sbr.rel (0) target = $region5
  $region4: #{trtg_cls_forward.1} parent=0 // pred_region
    _
  $region5: #{trtg_cls_forward.1} parent=0 // pred_fallthru
    _
  // Predicated region
  $region6: #{trtg_cls_forward.1} parent=0 // pred_check
    _
  $region7: #{trtg_cls_forward.1} parent=0 // pred_check_branch
    %79 = sbr.rel (0) target = $region9
  $region8: #{trtg_cls_forward.1} parent=0 // pred_region
    _
  $region9: #{trtg_cls_forward.1} parent=0 // pred_fallthru
    _
  // Predicated region
  $region10: #{trtg_cls_forward.1} parent=0 // pred_check
    _
  $region11: #{trtg_cls_forward.1} parent=0 // pred_check_branch
    %81 = sbr.rel (0) target = $region13
  $region12: #{trtg_cls_forward.1} parent=0 // pred_region
    _
  $region13: #{trtg_cls_forward.1} parent=0 // pred_fallthru
    _
  // Predicated region
  $region14: #{trtg_cls_forward.1} parent=0 // pred_check
    _
  $region15: #{trtg_cls_forward.1} parent=0 // pred_check_branch
    %83 = sbr.rel (0) target = $region17
  $region16: #{trtg_cls_forward.1} parent=0 // pred_region
    _
  $region17: #{trtg_cls_forward.1} parent=0 // pred_fallthru
    _
  // Predicated region
  $region18: #{trtg_cls_forward.1} parent=0 // pred_check
    _
  $region19: #{trtg_cls_forward.1} parent=0 // pred_check_branch
    %85 = sbr.rel (0) target = $region21
  $region20: #{trtg_cls_forward.1} parent=0 // pred_region
    _
  $region21: #{trtg_cls_forward.1} parent=0 // pred_fallthru
    _
  // Predicated region
  $region22: #{trtg_cls_forward.1} parent=0 // pred_check
    _
  $region23: #{trtg_cls_forward.1} parent=0 // pred_check_branch
    %87 = sbr.rel (0) target = $region25
  $region24: #{trtg_cls_forward.1} parent=0 // pred_region
    _
  $region25: #{trtg_cls_forward.1} parent=0 // pred_fallthru
    _
  // Predicated region
  $region26: #{trtg_cls_forward.1} parent=0 // pred_check
    _
  $region27: #{trtg_cls_forward.1} parent=0 // pred_check_branch
    %89 = sbr.rel (0) target = $region29
  $region28: #{trtg_cls_forward.1} parent=0 // pred_region
    _
  $region29: #{trtg_cls_forward.1} parent=0 // pred_fallthru
    _
  // Predicated region
  $region30: #{trtg_cls_forward.1} parent=0 // pred_check
    _
  $region31: #{trtg_cls_forward.1} parent=0 // pred_check_branch
    %91 = sbr.rel (0) target = $region33
  $region32: #{trtg_cls_forward.1} parent=0 // pred_region
    _
  $region33: #{trtg_cls_forward.1} parent=0 // pred_fallthru
    _
  // Predicated region
  $region34: #{trtg_cls_forward.1} parent=0 // pred_check
    _
  $region35: #{trtg_cls_forward.1} parent=0 // pred_check_branch
    %93 = sbr.rel (0) target = $region37
  $region36: #{trtg_cls_forward.1} parent=0 // pred_region
    _
  $region37: #{trtg_cls_forward.1} parent=0 // pred_fallthru
    _
  // Predicated region
  $region38: #{trtg_cls_forward.1} parent=0 // pred_check
    _
  $region39: #{trtg_cls_forward.1} parent=0 // pred_check_branch
    %95 = sbr.rel (0) target = $region41
  $region40: #{trtg_cls_forward.1} parent=0 // pred_region
    _
  $region41: #{trtg_cls_forward.1} parent=0 // pred_fallthru
    _
  // Predicated region
  $region42: #{trtg_cls_forward.1} parent=0 // pred_check
    _
  $region43: #{trtg_cls_forward.1} parent=0 // pred_check_branch
    %97 = sbr.rel (0) target = $region45
  $region44: #{trtg_cls_forward.1} parent=0 // pred_region
    _
  $region45: #{trtg_cls_forward.1} parent=0 // pred_fallthru
    _
  // Predicated region
  $region46: #{trtg_cls_forward.1} parent=0 // pred_check
    _
  $region47: #{trtg_cls_forward.1} parent=0 // pred_check_branch
    %99 = sbr.rel (0) target = $region49
  $region48: #{trtg_cls_forward.1} parent=0 // pred_region
    _
  $region49: #{trtg_cls_forward.1} parent=0 // pred_fallthru
    _
  // Predicated region
  $region50: #{trtg_cls_forward.1} parent=0 // pred_check
    _
  $region51: #{trtg_cls_forward.1} parent=0 // pred_check_branch
    %101 = sbr.rel (0) target = $region53
  $region52: #{trtg_cls_forward.1} parent=0 // pred_region
    _
  $region53: #{trtg_cls_forward.1} parent=0 // pred_fallthru
    _
  // Predicated region
  $region54: #{trtg_cls_forward.1} parent=0 // pred_check
    _
  $region55: #{trtg_cls_forward.1} parent=0 // pred_check_branch
    %103 = sbr.rel (0) target = $region57
  $region56: #{trtg_cls_forward.1} parent=0 // pred_region
    _
  $region57: #{trtg_cls_forward.1} parent=0 // pred_fallthru
    _
  // Predicated region
  $region58: #{trtg_cls_forward.1} parent=0 // pred_check
    _
  $region59: #{trtg_cls_forward.1} parent=0 // pred_check_branch
    %105 = sbr.rel (0) target = $region61
  $region60: #{trtg_cls_forward.1} parent=0 // pred_region
    _
  $region61: #{trtg_cls_forward.1} parent=0 // pred_fallthru
    _
  // Predicated region
  $region62: #{trtg_cls_forward.1} parent=0 // pred_check
    _
  $region63: #{trtg_cls_forward.1} parent=0 // pred_check_branch
    %107 = sbr.rel (0) target = $region65
  $region64: #{trtg_cls_forward.1} parent=0 // pred_region
    _
  $region65: #{trtg_cls_forward.1} parent=0 // pred_fallthru
    _
  // Predicated region
  $region66: #{trtg_cls_forward.1} parent=0 // pred_check
    _
  $region67: #{trtg_cls_forward.1} parent=0 // pred_check_branch
    %109 = sbr.rel (0) target = $region69
  $region68: #{trtg_cls_forward.1} parent=0 // pred_region
    _
  $region69: #{trtg_cls_forward.1} parent=0 // pred_fallthru
    _
  // Predicated region
  $region70: #{trtg_cls_forward.1} parent=0 // pred_check
    _
  $region71: #{trtg_cls_forward.1} parent=0 // pred_check_branch
    %111 = sbr.rel (0) target = $region73
  $region72: #{trtg_cls_forward.1} parent=0 // pred_region
    _
  $region73: #{trtg_cls_forward.1} parent=0 // pred_fallthru
    _
  // Predicated region
  $region74: #{trtg_cls_forward.1} parent=0 // pred_check
    _
  $region75: #{trtg_cls_forward.1} parent=0 // pred_check_branch
    %113 = sbr.rel (0) target = $region77
  $region76: #{trtg_cls_forward.1} parent=0 // pred_region
    _
  $region77: #{trtg_cls_forward.1} parent=0 // pred_fallthru
    _
  // Predicated region
  $region78: #{trtg_cls_forward.1} parent=0 // pred_check
    _
  $region79: #{trtg_cls_forward.1} parent=0 // pred_check_branch
    %115 = sbr.rel (0) target = $region81
  $region80: #{trtg_cls_forward.1} parent=0 // pred_region
    _
  $region81: #{trtg_cls_forward.1} parent=0 // pred_fallthru
    _
  // Predicated region
  $region82: #{trtg_cls_forward.1} parent=0 // pred_check
    _
  $region83: #{trtg_cls_forward.1} parent=0 // pred_check_branch
    %117 = sbr.rel (0) target = $region85
  $region84: #{trtg_cls_forward.1} parent=0 // pred_region
    _
  $region85: #{trtg_cls_forward.1} parent=0 // pred_fallthru
    _
  // Predicated region
  $region86: #{trtg_cls_forward.1} parent=0 // pred_check
    _
  $region87: #{trtg_cls_forward.1} parent=0 // pred_check_branch
    %119 = sbr.rel (0) target = $region89
  $region88: #{trtg_cls_forward.1} parent=0 // pred_region
    _
  $region89: #{trtg_cls_forward.1} parent=0 // pred_fallthru
    _
  // Predicated region
  $region90: #{trtg_cls_forward.1} parent=0 // pred_check
    _
  $region91: #{trtg_cls_forward.1} parent=0 // pred_check_branch
    %121 = sbr.rel (0) target = $region93
  $region92: #{trtg_cls_forward.1} parent=0 // pred_region
    _
  $region93: #{trtg_cls_forward.1} parent=0 // pred_fallthru
    _
  // Predicated region
  $region94: #{trtg_cls_forward.1} parent=0 // pred_check
    _
  $region95: #{trtg_cls_forward.1} parent=0 // pred_check_branch
    %123 = sbr.rel (0) target = $region97
  $region96: #{trtg_cls_forward.1} parent=0 // pred_region
    _
  $region97: #{trtg_cls_forward.1} parent=0 // pred_fallthru
    _
  // Predicated region
  $region98: #{trtg_cls_forward.1} parent=0 // pred_check
    _
  $region99: #{trtg_cls_forward.1} parent=0 // pred_check_branch
    %125 = sbr.rel (0) target = $region101
  $region100: #{trtg_cls_forward.1} parent=0 // pred_region
    _
  $region101: #{trtg_cls_forward.1} parent=0 // pred_fallthru
    _
  // Predicated region
  $region102: #{trtg_cls_forward.1} parent=0 // pred_check
    _
  $region103: #{trtg_cls_forward.1} parent=0 // pred_check_branch
    %127 = sbr.rel (0) target = $region105
  $region104: #{trtg_cls_forward.1} parent=0 // pred_region
    _
  $region105: #{trtg_cls_forward.1} parent=0 // pred_fallthru
    _
  // Predicated region
  $region106: #{trtg_cls_forward.1} parent=0 // pred_check
    _
  $region107: #{trtg_cls_forward.1} parent=0 // pred_check_branch
    %129 = sbr.rel (0) target = $region109
  $region108: #{trtg_cls_forward.1} parent=0 // pred_region
    _
  $region109: #{trtg_cls_forward.1} parent=0 // pred_fallthru
    _
  // Predicated region
  $region110: #{trtg_cls_forward.1} parent=0 // pred_check
    _
  $region111: #{trtg_cls_forward.1} parent=0 // pred_check_branch
    %131 = sbr.rel (0) target = $region113
  $region112: #{trtg_cls_forward.1} parent=0 // pred_region
    _
  $region113: #{trtg_cls_forward.1} parent=0 // pred_fallthru
    _
  // Predicated region
  $region114: #{trtg_cls_forward.1} parent=0 // pred_check
    _
  $region115: #{trtg_cls_forward.1} parent=0 // pred_check_branch
    %133 = sbr.rel (0) target = $region117
  $region116: #{trtg_cls_forward.1} parent=0 // pred_region
    _
  $region117: #{trtg_cls_forward.1} parent=0 // pred_fallthru
    _
  // Predicated region
  $region118: #{trtg_cls_forward.1} parent=0 // pred_check
    _
  $region119: #{trtg_cls_forward.1} parent=0 // pred_check_branch
    %135 = sbr.rel (0) target = $region121
  $region120: #{trtg_cls_forward.1} parent=0 // pred_region
    _
  $region121: #{trtg_cls_forward.1} parent=0 // pred_fallthru
    _
  // Predicated region
  $region122: #{trtg_cls_forward.1} parent=0 // pred_check
    _
  $region123: #{trtg_cls_forward.1} parent=0 // pred_check_branch
    %137 = sbr.rel (0) target = $region125
  $region124: #{trtg_cls_forward.1} parent=0 // pred_region
    _
  $region125: #{trtg_cls_forward.1} parent=0 // pred_fallthru
    _
  // Predicated region
  $region126: #{trtg_cls_forward.1} parent=0 // pred_check
    _
  $region127: #{trtg_cls_forward.1} parent=0 // pred_check_branch
    %139 = sbr.rel (0) target = $region129
  $region128: #{trtg_cls_forward.1} parent=0 // pred_region
    _
  $region129: #{trtg_cls_forward.1} parent=0 // pred_fallthru
    _
  // Predicated region
  $region130: #{trtg_cls_forward.1} parent=0 // pred_check
    _
  $region131: #{trtg_cls_forward.1} parent=0 // pred_check_branch
    %141 = sbr.rel (0) target = $region133
  $region132: #{trtg_cls_forward.1} parent=0 // pred_region
    _
  $region133: #{trtg_cls_forward.1} parent=0 // pred_fallthru
    _
  // Predicated region
  $region134: #{trtg_cls_forward.1} parent=0 // pred_check
    _
  $region135: #{trtg_cls_forward.1} parent=0 // pred_check_branch
    %143 = sbr.rel (0) target = $region137
  $region136: #{trtg_cls_forward.1} parent=0 // pred_region
    _
  $region137: #{trtg_cls_forward.1} parent=0 // pred_fallthru
    _
  // Predicated region
  $region138: #{trtg_cls_forward.1} parent=0 // pred_check
    _
  $region139: #{trtg_cls_forward.1} parent=0 // pred_check_branch
    %145 = sbr.rel (0) target = $region141
  $region140: #{trtg_cls_forward.1} parent=0 // pred_region
    _
  $region141: #{trtg_cls_forward.1} parent=0 // pred_fallthru
    _
  %v146 = vld [vmem:[%s1] sm:$0xf]
  %v147 = vld [vmem:[%s3] sm:$0xf]
  %v148 = vld [vmem:[%s5] sm:$0xf]
  %v149 = vld [vmem:[%s7] sm:$0xf]
  %v150 = vld [vmem:[%s9] sm:$0xff]
  %v151 = vld [vmem:[%s9 + $0x8] sm:$0xff]
  %v152 = vld [vmem:[%s11] sm:$0x1]
  %v154 = vlaneseq
  %v155 = vshrl.u32 %v154, 7
  %v156 = vsub.s32 0, %v155
  %v157 = vrot.slane %v152, %v156
  %vm159 = vcmask 130048
  %v161 = vsel %vm159, %v146, 0
  %163 = vmatprep.subr.mxu0 0.0
  %164 = vmatpush1.msra.mxu0 %v150
  %165 = vmatprep.subr.mxu0 0.0
  %166 = vmatpush1.msra.mxu0 %v151
  %167 = vmatprep.subr.mxu0 0.0
  %168 = vmatpush1.msra.mxu0 0.0
  %169 = vmatprep.subr.mxu0 0.0
  %170 = vmatpush1.msra.mxu0 0.0
  %171 = vmatprep.subr.mxu0 0.0
  %172 = vmatpush1.msra.mxu0 0.0
  %173 = vmatprep.subr.mxu0 0.0
  %174 = vmatpush1.msra.mxu0 0.0
  %175 = vmatprep.subr.mxu0 0.0
  %176 = vmatpush1.msra.mxu0 0.0
  %177 = vmatprep.subr.mxu0 0.0
  %178 = vmatpush1.msra.mxu0 0.0
  %179 = vmatprep.subr.mxu0 0.0
  %180 = vmatpush1.msra.mxu0 0.0
  %181 = vmatprep.subr.mxu0 0.0
  %182 = vmatpush1.msra.mxu0 0.0
  %183 = vmatprep.subr.mxu0 0.0
  %184 = vmatpush1.msra.mxu0 0.0
  %185 = vmatprep.subr.mxu0 0.0
  %186 = vmatpush1.msra.mxu0 0.0
  %187 = vmatprep.subr.mxu0 0.0
  %188 = vmatpush1.msra.mxu0 0.0
  %189 = vmatprep.subr.mxu0 0.0
  %190 = vmatpush1.msra.mxu0 0.0
  %191 = vmatprep.subr.mxu0 0.0
  %192 = vmatpush1.msra.mxu0 0.0
  %193 = vmatprep.subr.mxu0 0.0
  %194 = vmatpush1.msra.mxu0 0.0
  %195 = vmatprep.subr.mxu0 0.0
  %196 = vmatpush1.msra.mxu0 0.0
  %197 = vmatprep.subr.mxu0 0.0
  %198 = vmatpush1.msra.mxu0 0.0
  %199 = vmatprep.subr.mxu0 0.0
  %200 = vmatpush1.msra.mxu0 0.0
  %201 = vmatprep.subr.mxu0 0.0
  %202 = vmatpush1.msra.mxu0 0.0
  %203 = vmatprep.subr.mxu0 0.0
  %204 = vmatpush1.msra.mxu0 0.0
  %205 = vmatprep.subr.mxu0 0.0
  %206 = vmatpush1.msra.mxu0 0.0
  %207 = vmatprep.subr.mxu0 0.0
  %208 = vmatpush1.msra.mxu0 0.0
  %209 = vmatprep.subr.mxu0 0.0
  %210 = vmatpush1.msra.mxu0 0.0
  %211 = vmatprep.subr.mxu0 0.0
  %212 = vmatpush1.msra.mxu0 0.0
  %213 = vmatprep.subr.mxu0 0.0
  %214 = vmatpush1.msra.mxu0 0.0
  %215 = vmatprep.subr.mxu0 0.0
  %216 = vmatpush1.msra.mxu0 0.0
  %217 = vmatprep.subr.mxu0 0.0
  %218 = vmatpush1.msra.mxu0 0.0
  %219 = vmatprep.subr.mxu0 0.0
  %220 = vmatpush1.msra.mxu0 0.0
  %221 = vmatprep.subr.mxu0 0.0
  %222 = vmatpush1.msra.mxu0 0.0
  %223 = vmatprep.subr.mxu0 0.0
  %224 = vmatpush1.msra.mxu0 0.0
  %225 = vmatprep.subr.mxu0 0.0
  %226 = vmatpush1.msra.mxu0 0.0
  %227 = vmatprep.mubr.f32.mxu0 0.0
  %228 = vmatmul.mubr.f32.gmra.mrb[0].mxu0 %v161
  %v229 = vpop.f32.mrb[0].mxu0
  %v230 = vadd.f32 %v157, %v229
  %v231 = vpop.f32.mrb[0].mxu0
  %232 = vdwg.mxu0
  %v233 = vtanh.pop %v230
  %v234 = vld [vmem:[%s25] sm:$0xff]
  %v235 = vld [vmem:[%s25 + $0x8] sm:$0xff]
  %v236 = vld [vmem:[%s25 + $0x10] sm:$0xff]
  %v237 = vld [vmem:[%s25 + $0x18] sm:$0xff]
  %v238 = vld [vmem:[%s25 + $0x20] sm:$0xff]
  %v239 = vld [vmem:[%s25 + $0x28] sm:$0xff]
  %v240 = vld [vmem:[%s25 + $0x30] sm:$0xff]
  %v241 = vld [vmem:[%s25 + $0x38] sm:$0xff]
  %v242 = vld [vmem:[%s25 + $0x40] sm:$0xff]
  %v243 = vld [vmem:[%s25 + $0x48] sm:$0xff]
  %v244 = vld [vmem:[%s25 + $0x50] sm:$0xff]
  %v245 = vld [vmem:[%s25 + $0x58] sm:$0xff]
  %v246 = vld [vmem:[%s25 + $0x60] sm:$0xff]
  %v247 = vld [vmem:[%s25 + $0x68] sm:$0xff]
  %v248 = vld [vmem:[%s25 + $0x70] sm:$0xff]
  %v249 = vld [vmem:[%s25 + $0x78] sm:$0xff]
  %v250 = vld [vmem:[%s27] sm:$0x1]
  %v252 = vlaneseq
  %v253 = vshrl.u32 %v252, 7
  %v254 = vsub.s32 0, %v253
  %v255 = vrot.slane %v250, %v254
  %257 = vmatprep.subr.mxu0 0.0
  %258 = vmatpush1.msra.mxu0 %v234
  %259 = vmatprep.subr.mxu0 0.0
  %260 = vmatpush1.msra.mxu0 %v235
  %261 = vmatprep.subr.mxu0 0.0
  %262 = vmatpush1.msra.mxu0 %v236
  %263 = vmatprep.subr.mxu0 0.0
  %264 = vmatpush1.msra.mxu0 %v237
  %265 = vmatprep.subr.mxu0 0.0
  %266 = vmatpush1.msra.mxu0 %v238
  %267 = vmatprep.subr.mxu0 0.0
  %268 = vmatpush1.msra.mxu0 %v239
  %269 = vmatprep.subr.mxu0 0.0
  %270 = vmatpush1.msra.mxu0 %v240
  %271 = vmatprep.subr.mxu0 0.0
  %272 = vmatpush1.msra.mxu0 %v241
  %273 = vmatprep.subr.mxu0 0.0
  %274 = vmatpush1.msra.mxu0 %v242
  %275 = vmatprep.subr.mxu0 0.0
  %276 = vmatpush1.msra.mxu0 %v243
  %277 = vmatprep.subr.mxu0 0.0
  %278 = vmatpush1.msra.mxu0 %v244
  %279 = vmatprep.subr.mxu0 0.0
  %280 = vmatpush1.msra.mxu0 %v245
  %281 = vmatprep.subr.mxu0 0.0
  %282 = vmatpush1.msra.mxu0 %v246
  %283 = vmatprep.subr.mxu0 0.0
  %284 = vmatpush1.msra.mxu0 %v247
  %285 = vmatprep.subr.mxu0 0.0
  %286 = vmatpush1.msra.mxu0 %v248
  %287 = vmatprep.subr.mxu0 0.0
  %288 = vmatpush1.msra.mxu0 %v249
  %289 = vmatprep.subr.mxu0 0.0
  %290 = vmatpush1.msra.mxu0 0.0
  %291 = vmatprep.subr.mxu0 0.0
  %292 = vmatpush1.msra.mxu0 0.0
  %293 = vmatprep.subr.mxu0 0.0
  %294 = vmatpush1.msra.mxu0 0.0
  %295 = vmatprep.subr.mxu0 0.0
  %296 = vmatpush1.msra.mxu0 0.0
  %297 = vmatprep.subr.mxu0 0.0
  %298 = vmatpush1.msra.mxu0 0.0
  %299 = vmatprep.subr.mxu0 0.0
  %300 = vmatpush1.msra.mxu0 0.0
  %301 = vmatprep.subr.mxu0 0.0
  %302 = vmatpush1.msra.mxu0 0.0
  %303 = vmatprep.subr.mxu0 0.0
  %304 = vmatpush1.msra.mxu0 0.0
  %305 = vmatprep.subr.mxu0 0.0
  %306 = vmatpush1.msra.mxu0 0.0
  %307 = vmatprep.subr.mxu0 0.0
  %308 = vmatpush1.msra.mxu0 0.0
  %309 = vmatprep.subr.mxu0 0.0
  %310 = vmatpush1.msra.mxu0 0.0
  %311 = vmatprep.subr.mxu0 0.0
  %312 = vmatpush1.msra.mxu0 0.0
  %313 = vmatprep.subr.mxu0 0.0
  %314 = vmatpush1.msra.mxu0 0.0
  %315 = vmatprep.subr.mxu0 0.0
  %316 = vmatpush1.msra.mxu0 0.0
  %317 = vmatprep.subr.mxu0 0.0
  %318 = vmatpush1.msra.mxu0 0.0
  %319 = vmatprep.subr.mxu0 0.0
  %320 = vmatpush1.msra.mxu0 0.0
  %321 = vmatprep.mubr.f32.mxu0 0.0
  %322 = vmatmul.mubr.f32.gmra.mrb[0].mxu0 %v233
  %v323 = vpop.f32.mrb[0].mxu0
  %v324 = vadd.f32 %v255, %v323
  %v325 = vpop.f32.mrb[0].mxu0
  %326 = vdwg.mxu0
  %v327 = vtanh.pop %v324
  %v328 = vld [vmem:[%s29] sm:$0xff]
  %v329 = vld [vmem:[%s29 + $0x8] sm:$0xff]
  %v330 = vld [vmem:[%s29 + $0x10] sm:$0xff]
  %v331 = vld [vmem:[%s29 + $0x18] sm:$0xff]
  %v332 = vld [vmem:[%s29 + $0x20] sm:$0xff]
  %v333 = vld [vmem:[%s29 + $0x28] sm:$0xff]
  %v334 = vld [vmem:[%s29 + $0x30] sm:$0xff]
  %v335 = vld [vmem:[%s29 + $0x38] sm:$0xff]
  %v336 = vld [vmem:[%s29 + $0x40] sm:$0xff]
  %v337 = vld [vmem:[%s29 + $0x48] sm:$0xff]
  %v338 = vld [vmem:[%s29 + $0x50] sm:$0xff]
  %v339 = vld [vmem:[%s29 + $0x58] sm:$0xff]
  %v340 = vld [vmem:[%s29 + $0x60] sm:$0xff]
  %v341 = vld [vmem:[%s29 + $0x68] sm:$0xff]
  %v342 = vld [vmem:[%s29 + $0x70] sm:$0xff]
  %v343 = vld [vmem:[%s29 + $0x78] sm:$0xff]
  %344 = vmatprep.subr.mxu0 0.0
  %345 = vmatpush1.msra.mxu0 %v328
  %346 = vmatprep.subr.mxu0 0.0
  %347 = vmatpush1.msra.mxu0 %v329
  %348 = vmatprep.subr.mxu0 0.0
  %349 = vmatpush1.msra.mxu0 %v330
  %350 = vmatprep.subr.mxu0 0.0
  %351 = vmatpush1.msra.mxu0 %v331
  %352 = vmatprep.subr.mxu0 0.0
  %353 = vmatpush1.msra.mxu0 %v332
  %354 = vmatprep.subr.mxu0 0.0
  %355 = vmatpush1.msra.mxu0 %v333
  %356 = vmatprep.subr.mxu0 0.0
  %357 = vmatpush1.msra.mxu0 %v334
  %358 = vmatprep.subr.mxu0 0.0
  %359 = vmatpush1.msra.mxu0 %v335
  %360 = vmatprep.subr.mxu0 0.0
  %361 = vmatpush1.msra.mxu0 %v336
  %362 = vmatprep.subr.mxu0 0.0
  %363 = vmatpush1.msra.mxu0 %v337
  %364 = vmatprep.subr.mxu0 0.0
  %365 = vmatpush1.msra.mxu0 %v338
  %366 = vmatprep.subr.mxu0 0.0
  %367 = vmatpush1.msra.mxu0 %v339
  %368 = vmatprep.subr.mxu0 0.0
  %369 = vmatpush1.msra.mxu0 %v340
  %370 = vmatprep.subr.mxu0 0.0
  %371 = vmatpush1.msra.mxu0 %v341
  %372 = vmatprep.subr.mxu0 0.0
  %373 = vmatpush1.msra.mxu0 %v342
  %374 = vmatprep.subr.mxu0 0.0
  %375 = vmatpush1.msra.mxu0 %v343
  %376 = vmatprep.subr.mxu0 0.0
  %377 = vmatpush1.msra.mxu0 0.0
  %378 = vmatprep.subr.mxu0 0.0
  %379 = vmatpush1.msra.mxu0 0.0
  %380 = vmatprep.subr.mxu0 0.0
  %381 = vmatpush1.msra.mxu0 0.0
  %382 = vmatprep.subr.mxu0 0.0
  %383 = vmatpush1.msra.mxu0 0.0
  %384 = vmatprep.subr.mxu0 0.0
  %385 = vmatpush1.msra.mxu0 0.0
  %386 = vmatprep.subr.mxu0 0.0
  %387 = vmatpush1.msra.mxu0 0.0
  %388 = vmatprep.subr.mxu0 0.0
  %389 = vmatpush1.msra.mxu0 0.0
  %390 = vmatprep.subr.mxu0 0.0
  %391 = vmatpush1.msra.mxu0 0.0
  %392 = vmatprep.subr.mxu0 0.0
  %393 = vmatpush1.msra.mxu0 0.0
  %394 = vmatprep.subr.mxu0 0.0
  %395 = vmatpush1.msra.mxu0 0.0
  %396 = vmatprep.subr.mxu0 0.0
  %397 = vmatpush1.msra.mxu0 0.0
  %398 = vmatprep.subr.mxu0 0.0
  %399 = vmatpush1.msra.mxu0 0.0
  %400 = vmatprep.subr.mxu0 0.0
  %401 = vmatpush1.msra.mxu0 0.0
  %402 = vmatprep.subr.mxu0 0.0
  %403 = vmatpush1.msra.mxu0 0.0
  %404 = vmatprep.subr.mxu0 0.0
  %405 = vmatpush1.msra.mxu0 0.0
  %406 = vmatprep.subr.mxu0 0.0
  %407 = vmatpush1.msra.mxu0 0.0
  %408 = vmatprep.mubr.f32.mxu0 0.0
  %409 = vmatmul.mubr.f32.gmra.mrb[0].mxu0 %v327
  %v410 = vpop.f32.mrb[0].mxu0
  %v411 = vadd.f32 0.0, %v410
  %v412 = vpop.f32.mrb[0].mxu0
  %413 = vdwg.mxu0
  %v414 = vxor.u32 %v411, 2147483648
  %v415 = vmul.f32 %v414, 1.442695
  %v416 = vpow.pop %v415
  %v417 = vadd.f32 %v416, 1.0
  %v418 = vrcp.pop %v417
  %v419 = vmul.f32 1.0, %v418
  %v420 = vld [vmem:[%s31] sm:$0xff]
  %v421 = vld [vmem:[%s33] sm:$0x1]
  %v423 = vlaneseq
  %v424 = vshrl.u32 %v423, 7
  %v425 = vsub.s32 0, %v424
  %v426 = vrot.slane %v421, %v425
  %vm428 = vcmask 64512
  %v430 = vsel %vm428, %v419, 0
  %432 = vmatprep.subr.mxu0 0.0
  %433 = vmatpush1.msra.mxu0 %v420
  %434 = vmatprep.subr.mxu0 0.0
  %435 = vmatpush1.msra.mxu0 0.0
  %436 = vmatprep.subr.mxu0 0.0
  %437 = vmatpush1.msra.mxu0 0.0
  %438 = vmatprep.subr.mxu0 0.0
  %439 = vmatpush1.msra.mxu0 0.0
  %440 = vmatprep.subr.mxu0 0.0
  %441 = vmatpush1.msra.mxu0 0.0
  %442 = vmatprep.subr.mxu0 0.0
  %443 = vmatpush1.msra.mxu0 0.0
  %444 = vmatprep.subr.mxu0 0.0
  %445 = vmatpush1.msra.mxu0 0.0
  %446 = vmatprep.subr.mxu0 0.0
  %447 = vmatpush1.msra.mxu0 0.0
  %448 = vmatprep.subr.mxu0 0.0
  %449 = vmatpush1.msra.mxu0 0.0
  %450 = vmatprep.subr.mxu0 0.0
  %451 = vmatpush1.msra.mxu0 0.0
  %452 = vmatprep.subr.mxu0 0.0
  %453 = vmatpush1.msra.mxu0 0.0
  %454 = vmatprep.subr.mxu0 0.0
  %455 = vmatpush1.msra.mxu0 0.0
  %456 = vmatprep.subr.mxu0 0.0
  %457 = vmatpush1.msra.mxu0 0.0
  %458 = vmatprep.subr.mxu0 0.0
  %459 = vmatpush1.msra.mxu0 0.0
  %460 = vmatprep.subr.mxu0 0.0
  %461 = vmatpush1.msra.mxu0 0.0
  %462 = vmatprep.subr.mxu0 0.0
  %463 = vmatpush1.msra.mxu0 0.0
  %464 = vmatprep.subr.mxu0 0.0
  %465 = vmatpush1.msra.mxu0 0.0
  %466 = vmatprep.subr.mxu0 0.0
  %467 = vmatpush1.msra.mxu0 0.0
  %468 = vmatprep.subr.mxu0 0.0
  %469 = vmatpush1.msra.mxu0 0.0
  %470 = vmatprep.subr.mxu0 0.0
  %471 = vmatpush1.msra.mxu0 0.0
  %472 = vmatprep.subr.mxu0 0.0
  %473 = vmatpush1.msra.mxu0 0.0
  %474 = vmatprep.subr.mxu0 0.0
  %475 = vmatpush1.msra.mxu0 0.0
  %476 = vmatprep.subr.mxu0 0.0
  %477 = vmatpush1.msra.mxu0 0.0
  %478 = vmatprep.subr.mxu0 0.0
  %479 = vmatpush1.msra.mxu0 0.0
  %480 = vmatprep.subr.mxu0 0.0
  %481 = vmatpush1.msra.mxu0 0.0
  %482 = vmatprep.subr.mxu0 0.0
  %483 = vmatpush1.msra.mxu0 0.0
  %484 = vmatprep.subr.mxu0 0.0
  %485 = vmatpush1.msra.mxu0 0.0
  %486 = vmatprep.subr.mxu0 0.0
  %487 = vmatpush1.msra.mxu0 0.0
  %488 = vmatprep.subr.mxu0 0.0
  %489 = vmatpush1.msra.mxu0 0.0
  %490 = vmatprep.subr.mxu0 0.0
  %491 = vmatpush1.msra.mxu0 0.0
  %492 = vmatprep.subr.mxu0 0.0
  %493 = vmatpush1.msra.mxu0 0.0
  %494 = vmatprep.subr.mxu0 0.0
  %495 = vmatpush1.msra.mxu0 0.0
  %496 = vmatprep.mubr.f32.mxu0 0.0
  %497 = vmatmul.mubr.f32.gmra.mrb[0].mxu0 %v430
  %v498 = vpop.f32.mrb[0].mxu0
  %v499 = vadd.f32 %v426, %v498
  %v500 = vpop.f32.mrb[0].mxu0
  %501 = vdwg.mxu0
  %s502 = scalar_lea.vmem %s25, 128
  %v503 = vld [vmem:[%s502] sm:$0xff]
  %v504 = vld [vmem:[%s502 + $0x8] sm:$0xff]
  %v505 = vld [vmem:[%s502 + $0x10] sm:$0xff]
  %v506 = vld [vmem:[%s502 + $0x18] sm:$0xff]
  %v507 = vld [vmem:[%s502 + $0x20] sm:$0xff]
  %v508 = vld [vmem:[%s502 + $0x28] sm:$0xff]
  %v509 = vld [vmem:[%s502 + $0x30] sm:$0xff]
  %v510 = vld [vmem:[%s502 + $0x38] sm:$0xff]
  %v511 = vld [vmem:[%s502 + $0x40] sm:$0xff]
  %v512 = vld [vmem:[%s502 + $0x48] sm:$0xff]
  %v513 = vld [vmem:[%s502 + $0x50] sm:$0xff]
  %v514 = vld [vmem:[%s502 + $0x58] sm:$0xff]
  %v515 = vld [vmem:[%s502 + $0x60] sm:$0xff]
  %v516 = vld [vmem:[%s502 + $0x68] sm:$0xff]
  %v517 = vld [vmem:[%s502 + $0x70] sm:$0xff]
  %v518 = vld [vmem:[%s502 + $0x78] sm:$0xff]
  %s519 = scalar_lea.vmem %s27, 1
  %v520 = vld [vmem:[%s519] sm:$0x1]
  %v522 = vlaneseq
  %v523 = vshrl.u32 %v522, 7
  %v524 = vsub.s32 0, %v523
  %v525 = vrot.slane %v520, %v524
  %527 = vmatprep.subr.mxu0 0.0
  %528 = vmatpush1.msra.mxu0 %v503
  %529 = vmatprep.subr.mxu0 0.0
  %530 = vmatpush1.msra.mxu0 %v504
  %531 = vmatprep.subr.mxu0 0.0
  %532 = vmatpush1.msra.mxu0 %v505
  %533 = vmatprep.subr.mxu0 0.0
  %534 = vmatpush1.msra.mxu0 %v506
  %535 = vmatprep.subr.mxu0 0.0
  %536 = vmatpush1.msra.mxu0 %v507
  %537 = vmatprep.subr.mxu0 0.0
  %538 = vmatpush1.msra.mxu0 %v508
  %539 = vmatprep.subr.mxu0 0.0
  %540 = vmatpush1.msra.mxu0 %v509
  %541 = vmatprep.subr.mxu0 0.0
  %542 = vmatpush1.msra.mxu0 %v510
  %543 = vmatprep.subr.mxu0 0.0
  %544 = vmatpush1.msra.mxu0 %v511
  %545 = vmatprep.subr.mxu0 0.0
  %546 = vmatpush1.msra.mxu0 %v512
  %547 = vmatprep.subr.mxu0 0.0
  %548 = vmatpush1.msra.mxu0 %v513
  %549 = vmatprep.subr.mxu0 0.0
  %550 = vmatpush1.msra.mxu0 %v514
  %551 = vmatprep.subr.mxu0 0.0
  %552 = vmatpush1.msra.mxu0 %v515
  %553 = vmatprep.subr.mxu0 0.0
  %554 = vmatpush1.msra.mxu0 %v516
  %555 = vmatprep.subr.mxu0 0.0
  %556 = vmatpush1.msra.mxu0 %v517
  %557 = vmatprep.subr.mxu0 0.0
  %558 = vmatpush1.msra.mxu0 %v518
  %559 = vmatprep.subr.mxu0 0.0
  %560 = vmatpush1.msra.mxu0 0.0
  %561 = vmatprep.subr.mxu0 0.0
  %562 = vmatpush1.msra.mxu0 0.0
  %563 = vmatprep.subr.mxu0 0.0
  %564 = vmatpush1.msra.mxu0 0.0
  %565 = vmatprep.subr.mxu0 0.0
  %566 = vmatpush1.msra.mxu0 0.0
  %567 = vmatprep.subr.mxu0 0.0
  %568 = vmatpush1.msra.mxu0 0.0
  %569 = vmatprep.subr.mxu0 0.0
  %570 = vmatpush1.msra.mxu0 0.0
  %571 = vmatprep.subr.mxu0 0.0
  %572 = vmatpush1.msra.mxu0 0.0
  %573 = vmatprep.subr.mxu0 0.0
  %574 = vmatpush1.msra.mxu0 0.0
  %575 = vmatprep.subr.mxu0 0.0
  %576 = vmatpush1.msra.mxu0 0.0
  %577 = vmatprep.subr.mxu0 0.0
  %578 = vmatpush1.msra.mxu0 0.0
  %579 = vmatprep.subr.mxu0 0.0
  %580 = vmatpush1.msra.mxu0 0.0
  %581 = vmatprep.subr.mxu0 0.0
  %582 = vmatpush1.msra.mxu0 0.0
  %583 = vmatprep.subr.mxu0 0.0
  %584 = vmatpush1.msra.mxu0 0.0
  %585 = vmatprep.subr.mxu0 0.0
  %586 = vmatpush1.msra.mxu0 0.0
  %587 = vmatprep.subr.mxu0 0.0
  %588 = vmatpush1.msra.mxu0 0.0
  %589 = vmatprep.subr.mxu0 0.0
  %590 = vmatpush1.msra.mxu0 0.0
  %591 = vmatprep.mubr.f32.mxu0 0.0
  %592 = vmatmul.mubr.f32.gmra.mrb[0].mxu0 %v327
  %v593 = vpop.f32.mrb[0].mxu0
  %v594 = vadd.f32 %v525, %v593
  %v595 = vpop.f32.mrb[0].mxu0
  %596 = vdwg.mxu0
  %v597 = vtanh.pop %v594
  %s598 = scalar_lea.vmem %s29, 128
  %v599 = vld [vmem:[%s598] sm:$0xff]
  %v600 = vld [vmem:[%s598 + $0x8] sm:$0xff]
  %v601 = vld [vmem:[%s598 + $0x10] sm:$0xff]
  %v602 = vld [vmem:[%s598 + $0x18] sm:$0xff]
  %v603 = vld [vmem:[%s598 + $0x20] sm:$0xff]
  %v604 = vld [vmem:[%s598 + $0x28] sm:$0xff]
  %v605 = vld [vmem:[%s598 + $0x30] sm:$0xff]
  %v606 = vld [vmem:[%s598 + $0x38] sm:$0xff]
  %v607 = vld [vmem:[%s598 + $0x40] sm:$0xff]
  %v608 = vld [vmem:[%s598 + $0x48] sm:$0xff]
  %v609 = vld [vmem:[%s598 + $0x50] sm:$0xff]
  %v610 = vld [vmem:[%s598 + $0x58] sm:$0xff]
  %v611 = vld [vmem:[%s598 + $0x60] sm:$0xff]
  %v612 = vld [vmem:[%s598 + $0x68] sm:$0xff]
  %v613 = vld [vmem:[%s598 + $0x70] sm:$0xff]
  %v614 = vld [vmem:[%s598 + $0x78] sm:$0xff]
  %615 = vmatprep.subr.mxu0 0.0
  %616 = vmatpush1.msra.mxu0 %v599
  %617 = vmatprep.subr.mxu0 0.0
  %618 = vmatpush1.msra.mxu0 %v600
  %619 = vmatprep.subr.mxu0 0.0
  %620 = vmatpush1.msra.mxu0 %v601
  %621 = vmatprep.subr.mxu0 0.0
  %622 = vmatpush1.msra.mxu0 %v602
  %623 = vmatprep.subr.mxu0 0.0
  %624 = vmatpush1.msra.mxu0 %v603
  %625 = vmatprep.subr.mxu0 0.0
  %626 = vmatpush1.msra.mxu0 %v604
  %627 = vmatprep.subr.mxu0 0.0
  %628 = vmatpush1.msra.mxu0 %v605
  %629 = vmatprep.subr.mxu0 0.0
  %630 = vmatpush1.msra.mxu0 %v606
  %631 = vmatprep.subr.mxu0 0.0
  %632 = vmatpush1.msra.mxu0 %v607
  %633 = vmatprep.subr.mxu0 0.0
  %634 = vmatpush1.msra.mxu0 %v608
  %635 = vmatprep.subr.mxu0 0.0
  %636 = vmatpush1.msra.mxu0 %v609
  %637 = vmatprep.subr.mxu0 0.0
  %638 = vmatpush1.msra.mxu0 %v610
  %639 = vmatprep.subr.mxu0 0.0
  %640 = vmatpush1.msra.mxu0 %v611
  %641 = vmatprep.subr.mxu0 0.0
  %642 = vmatpush1.msra.mxu0 %v612
  %643 = vmatprep.subr.mxu0 0.0
  %644 = vmatpush1.msra.mxu0 %v613
  %645 = vmatprep.subr.mxu0 0.0
  %646 = vmatpush1.msra.mxu0 %v614
  %647 = vmatprep.subr.mxu0 0.0
  %648 = vmatpush1.msra.mxu0 0.0
  %649 = vmatprep.subr.mxu0 0.0
  %650 = vmatpush1.msra.mxu0 0.0
  %651 = vmatprep.subr.mxu0 0.0
  %652 = vmatpush1.msra.mxu0 0.0
  %653 = vmatprep.subr.mxu0 0.0
  %654 = vmatpush1.msra.mxu0 0.0
  %655 = vmatprep.subr.mxu0 0.0
  %656 = vmatpush1.msra.mxu0 0.0
  %657 = vmatprep.subr.mxu0 0.0
  %658 = vmatpush1.msra.mxu0 0.0
  %659 = vmatprep.subr.mxu0 0.0
  %660 = vmatpush1.msra.mxu0 0.0
  %661 = vmatprep.subr.mxu0 0.0
  %662 = vmatpush1.msra.mxu0 0.0
  %663 = vmatprep.subr.mxu0 0.0
  %664 = vmatpush1.msra.mxu0 0.0
  %665 = vmatprep.subr.mxu0 0.0
  %666 = vmatpush1.msra.mxu0 0.0
  %667 = vmatprep.subr.mxu0 0.0
  %668 = vmatpush1.msra.mxu0 0.0
  %669 = vmatprep.subr.mxu0 0.0
  %670 = vmatpush1.msra.mxu0 0.0
  %671 = vmatprep.subr.mxu0 0.0
  %672 = vmatpush1.msra.mxu0 0.0
  %673 = vmatprep.subr.mxu0 0.0
  %674 = vmatpush1.msra.mxu0 0.0
  %675 = vmatprep.subr.mxu0 0.0
  %676 = vmatpush1.msra.mxu0 0.0
  %677 = vmatprep.subr.mxu0 0.0
  %678 = vmatpush1.msra.mxu0 0.0
  %679 = vmatprep.mubr.f32.mxu0 0.0
  %680 = vmatmul.mubr.f32.gmra.mrb[0].mxu0 %v597
  %v681 = vpop.f32.mrb[0].mxu0
  %v682 = vadd.f32 0.0, %v681
  %v683 = vpop.f32.mrb[0].mxu0
  %684 = vdwg.mxu0
  %v685 = vxor.u32 %v682, 2147483648
  %v686 = vmul.f32 %v685, 1.442695
  %v687 = vpow.pop %v686
  %v688 = vadd.f32 %v687, 1.0
  %v689 = vrcp.pop %v688
  %v690 = vmul.f32 1.0, %v689
  %s691 = scalar_lea.vmem %s31, 8
  %v692 = vld [vmem:[%s691] sm:$0xff]
  %s693 = scalar_lea.vmem %s33, 1
  %v694 = vld [vmem:[%s693] sm:$0x1]
  %v696 = vlaneseq
  %v697 = vshrl.u32 %v696, 7
  %v698 = vsub.s32 0, %v697
  %v699 = vrot.slane %v694, %v698
  %v702 = vsel %vm428, %v690, 0
  %704 = vmatprep.subr.mxu0 0.0
  %705 = vmatpush1.msra.mxu0 %v692
  %706 = vmatprep.subr.mxu0 0.0
  %707 = vmatpush1.msra.mxu0 0.0
  %708 = vmatprep.subr.mxu0 0.0
  %709 = vmatpush1.msra.mxu0 0.0
  %710 = vmatprep.subr.mxu0 0.0
  %711 = vmatpush1.msra.mxu0 0.0
  %712 = vmatprep.subr.mxu0 0.0
  %713 = vmatpush1.msra.mxu0 0.0
  %714 = vmatprep.subr.mxu0 0.0
  %715 = vmatpush1.msra.mxu0 0.0
  %716 = vmatprep.subr.mxu0 0.0
  %717 = vmatpush1.msra.mxu0 0.0
  %718 = vmatprep.subr.mxu0 0.0
  %719 = vmatpush1.msra.mxu0 0.0
  %720 = vmatprep.subr.mxu0 0.0
  %721 = vmatpush1.msra.mxu0 0.0
  %722 = vmatprep.subr.mxu0 0.0
  %723 = vmatpush1.msra.mxu0 0.0
  %724 = vmatprep.subr.mxu0 0.0
  %725 = vmatpush1.msra.mxu0 0.0
  %726 = vmatprep.subr.mxu0 0.0
  %727 = vmatpush1.msra.mxu0 0.0
  %728 = vmatprep.subr.mxu0 0.0
  %729 = vmatpush1.msra.mxu0 0.0
  %730 = vmatprep.subr.mxu0 0.0
  %731 = vmatpush1.msra.mxu0 0.0
  %732 = vmatprep.subr.mxu0 0.0
  %733 = vmatpush1.msra.mxu0 0.0
  %734 = vmatprep.subr.mxu0 0.0
  %735 = vmatpush1.msra.mxu0 0.0
  %736 = vmatprep.subr.mxu0 0.0
  %737 = vmatpush1.msra.mxu0 0.0
  %738 = vmatprep.subr.mxu0 0.0
  %739 = vmatpush1.msra.mxu0 0.0
  %740 = vmatprep.subr.mxu0 0.0
  %741 = vmatpush1.msra.mxu0 0.0
  %742 = vmatprep.subr.mxu0 0.0
  %743 = vmatpush1.msra.mxu0 0.0
  %744 = vmatprep.subr.mxu0 0.0
  %745 = vmatpush1.msra.mxu0 0.0
  %746 = vmatprep.subr.mxu0 0.0
  %747 = vmatpush1.msra.mxu0 0.0
  %748 = vmatprep.subr.mxu0 0.0
  %749 = vmatpush1.msra.mxu0 0.0
  %750 = vmatprep.subr.mxu0 0.0
  %751 = vmatpush1.msra.mxu0 0.0
  %752 = vmatprep.subr.mxu0 0.0
  %753 = vmatpush1.msra.mxu0 0.0
  %754 = vmatprep.subr.mxu0 0.0
  %755 = vmatpush1.msra.mxu0 0.0
  %756 = vmatprep.subr.mxu0 0.0
  %757 = vmatpush1.msra.mxu0 0.0
  %758 = vmatprep.subr.mxu0 0.0
  %759 = vmatpush1.msra.mxu0 0.0
  %760 = vmatprep.subr.mxu0 0.0
  %761 = vmatpush1.msra.mxu0 0.0
  %762 = vmatprep.subr.mxu0 0.0
  %763 = vmatpush1.msra.mxu0 0.0
  %764 = vmatprep.subr.mxu0 0.0
  %765 = vmatpush1.msra.mxu0 0.0
  %766 = vmatprep.subr.mxu0 0.0
  %767 = vmatpush1.msra.mxu0 0.0
  %768 = vmatprep.mubr.f32.mxu0 0.0
  %769 = vmatmul.mubr.f32.gmra.mrb[0].mxu0 %v702
  %v770 = vpop.f32.mrb[0].mxu0
  %v771 = vadd.f32 %v699, %v770
  %v772 = vpop.f32.mrb[0].mxu0
  %773 = vdwg.mxu0
  %s774 = scalar_lea.vmem %s25, 256
  %v775 = vld [vmem:[%s774] sm:$0xff]
  %v776 = vld [vmem:[%s774 + $0x8] sm:$0xff]
  %v777 = vld [vmem:[%s774 + $0x10] sm:$0xff]
  %v778 = vld [vmem:[%s774 + $0x18] sm:$0xff]
  %v779 = vld [vmem:[%s774 + $0x20] sm:$0xff]
  %v780 = vld [vmem:[%s774 + $0x28] sm:$0xff]
  %v781 = vld [vmem:[%s774 + $0x30] sm:$0xff]
  %v782 = vld [vmem:[%s774 + $0x38] sm:$0xff]
  %v783 = vld [vmem:[%s774 + $0x40] sm:$0xff]
  %v784 = vld [vmem:[%s774 + $0x48] sm:$0xff]
  %v785 = vld [vmem:[%s774 + $0x50] sm:$0xff]
  %v786 = vld [vmem:[%s774 + $0x58] sm:$0xff]
  %v787 = vld [vmem:[%s774 + $0x60] sm:$0xff]
  %v788 = vld [vmem:[%s774 + $0x68] sm:$0xff]
  %v789 = vld [vmem:[%s774 + $0x70] sm:$0xff]
  %v790 = vld [vmem:[%s774 + $0x78] sm:$0xff]
  %s791 = scalar_lea.vmem %s27, 2
  %v792 = vld [vmem:[%s791] sm:$0x1]
  %v794 = vlaneseq
  %v795 = vshrl.u32 %v794, 7
  %v796 = vsub.s32 0, %v795
  %v797 = vrot.slane %v792, %v796
  %799 = vmatprep.subr.mxu0 0.0
  %800 = vmatpush1.msra.mxu0 %v775
  %801 = vmatprep.subr.mxu0 0.0
  %802 = vmatpush1.msra.mxu0 %v776
  %803 = vmatprep.subr.mxu0 0.0
  %804 = vmatpush1.msra.mxu0 %v777
  %805 = vmatprep.subr.mxu0 0.0
  %806 = vmatpush1.msra.mxu0 %v778
  %807 = vmatprep.subr.mxu0 0.0
  %808 = vmatpush1.msra.mxu0 %v779
  %809 = vmatprep.subr.mxu0 0.0
  %810 = vmatpush1.msra.mxu0 %v780
  %811 = vmatprep.subr.mxu0 0.0
  %812 = vmatpush1.msra.mxu0 %v781
  %813 = vmatprep.subr.mxu0 0.0
  %814 = vmatpush1.msra.mxu0 %v782
  %815 = vmatprep.subr.mxu0 0.0
  %816 = vmatpush1.msra.mxu0 %v783
  %817 = vmatprep.subr.mxu0 0.0
  %818 = vmatpush1.msra.mxu0 %v784
  %819 = vmatprep.subr.mxu0 0.0
  %820 = vmatpush1.msra.mxu0 %v785
  %821 = vmatprep.subr.mxu0 0.0
  %822 = vmatpush1.msra.mxu0 %v786
  %823 = vmatprep.subr.mxu0 0.0
  %824 = vmatpush1.msra.mxu0 %v787
  %825 = vmatprep.subr.mxu0 0.0
  %826 = vmatpush1.msra.mxu0 %v788
  %827 = vmatprep.subr.mxu0 0.0
  %828 = vmatpush1.msra.mxu0 %v789
  %829 = vmatprep.subr.mxu0 0.0
  %830 = vmatpush1.msra.mxu0 %v790
  %831 = vmatprep.subr.mxu0 0.0
  %832 = vmatpush1.msra.mxu0 0.0
  %833 = vmatprep.subr.mxu0 0.0
  %834 = vmatpush1.msra.mxu0 0.0
  %835 = vmatprep.subr.mxu0 0.0
  %836 = vmatpush1.msra.mxu0 0.0
  %837 = vmatprep.subr.mxu0 0.0
  %838 = vmatpush1.msra.mxu0 0.0
  %839 = vmatprep.subr.mxu0 0.0
  %840 = vmatpush1.msra.mxu0 0.0
  %841 = vmatprep.subr.mxu0 0.0
  %842 = vmatpush1.msra.mxu0 0.0
  %843 = vmatprep.subr.mxu0 0.0
  %844 = vmatpush1.msra.mxu0 0.0
  %845 = vmatprep.subr.mxu0 0.0
  %846 = vmatpush1.msra.mxu0 0.0
  %847 = vmatprep.subr.mxu0 0.0
  %848 = vmatpush1.msra.mxu0 0.0
  %849 = vmatprep.subr.mxu0 0.0
  %850 = vmatpush1.msra.mxu0 0.0
  %851 = vmatprep.subr.mxu0 0.0
  %852 = vmatpush1.msra.mxu0 0.0
  %853 = vmatprep.subr.mxu0 0.0
  %854 = vmatpush1.msra.mxu0 0.0
  %855 = vmatprep.subr.mxu0 0.0
  %856 = vmatpush1.msra.mxu0 0.0
  %857 = vmatprep.subr.mxu0 0.0
  %858 = vmatpush1.msra.mxu0 0.0
  %859 = vmatprep.subr.mxu0 0.0
  %860 = vmatpush1.msra.mxu0 0.0
  %861 = vmatprep.subr.mxu0 0.0
  %862 = vmatpush1.msra.mxu0 0.0
  %863 = vmatprep.mubr.f32.mxu0 0.0
  %864 = vmatmul.mubr.f32.gmra.mrb[0].mxu0 %v597
  %v865 = vpop.f32.mrb[0].mxu0
  %v866 = vadd.f32 %v797, %v865
  %v867 = vpop.f32.mrb[0].mxu0
  %868 = vdwg.mxu0
  %v869 = vtanh.pop %v866
  %s870 = scalar_lea.vmem %s29, 256
  %v871 = vld [vmem:[%s870] sm:$0xff]
  %v872 = vld [vmem:[%s870 + $0x8] sm:$0xff]
  %v873 = vld [vmem:[%s870 + $0x10] sm:$0xff]
  %v874 = vld [vmem:[%s870 + $0x18] sm:$0xff]
  %v875 = vld [vmem:[%s870 + $0x20] sm:$0xff]
  %v876 = vld [vmem:[%s870 + $0x28] sm:$0xff]
  %v877 = vld [vmem:[%s870 + $0x30] sm:$0xff]
  %v878 = vld [vmem:[%s870 + $0x38] sm:$0xff]
  %v879 = vld [vmem:[%s870 + $0x40] sm:$0xff]
  %v880 = vld [vmem:[%s870 + $0x48] sm:$0xff]
  %v881 = vld [vmem:[%s870 + $0x50] sm:$0xff]
  %v882 = vld [vmem:[%s870 + $0x58] sm:$0xff]
  %v883 = vld [vmem:[%s870 + $0x60] sm:$0xff]
  %v884 = vld [vmem:[%s870 + $0x68] sm:$0xff]
  %v885 = vld [vmem:[%s870 + $0x70] sm:$0xff]
  %v886 = vld [vmem:[%s870 + $0x78] sm:$0xff]
  %887 = vmatprep.subr.mxu0 0.0
  %888 = vmatpush1.msra.mxu0 %v871
  %889 = vmatprep.subr.mxu0 0.0
  %890 = vmatpush1.msra.mxu0 %v872
  %891 = vmatprep.subr.mxu0 0.0
  %892 = vmatpush1.msra.mxu0 %v873
  %893 = vmatprep.subr.mxu0 0.0
  %894 = vmatpush1.msra.mxu0 %v874
  %895 = vmatprep.subr.mxu0 0.0
  %896 = vmatpush1.msra.mxu0 %v875
  %897 = vmatprep.subr.mxu0 0.0
  %898 = vmatpush1.msra.mxu0 %v876
  %899 = vmatprep.subr.mxu0 0.0
  %900 = vmatpush1.msra.mxu0 %v877
  %901 = vmatprep.subr.mxu0 0.0
  %902 = vmatpush1.msra.mxu0 %v878
  %903 = vmatprep.subr.mxu0 0.0
  %904 = vmatpush1.msra.mxu0 %v879
  %905 = vmatprep.subr.mxu0 0.0
  %906 = vmatpush1.msra.mxu0 %v880
  %907 = vmatprep.subr.mxu0 0.0
  %908 = vmatpush1.msra.mxu0 %v881
  %909 = vmatprep.subr.mxu0 0.0
  %910 = vmatpush1.msra.mxu0 %v882
  %911 = vmatprep.subr.mxu0 0.0
  %912 = vmatpush1.msra.mxu0 %v883
  %913 = vmatprep.subr.mxu0 0.0
  %914 = vmatpush1.msra.mxu0 %v884
  %915 = vmatprep.subr.mxu0 0.0
  %916 = vmatpush1.msra.mxu0 %v885
  %917 = vmatprep.subr.mxu0 0.0
  %918 = vmatpush1.msra.mxu0 %v886
  %919 = vmatprep.subr.mxu0 0.0
  %920 = vmatpush1.msra.mxu0 0.0
  %921 = vmatprep.subr.mxu0 0.0
  %922 = vmatpush1.msra.mxu0 0.0
  %923 = vmatprep.subr.mxu0 0.0
  %924 = vmatpush1.msra.mxu0 0.0
  %925 = vmatprep.subr.mxu0 0.0
  %926 = vmatpush1.msra.mxu0 0.0
  %927 = vmatprep.subr.mxu0 0.0
  %928 = vmatpush1.msra.mxu0 0.0
  %929 = vmatprep.subr.mxu0 0.0
  %930 = vmatpush1.msra.mxu0 0.0
  %931 = vmatprep.subr.mxu0 0.0
  %932 = vmatpush1.msra.mxu0 0.0
  %933 = vmatprep.subr.mxu0 0.0
  %934 = vmatpush1.msra.mxu0 0.0
  %935 = vmatprep.subr.mxu0 0.0
  %936 = vmatpush1.msra.mxu0 0.0
  %937 = vmatprep.subr.mxu0 0.0
  %938 = vmatpush1.msra.mxu0 0.0
  %939 = vmatprep.subr.mxu0 0.0
  %940 = vmatpush1.msra.mxu0 0.0
  %941 = vmatprep.subr.mxu0 0.0
  %942 = vmatpush1.msra.mxu0 0.0
  %943 = vmatprep.subr.mxu0 0.0
  %944 = vmatpush1.msra.mxu0 0.0
  %945 = vmatprep.subr.mxu0 0.0
  %946 = vmatpush1.msra.mxu0 0.0
  %947 = vmatprep.subr.mxu0 0.0
  %948 = vmatpush1.msra.mxu0 0.0
  %949 = vmatprep.subr.mxu0 0.0
  %950 = vmatpush1.msra.mxu0 0.0
  %951 = vmatprep.mubr.f32.mxu0 0.0
  %952 = vmatmul.mubr.f32.gmra.mrb[0].mxu0 %v869
  %v953 = vpop.f32.mrb[0].mxu0
  %v954 = vadd.f32 0.0, %v953
  %v955 = vpop.f32.mrb[0].mxu0
  %956 = vdwg.mxu0
  %v957 = vxor.u32 %v954, 2147483648
  %v958 = vmul.f32 %v957, 1.442695
  %v959 = vpow.pop %v958
  %v960 = vadd.f32 %v959, 1.0
  %v961 = vrcp.pop %v960
  %v962 = vmul.f32 1.0, %v961
  %s963 = scalar_lea.vmem %s31, 16
  %v964 = vld [vmem:[%s963] sm:$0xff]
  %s965 = scalar_lea.vmem %s33, 2
  %v966 = vld [vmem:[%s965] sm:$0x1]
  %v968 = vlaneseq
  %v969 = vshrl.u32 %v968, 7
  %v970 = vsub.s32 0, %v969
  %v971 = vrot.slane %v966, %v970
  %v974 = vsel %vm428, %v962, 0
  %976 = vmatprep.subr.mxu0 0.0
  %977 = vmatpush1.msra.mxu0 %v964
  %978 = vmatprep.subr.mxu0 0.0
  %979 = vmatpush1.msra.mxu0 0.0
  %980 = vmatprep.subr.mxu0 0.0
  %981 = vmatpush1.msra.mxu0 0.0
  %982 = vmatprep.subr.mxu0 0.0
  %983 = vmatpush1.msra.mxu0 0.0
  %984 = vmatprep.subr.mxu0 0.0
  %985 = vmatpush1.msra.mxu0 0.0
  %986 = vmatprep.subr.mxu0 0.0
  %987 = vmatpush1.msra.mxu0 0.0
  %988 = vmatprep.subr.mxu0 0.0
  %989 = vmatpush1.msra.mxu0 0.0
  %990 = vmatprep.subr.mxu0 0.0
  %991 = vmatpush1.msra.mxu0 0.0
  %992 = vmatprep.subr.mxu0 0.0
  %993 = vmatpush1.msra.mxu0 0.0
  %994 = vmatprep.subr.mxu0 0.0
  %995 = vmatpush1.msra.mxu0 0.0
  %996 = vmatprep.subr.mxu0 0.0
  %997 = vmatpush1.msra.mxu0 0.0
  %998 = vmatprep.subr.mxu0 0.0
  %999 = vmatpush1.msra.mxu0 0.0
  %1000 = vmatprep.subr.mxu0 0.0
  %1001 = vmatpush1.msra.mxu0 0.0
  %1002 = vmatprep.subr.mxu0 0.0
  %1003 = vmatpush1.msra.mxu0 0.0
  %1004 = vmatprep.subr.mxu0 0.0
  %1005 = vmatpush1.msra.mxu0 0.0
  %1006 = vmatprep.subr.mxu0 0.0
  %1007 = vmatpush1.msra.mxu0 0.0
  %1008 = vmatprep.subr.mxu0 0.0
  %1009 = vmatpush1.msra.mxu0 0.0
  %1010 = vmatprep.subr.mxu0 0.0
  %1011 = vmatpush1.msra.mxu0 0.0
  %1012 = vmatprep.subr.mxu0 0.0
  %1013 = vmatpush1.msra.mxu0 0.0
  %1014 = vmatprep.subr.mxu0 0.0
  %1015 = vmatpush1.msra.mxu0 0.0
  %1016 = vmatprep.subr.mxu0 0.0
  %1017 = vmatpush1.msra.mxu0 0.0
  %1018 = vmatprep.subr.mxu0 0.0
  %1019 = vmatpush1.msra.mxu0 0.0
  %1020 = vmatprep.subr.mxu0 0.0
  %1021 = vmatpush1.msra.mxu0 0.0
  %1022 = vmatprep.subr.mxu0 0.0
  %1023 = vmatpush1.msra.mxu0 0.0
  %1024 = vmatprep.subr.mxu0 0.0
  %1025 = vmatpush1.msra.mxu0 0.0
  %1026 = vmatprep.subr.mxu0 0.0
  %1027 = vmatpush1.msra.mxu0 0.0
  %1028 = vmatprep.subr.mxu0 0.0
  %1029 = vmatpush1.msra.mxu0 0.0
  %1030 = vmatprep.subr.mxu0 0.0
  %1031 = vmatpush1.msra.mxu0 0.0
  %1032 = vmatprep.subr.mxu0 0.0
  %1033 = vmatpush1.msra.mxu0 0.0
  %1034 = vmatprep.subr.mxu0 0.0
  %1035 = vmatpush1.msra.mxu0 0.0
  %1036 = vmatprep.subr.mxu0 0.0
  %1037 = vmatpush1.msra.mxu0 0.0
  %1038 = vmatprep.subr.mxu0 0.0
  %1039 = vmatpush1.msra.mxu0 0.0
  %1040 = vmatprep.mubr.f32.mxu0 0.0
  %1041 = vmatmul.mubr.f32.gmra.mrb[0].mxu0 %v974
  %v1042 = vpop.f32.mrb[0].mxu0
  %v1043 = vadd.f32 %v971, %v1042
  %v1044 = vpop.f32.mrb[0].mxu0
  %1045 = vdwg.mxu0
  %v1046 = vld [vmem:[%s21] sm:$0xff]
  %v1047 = vld [vmem:[%s21 + $0x8] sm:$0xff]
  %v1048 = vld [vmem:[%s23] sm:$0x1]
  %v1050 = vlaneseq
  %v1051 = vshrl.u32 %v1050, 7
  %v1052 = vsub.s32 0, %v1051
  %v1053 = vrot.slane %v1048, %v1052
  %1055 = vmatprep.subr.mxu0 0.0
  %1056 = vmatpush1.msra.mxu0 %v1046
  %1057 = vmatprep.subr.mxu0 0.0
  %1058 = vmatpush1.msra.mxu0 %v1047
  %1059 = vmatprep.subr.mxu0 0.0
  %1060 = vmatpush1.msra.mxu0 0.0
  %1061 = vmatprep.subr.mxu0 0.0
  %1062 = vmatpush1.msra.mxu0 0.0
  %1063 = vmatprep.subr.mxu0 0.0
  %1064 = vmatpush1.msra.mxu0 0.0
  %1065 = vmatprep.subr.mxu0 0.0
  %1066 = vmatpush1.msra.mxu0 0.0
  %1067 = vmatprep.subr.mxu0 0.0
  %1068 = vmatpush1.msra.mxu0 0.0
  %1069 = vmatprep.subr.mxu0 0.0
  %1070 = vmatpush1.msra.mxu0 0.0
  %1071 = vmatprep.subr.mxu0 0.0
  %1072 = vmatpush1.msra.mxu0 0.0
  %1073 = vmatprep.subr.mxu0 0.0
  %1074 = vmatpush1.msra.mxu0 0.0
  %1075 = vmatprep.subr.mxu0 0.0
  %1076 = vmatpush1.msra.mxu0 0.0
  %1077 = vmatprep.subr.mxu0 0.0
  %1078 = vmatpush1.msra.mxu0 0.0
  %1079 = vmatprep.subr.mxu0 0.0
  %1080 = vmatpush1.msra.mxu0 0.0
  %1081 = vmatprep.subr.mxu0 0.0
  %1082 = vmatpush1.msra.mxu0 0.0
  %1083 = vmatprep.subr.mxu0 0.0
  %1084 = vmatpush1.msra.mxu0 0.0
  %1085 = vmatprep.subr.mxu0 0.0
  %1086 = vmatpush1.msra.mxu0 0.0
  %1087 = vmatprep.subr.mxu0 0.0
  %1088 = vmatpush1.msra.mxu0 0.0
  %1089 = vmatprep.subr.mxu0 0.0
  %1090 = vmatpush1.msra.mxu0 0.0
  %1091 = vmatprep.subr.mxu0 0.0
  %1092 = vmatpush1.msra.mxu0 0.0
  %1093 = vmatprep.subr.mxu0 0.0
  %1094 = vmatpush1.msra.mxu0 0.0
  %1095 = vmatprep.subr.mxu0 0.0
  %1096 = vmatpush1.msra.mxu0 0.0
  %1097 = vmatprep.subr.mxu0 0.0
  %1098 = vmatpush1.msra.mxu0 0.0
  %1099 = vmatprep.subr.mxu0 0.0
  %1100 = vmatpush1.msra.mxu0 0.0
  %1101 = vmatprep.subr.mxu0 0.0
  %1102 = vmatpush1.msra.mxu0 0.0
  %1103 = vmatprep.subr.mxu0 0.0
  %1104 = vmatpush1.msra.mxu0 0.0
  %1105 = vmatprep.subr.mxu0 0.0
  %1106 = vmatpush1.msra.mxu0 0.0
  %1107 = vmatprep.subr.mxu0 0.0
  %1108 = vmatpush1.msra.mxu0 0.0
  %1109 = vmatprep.subr.mxu0 0.0
  %1110 = vmatpush1.msra.mxu0 0.0
  %1111 = vmatprep.subr.mxu0 0.0
  %1112 = vmatpush1.msra.mxu0 0.0
  %1113 = vmatprep.subr.mxu0 0.0
  %1114 = vmatpush1.msra.mxu0 0.0
  %1115 = vmatprep.subr.mxu0 0.0
  %1116 = vmatpush1.msra.mxu0 0.0
  %1117 = vmatprep.subr.mxu0 0.0
  %1118 = vmatpush1.msra.mxu0 0.0
  %1119 = vmatprep.mubr.f32.mxu0 0.0
  %1120 = vmatmul.mubr.f32.gmra.mrb[0].mxu0 %v161
  %v1121 = vpop.f32.mrb[0].mxu0
  %v1122 = vadd.f32 %v1053, %v1121
  %v1123 = vpop.f32.mrb[0].mxu0
  %1124 = vdwg.mxu0
  %v1125 = vld [vmem:[%s35] sm:$0xff]
  %v1126 = vld [vmem:[%s35 + $0x8] sm:$0xff]
  %v1127 = vld [vmem:[%s35 + $0x10] sm:$0xff]
  %v1128 = vld [vmem:[%s35 + $0x18] sm:$0xff]
  %v1129 = vld [vmem:[%s35 + $0x20] sm:$0xff]
  %v1130 = vld [vmem:[%s35 + $0x28] sm:$0xff]
  %v1131 = vld [vmem:[%s35 + $0x30] sm:$0xff]
  %v1132 = vld [vmem:[%s35 + $0x38] sm:$0xff]
  %v1133 = vld [vmem:[%s35 + $0x40] sm:$0xff]
  %v1134 = vld [vmem:[%s35 + $0x48] sm:$0xff]
  %v1135 = vld [vmem:[%s35 + $0x50] sm:$0xff]
  %v1136 = vld [vmem:[%s35 + $0x58] sm:$0xff]
  %v1137 = vld [vmem:[%s35 + $0x60] sm:$0xff]
  %v1138 = vld [vmem:[%s35 + $0x68] sm:$0xff]
  %v1139 = vld [vmem:[%s35 + $0x70] sm:$0xff]
  %v1140 = vld [vmem:[%s35 + $0x78] sm:$0xff]
  %v1141 = vld [vmem:[%s37] sm:$0xff]
  %v1142 = vld [vmem:[%s37 + $0x8] sm:$0xff]
  %v1143 = vld [vmem:[%s37 + $0x10] sm:$0xff]
  %v1144 = vld [vmem:[%s37 + $0x18] sm:$0xff]
  %vm1145 = vcmask 261120
  %v1147 = vsel %vm1145, %v1122, 0
  %1149 = vmatprep.subr.mxu0 0.0
  %1150 = vmatpush1.msra.mxu0 %v1141
  %1151 = vmatprep.subr.mxu0 0.0
  %1152 = vmatpush1.msra.mxu0 %v1142
  %1153 = vmatprep.subr.mxu0 0.0
  %1154 = vmatpush1.msra.mxu0 %v1143
  %1155 = vmatprep.subr.mxu0 0.0
  %1156 = vmatpush1.msra.mxu0 %v1144
  %1157 = vmatprep.subr.mxu0 0.0
  %1158 = vmatpush1.msra.mxu0 0.0
  %1159 = vmatprep.subr.mxu0 0.0
  %1160 = vmatpush1.msra.mxu0 0.0
  %1161 = vmatprep.subr.mxu0 0.0
  %1162 = vmatpush1.msra.mxu0 0.0
  %1163 = vmatprep.subr.mxu0 0.0
  %1164 = vmatpush1.msra.mxu0 0.0
  %1165 = vmatprep.subr.mxu0 0.0
  %1166 = vmatpush1.msra.mxu0 0.0
  %1167 = vmatprep.subr.mxu0 0.0
  %1168 = vmatpush1.msra.mxu0 0.0
  %1169 = vmatprep.subr.mxu0 0.0
  %1170 = vmatpush1.msra.mxu0 0.0
  %1171 = vmatprep.subr.mxu0 0.0
  %1172 = vmatpush1.msra.mxu0 0.0
  %1173 = vmatprep.subr.mxu0 0.0
  %1174 = vmatpush1.msra.mxu0 0.0
  %1175 = vmatprep.subr.mxu0 0.0
  %1176 = vmatpush1.msra.mxu0 0.0
  %1177 = vmatprep.subr.mxu0 0.0
  %1178 = vmatpush1.msra.mxu0 0.0
  %1179 = vmatprep.subr.mxu0 0.0
  %1180 = vmatpush1.msra.mxu0 0.0
  %1181 = vmatprep.subr.mxu0 0.0
  %1182 = vmatpush1.msra.mxu0 0.0
  %1183 = vmatprep.subr.mxu0 0.0
  %1184 = vmatpush1.msra.mxu0 0.0
  %1185 = vmatprep.subr.mxu0 0.0
  %1186 = vmatpush1.msra.mxu0 0.0
  %1187 = vmatprep.subr.mxu0 0.0
  %1188 = vmatpush1.msra.mxu0 0.0
  %1189 = vmatprep.subr.mxu0 0.0
  %1190 = vmatpush1.msra.mxu0 0.0
  %1191 = vmatprep.subr.mxu0 0.0
  %1192 = vmatpush1.msra.mxu0 0.0
  %1193 = vmatprep.subr.mxu0 0.0
  %1194 = vmatpush1.msra.mxu0 0.0
  %1195 = vmatprep.subr.mxu0 0.0
  %1196 = vmatpush1.msra.mxu0 0.0
  %1197 = vmatprep.subr.mxu0 0.0
  %1198 = vmatpush1.msra.mxu0 0.0
  %1199 = vmatprep.subr.mxu0 0.0
  %1200 = vmatpush1.msra.mxu0 0.0
  %1201 = vmatprep.subr.mxu0 0.0
  %1202 = vmatpush1.msra.mxu0 0.0
  %1203 = vmatprep.subr.mxu0 0.0
  %1204 = vmatpush1.msra.mxu0 0.0
  %1205 = vmatprep.subr.mxu0 0.0
  %1206 = vmatpush1.msra.mxu0 0.0
  %1207 = vmatprep.subr.mxu0 0.0
  %1208 = vmatpush1.msra.mxu0 0.0
  %1209 = vmatprep.subr.mxu0 0.0
  %1210 = vmatpush1.msra.mxu0 0.0
  %1211 = vmatprep.subr.mxu0 0.0
  %1212 = vmatpush1.msra.mxu0 0.0
  %1213 = vmatprep.mubr.f32.mxu0 0.0
  %1214 = vmatmul.mubr.f32.gmra.mrb[0].mxu0 %v1147
  %v1215 = vpop.f32.mrb[0].mxu0
  %v1216 = vadd.f32 0.0, %v1215
  %v1217 = vpop.f32.mrb[0].mxu0
  %1218 = vdwg.mxu0
  %1219 = vmatprep.subr.mxu0 0.0
  %1220 = vmatpush1.msra.mxu0 %v1125
  %1221 = vmatprep.subr.mxu0 0.0
  %1222 = vmatpush1.msra.mxu0 %v1126
  %1223 = vmatprep.subr.mxu0 0.0
  %1224 = vmatpush1.msra.mxu0 %v1127
  %1225 = vmatprep.subr.mxu0 0.0
  %1226 = vmatpush1.msra.mxu0 %v1128
  %1227 = vmatprep.subr.mxu0 0.0
  %1228 = vmatpush1.msra.mxu0 %v1129
  %1229 = vmatprep.subr.mxu0 0.0
  %1230 = vmatpush1.msra.mxu0 %v1130
  %1231 = vmatprep.subr.mxu0 0.0
  %1232 = vmatpush1.msra.mxu0 %v1131
  %1233 = vmatprep.subr.mxu0 0.0
  %1234 = vmatpush1.msra.mxu0 %v1132
  %1235 = vmatprep.subr.mxu0 0.0
  %1236 = vmatpush1.msra.mxu0 %v1133
  %1237 = vmatprep.subr.mxu0 0.0
  %1238 = vmatpush1.msra.mxu0 %v1134
  %1239 = vmatprep.subr.mxu0 0.0
  %1240 = vmatpush1.msra.mxu0 %v1135
  %1241 = vmatprep.subr.mxu0 0.0
  %1242 = vmatpush1.msra.mxu0 %v1136
  %1243 = vmatprep.subr.mxu0 0.0
  %1244 = vmatpush1.msra.mxu0 %v1137
  %1245 = vmatprep.subr.mxu0 0.0
  %1246 = vmatpush1.msra.mxu0 %v1138
  %1247 = vmatprep.subr.mxu0 0.0
  %1248 = vmatpush1.msra.mxu0 %v1139
  %1249 = vmatprep.subr.mxu0 0.0
  %1250 = vmatpush1.msra.mxu0 %v1140
  %1251 = vmatprep.subr.mxu0 0.0
  %1252 = vmatpush1.msra.mxu0 0.0
  %1253 = vmatprep.subr.mxu0 0.0
  %1254 = vmatpush1.msra.mxu0 0.0
  %1255 = vmatprep.subr.mxu0 0.0
  %1256 = vmatpush1.msra.mxu0 0.0
  %1257 = vmatprep.subr.mxu0 0.0
  %1258 = vmatpush1.msra.mxu0 0.0
  %1259 = vmatprep.subr.mxu0 0.0
  %1260 = vmatpush1.msra.mxu0 0.0
  %1261 = vmatprep.subr.mxu0 0.0
  %1262 = vmatpush1.msra.mxu0 0.0
  %1263 = vmatprep.subr.mxu0 0.0
  %1264 = vmatpush1.msra.mxu0 0.0
  %1265 = vmatprep.subr.mxu0 0.0
  %1266 = vmatpush1.msra.mxu0 0.0
  %1267 = vmatprep.subr.mxu0 0.0
  %1268 = vmatpush1.msra.mxu0 0.0
  %1269 = vmatprep.subr.mxu0 0.0
  %1270 = vmatpush1.msra.mxu0 0.0
  %1271 = vmatprep.subr.mxu0 0.0
  %1272 = vmatpush1.msra.mxu0 0.0
  %1273 = vmatprep.subr.mxu0 0.0
  %1274 = vmatpush1.msra.mxu0 0.0
  %1275 = vmatprep.subr.mxu0 0.0
  %1276 = vmatpush1.msra.mxu0 0.0
  %1277 = vmatprep.subr.mxu0 0.0
  %1278 = vmatpush1.msra.mxu0 0.0
  %1279 = vmatprep.subr.mxu0 0.0
  %1280 = vmatpush1.msra.mxu0 0.0
  %1281 = vmatprep.subr.mxu0 0.0
  %1282 = vmatpush1.msra.mxu0 0.0
  %1283 = vmatprep.mubr.f32.mxu0 0.0
  %1284 = vmatmul.mubr.f32.gmra.mrb[0].mxu0 %v869
  %v1285 = vpop.f32.mrb[0].mxu0
  %v1286 = vadd.f32 %v1216, %v1285
  %v1287 = vpop.f32.mrb[0].mxu0
  %1288 = vdwg.mxu0
  %v1289 = vld [vmem:[%s39] sm:$0x1]
  %v1291 = vlaneseq
  %v1292 = vshrl.u32 %v1291, 7
  %v1293 = vsub.s32 0, %v1292
  %v1294 = vrot.slane %v1289, %v1293
  %v1296 = vadd.f32 %v1286, %v1294
  %v1297 = vmax.f32 %v1296, 0.0
  %v1298 = vld [vmem:[%s41] sm:$0xff]
  %v1299 = vld [vmem:[%s41 + $0x8] sm:$0xff]
  %v1300 = vld [vmem:[%s41 + $0x10] sm:$0xff]
  %v1301 = vld [vmem:[%s41 + $0x18] sm:$0xff]
  %v1302 = vld [vmem:[%s41 + $0x20] sm:$0xff]
  %v1303 = vld [vmem:[%s41 + $0x28] sm:$0xff]
  %v1304 = vld [vmem:[%s41 + $0x30] sm:$0xff]
  %v1305 = vld [vmem:[%s41 + $0x38] sm:$0xff]
  %v1306 = vld [vmem:[%s41 + $0x40] sm:$0xff]
  %v1307 = vld [vmem:[%s41 + $0x48] sm:$0xff]
  %v1308 = vld [vmem:[%s43] sm:$0x1]
  %v1310 = vlaneseq
  %v1311 = vshrl.u32 %v1310, 7
  %v1312 = vsub.s32 0, %v1311
  %v1313 = vrot.slane %v1308, %v1312
  %vm1315 = vcmask 654336
  %v1317 = vsel %vm1315, %v1297, 0
  %1319 = vmatprep.subr.mxu0 0.0
  %1320 = vmatpush1.msra.mxu0 %v1298
  %1321 = vmatprep.subr.mxu0 0.0
  %1322 = vmatpush1.msra.mxu0 %v1299
  %1323 = vmatprep.subr.mxu0 0.0
  %1324 = vmatpush1.msra.mxu0 %v1300
  %1325 = vmatprep.subr.mxu0 0.0
  %1326 = vmatpush1.msra.mxu0 %v1301
  %1327 = vmatprep.subr.mxu0 0.0
  %1328 = vmatpush1.msra.mxu0 %v1302
  %1329 = vmatprep.subr.mxu0 0.0
  %1330 = vmatpush1.msra.mxu0 %v1303
  %1331 = vmatprep.subr.mxu0 0.0
  %1332 = vmatpush1.msra.mxu0 %v1304
  %1333 = vmatprep.subr.mxu0 0.0
  %1334 = vmatpush1.msra.mxu0 %v1305
  %1335 = vmatprep.subr.mxu0 0.0
  %1336 = vmatpush1.msra.mxu0 %v1306
  %1337 = vmatprep.subr.mxu0 0.0
  %1338 = vmatpush1.msra.mxu0 %v1307
  %1339 = vmatprep.subr.mxu0 0.0
  %1340 = vmatpush1.msra.mxu0 0.0
  %1341 = vmatprep.subr.mxu0 0.0
  %1342 = vmatpush1.msra.mxu0 0.0
  %1343 = vmatprep.subr.mxu0 0.0
  %1344 = vmatpush1.msra.mxu0 0.0
  %1345 = vmatprep.subr.mxu0 0.0
  %1346 = vmatpush1.msra.mxu0 0.0
  %1347 = vmatprep.subr.mxu0 0.0
  %1348 = vmatpush1.msra.mxu0 0.0
  %1349 = vmatprep.subr.mxu0 0.0
  %1350 = vmatpush1.msra.mxu0 0.0
  %1351 = vmatprep.subr.mxu0 0.0
  %1352 = vmatpush1.msra.mxu0 0.0
  %1353 = vmatprep.subr.mxu0 0.0
  %1354 = vmatpush1.msra.mxu0 0.0
  %1355 = vmatprep.subr.mxu0 0.0
  %1356 = vmatpush1.msra.mxu0 0.0
  %1357 = vmatprep.subr.mxu0 0.0
  %1358 = vmatpush1.msra.mxu0 0.0
  %1359 = vmatprep.subr.mxu0 0.0
  %1360 = vmatpush1.msra.mxu0 0.0
  %1361 = vmatprep.subr.mxu0 0.0
  %1362 = vmatpush1.msra.mxu0 0.0
  %1363 = vmatprep.subr.mxu0 0.0
  %1364 = vmatpush1.msra.mxu0 0.0
  %1365 = vmatprep.subr.mxu0 0.0
  %1366 = vmatpush1.msra.mxu0 0.0
  %1367 = vmatprep.subr.mxu0 0.0
  %1368 = vmatpush1.msra.mxu0 0.0
  %1369 = vmatprep.subr.mxu0 0.0
  %1370 = vmatpush1.msra.mxu0 0.0
  %1371 = vmatprep.subr.mxu0 0.0
  %1372 = vmatpush1.msra.mxu0 0.0
  %1373 = vmatprep.subr.mxu0 0.0
  %1374 = vmatpush1.msra.mxu0 0.0
  %1375 = vmatprep.subr.mxu0 0.0
  %1376 = vmatpush1.msra.mxu0 0.0
  %1377 = vmatprep.subr.mxu0 0.0
  %1378 = vmatpush1.msra.mxu0 0.0
  %1379 = vmatprep.subr.mxu0 0.0
  %1380 = vmatpush1.msra.mxu0 0.0
  %1381 = vmatprep.subr.mxu0 0.0
  %1382 = vmatpush1.msra.mxu0 0.0
  %1383 = vmatprep.mubr.f32.mxu0 0.0
  %1384 = vmatmul.mubr.f32.gmra.mrb[0].mxu0 %v1317
  %v1385 = vpop.f32.mrb[0].mxu0
  %v1386 = vadd.f32 %v1313, %v1385
  %v1387 = vpop.f32.mrb[0].mxu0
  %1388 = vdwg.mxu0
  %v1389 = vmax.f32 %v1386, 0.0
  %v1390 = vld [vmem:[%s45] sm:$0xff]
  %v1391 = vld [vmem:[%s45 + $0x8] sm:$0xff]
  %v1392 = vld [vmem:[%s45 + $0x10] sm:$0xff]
  %v1393 = vld [vmem:[%s45 + $0x18] sm:$0xff]
  %v1394 = vld [vmem:[%s45 + $0x20] sm:$0xff]
  %v1395 = vld [vmem:[%s47] sm:$0x1]
  %v1397 = vlaneseq
  %v1398 = vshrl.u32 %v1397, 7
  %v1399 = vsub.s32 0, %v1398
  %v1400 = vrot.slane %v1395, %v1399
  %vm1402 = vcmask 326656
  %v1404 = vsel %vm1402, %v1389, 0
  %1406 = vmatprep.subr.mxu0 0.0
  %1407 = vmatpush1.msra.mxu0 %v1390
  %1408 = vmatprep.subr.mxu0 0.0
  %1409 = vmatpush1.msra.mxu0 %v1391
  %1410 = vmatprep.subr.mxu0 0.0
  %1411 = vmatpush1.msra.mxu0 %v1392
  %1412 = vmatprep.subr.mxu0 0.0
  %1413 = vmatpush1.msra.mxu0 %v1393
  %1414 = vmatprep.subr.mxu0 0.0
  %1415 = vmatpush1.msra.mxu0 %v1394
  %1416 = vmatprep.subr.mxu0 0.0
  %1417 = vmatpush1.msra.mxu0 0.0
  %1418 = vmatprep.subr.mxu0 0.0
  %1419 = vmatpush1.msra.mxu0 0.0
  %1420 = vmatprep.subr.mxu0 0.0
  %1421 = vmatpush1.msra.mxu0 0.0
  %1422 = vmatprep.subr.mxu0 0.0
  %1423 = vmatpush1.msra.mxu0 0.0
  %1424 = vmatprep.subr.mxu0 0.0
  %1425 = vmatpush1.msra.mxu0 0.0
  %1426 = vmatprep.subr.mxu0 0.0
  %1427 = vmatpush1.msra.mxu0 0.0
  %1428 = vmatprep.subr.mxu0 0.0
  %1429 = vmatpush1.msra.mxu0 0.0
  %1430 = vmatprep.subr.mxu0 0.0
  %1431 = vmatpush1.msra.mxu0 0.0
  %1432 = vmatprep.subr.mxu0 0.0
  %1433 = vmatpush1.msra.mxu0 0.0
  %1434 = vmatprep.subr.mxu0 0.0
  %1435 = vmatpush1.msra.mxu0 0.0
  %1436 = vmatprep.subr.mxu0 0.0
  %1437 = vmatpush1.msra.mxu0 0.0
  %1438 = vmatprep.subr.mxu0 0.0
  %1439 = vmatpush1.msra.mxu0 0.0
  %1440 = vmatprep.subr.mxu0 0.0
  %1441 = vmatpush1.msra.mxu0 0.0
  %1442 = vmatprep.subr.mxu0 0.0
  %1443 = vmatpush1.msra.mxu0 0.0
  %1444 = vmatprep.subr.mxu0 0.0
  %1445 = vmatpush1.msra.mxu0 0.0
  %1446 = vmatprep.subr.mxu0 0.0
  %1447 = vmatpush1.msra.mxu0 0.0
  %1448 = vmatprep.subr.mxu0 0.0
  %1449 = vmatpush1.msra.mxu0 0.0
  %1450 = vmatprep.subr.mxu0 0.0
  %1451 = vmatpush1.msra.mxu0 0.0
  %1452 = vmatprep.subr.mxu0 0.0
  %1453 = vmatpush1.msra.mxu0 0.0
  %1454 = vmatprep.subr.mxu0 0.0
  %1455 = vmatpush1.msra.mxu0 0.0
  %1456 = vmatprep.subr.mxu0 0.0
  %1457 = vmatpush1.msra.mxu0 0.0
  %1458 = vmatprep.subr.mxu0 0.0
  %1459 = vmatpush1.msra.mxu0 0.0
  %1460 = vmatprep.subr.mxu0 0.0
  %1461 = vmatpush1.msra.mxu0 0.0
  %1462 = vmatprep.subr.mxu0 0.0
  %1463 = vmatpush1.msra.mxu0 0.0
  %1464 = vmatprep.subr.mxu0 0.0
  %1465 = vmatpush1.msra.mxu0 0.0
  %1466 = vmatprep.subr.mxu0 0.0
  %1467 = vmatpush1.msra.mxu0 0.0
  %1468 = vmatprep.subr.mxu0 0.0
  %1469 = vmatpush1.msra.mxu0 0.0
  %1470 = vmatprep.mubr.f32.mxu0 0.0
  %1471 = vmatmul.mubr.f32.gmra.mrb[0].mxu0 %v1404
  %v1472 = vpop.f32.mrb[0].mxu0
  %v1473 = vadd.f32 %v1400, %v1472
  %v1474 = vpop.f32.mrb[0].mxu0
  %1475 = vdwg.mxu0
  %v1476 = vmax.f32 %v1473, 0.0
  %v1477 = vld [vmem:[%s49] sm:$0xff]
  %v1478 = vld [vmem:[%s49 + $0x8] sm:$0xff]
  %v1479 = vld [vmem:[%s49 + $0x10] sm:$0xf]
  %v1480 = vld [vmem:[%s51] sm:$0x1]
  %v1482 = vlaneseq
  %v1483 = vshrl.u32 %v1482, 7
  %v1484 = vsub.s32 0, %v1483
  %v1485 = vrot.slane %v1480, %v1484
  %vm1487 = vcmask 162816
  %v1489 = vsel %vm1487, %v1476, 0
  %vm1491 = vcmask 1043456
  %v1493 = vsel %vm1491, %v1479, 0
  %1495 = vmatprep.subr.mxu0 0.0
  %1496 = vmatpush1.msra.mxu0 %v1477
  %1497 = vmatprep.subr.mxu0 0.0
  %1498 = vmatpush1.msra.mxu0 %v1478
  %1499 = vmatprep.subr.mxu0 0.0
  %1500 = vmatpush1.msra.mxu0 %v1493
  %1501 = vmatprep.subr.mxu0 0.0
  %1502 = vmatpush1.msra.mxu0 0.0
  %1503 = vmatprep.subr.mxu0 0.0
  %1504 = vmatpush1.msra.mxu0 0.0
  %1505 = vmatprep.subr.mxu0 0.0
  %1506 = vmatpush1.msra.mxu0 0.0
  %1507 = vmatprep.subr.mxu0 0.0
  %1508 = vmatpush1.msra.mxu0 0.0
  %1509 = vmatprep.subr.mxu0 0.0
  %1510 = vmatpush1.msra.mxu0 0.0
  %1511 = vmatprep.subr.mxu0 0.0
  %1512 = vmatpush1.msra.mxu0 0.0
  %1513 = vmatprep.subr.mxu0 0.0
  %1514 = vmatpush1.msra.mxu0 0.0
  %1515 = vmatprep.subr.mxu0 0.0
  %1516 = vmatpush1.msra.mxu0 0.0
  %1517 = vmatprep.subr.mxu0 0.0
  %1518 = vmatpush1.msra.mxu0 0.0
  %1519 = vmatprep.subr.mxu0 0.0
  %1520 = vmatpush1.msra.mxu0 0.0
  %1521 = vmatprep.subr.mxu0 0.0
  %1522 = vmatpush1.msra.mxu0 0.0
  %1523 = vmatprep.subr.mxu0 0.0
  %1524 = vmatpush1.msra.mxu0 0.0
  %1525 = vmatprep.subr.mxu0 0.0
  %1526 = vmatpush1.msra.mxu0 0.0
  %1527 = vmatprep.subr.mxu0 0.0
  %1528 = vmatpush1.msra.mxu0 0.0
  %1529 = vmatprep.subr.mxu0 0.0
  %1530 = vmatpush1.msra.mxu0 0.0
  %1531 = vmatprep.subr.mxu0 0.0
  %1532 = vmatpush1.msra.mxu0 0.0
  %1533 = vmatprep.subr.mxu0 0.0
  %1534 = vmatpush1.msra.mxu0 0.0
  %1535 = vmatprep.subr.mxu0 0.0
  %1536 = vmatpush1.msra.mxu0 0.0
  %1537 = vmatprep.subr.mxu0 0.0
  %1538 = vmatpush1.msra.mxu0 0.0
  %1539 = vmatprep.subr.mxu0 0.0
  %1540 = vmatpush1.msra.mxu0 0.0
  %1541 = vmatprep.subr.mxu0 0.0
  %1542 = vmatpush1.msra.mxu0 0.0
  %1543 = vmatprep.subr.mxu0 0.0
  %1544 = vmatpush1.msra.mxu0 0.0
  %1545 = vmatprep.subr.mxu0 0.0
  %1546 = vmatpush1.msra.mxu0 0.0
  %1547 = vmatprep.subr.mxu0 0.0
  %1548 = vmatpush1.msra.mxu0 0.0
  %1549 = vmatprep.subr.mxu0 0.0
  %1550 = vmatpush1.msra.mxu0 0.0
  %1551 = vmatprep.subr.mxu0 0.0
  %1552 = vmatpush1.msra.mxu0 0.0
  %1553 = vmatprep.subr.mxu0 0.0
  %1554 = vmatpush1.msra.mxu0 0.0
  %1555 = vmatprep.subr.mxu0 0.0
  %1556 = vmatpush1.msra.mxu0 0.0
  %1557 = vmatprep.subr.mxu0 0.0
  %1558 = vmatpush1.msra.mxu0 0.0
  %1559 = vmatprep.mubr.f32.mxu0 0.0
  %1560 = vmatmul.mubr.f32.gmra.mrb[0].mxu0 %v1489
  %v1561 = vpop.f32.mrb[0].mxu0
  %v1562 = vadd.f32 %v1485, %v1561
  %v1563 = vpop.f32.mrb[0].mxu0
  %1564 = vdwg.mxu0
  %v1565 = vld [vmem:[%s13] sm:$0xff]
  %v1566 = vld [vmem:[%s13 + $0x8] sm:$0xff]
  %v1567 = vld [vmem:[%s15] sm:$0x1]
  %v1569 = vlaneseq
  %v1570 = vshrl.u32 %v1569, 7
  %v1571 = vsub.s32 0, %v1570
  %v1572 = vrot.slane %v1567, %v1571
  %1574 = vmatprep.subr.mxu0 0.0
  %1575 = vmatpush1.msra.mxu0 %v1565
  %1576 = vmatprep.subr.mxu0 0.0
  %1577 = vmatpush1.msra.mxu0 %v1566
  %1578 = vmatprep.subr.mxu0 0.0
  %1579 = vmatpush1.msra.mxu0 0.0
  %1580 = vmatprep.subr.mxu0 0.0
  %1581 = vmatpush1.msra.mxu0 0.0
  %1582 = vmatprep.subr.mxu0 0.0
  %1583 = vmatpush1.msra.mxu0 0.0
  %1584 = vmatprep.subr.mxu0 0.0
  %1585 = vmatpush1.msra.mxu0 0.0
  %1586 = vmatprep.subr.mxu0 0.0
  %1587 = vmatpush1.msra.mxu0 0.0
  %1588 = vmatprep.subr.mxu0 0.0
  %1589 = vmatpush1.msra.mxu0 0.0
  %1590 = vmatprep.subr.mxu0 0.0
  %1591 = vmatpush1.msra.mxu0 0.0
  %1592 = vmatprep.subr.mxu0 0.0
  %1593 = vmatpush1.msra.mxu0 0.0
  %1594 = vmatprep.subr.mxu0 0.0
  %1595 = vmatpush1.msra.mxu0 0.0
  %1596 = vmatprep.subr.mxu0 0.0
  %1597 = vmatpush1.msra.mxu0 0.0
  %1598 = vmatprep.subr.mxu0 0.0
  %1599 = vmatpush1.msra.mxu0 0.0
  %1600 = vmatprep.subr.mxu0 0.0
  %1601 = vmatpush1.msra.mxu0 0.0
  %1602 = vmatprep.subr.mxu0 0.0
  %1603 = vmatpush1.msra.mxu0 0.0
  %1604 = vmatprep.subr.mxu0 0.0
  %1605 = vmatpush1.msra.mxu0 0.0
  %1606 = vmatprep.subr.mxu0 0.0
  %1607 = vmatpush1.msra.mxu0 0.0
  %1608 = vmatprep.subr.mxu0 0.0
  %1609 = vmatpush1.msra.mxu0 0.0
  %1610 = vmatprep.subr.mxu0 0.0
  %1611 = vmatpush1.msra.mxu0 0.0
  %1612 = vmatprep.subr.mxu0 0.0
  %1613 = vmatpush1.msra.mxu0 0.0
  %1614 = vmatprep.subr.mxu0 0.0
  %1615 = vmatpush1.msra.mxu0 0.0
  %1616 = vmatprep.subr.mxu0 0.0
  %1617 = vmatpush1.msra.mxu0 0.0
  %1618 = vmatprep.subr.mxu0 0.0
  %1619 = vmatpush1.msra.mxu0 0.0
  %1620 = vmatprep.subr.mxu0 0.0
  %1621 = vmatpush1.msra.mxu0 0.0
  %1622 = vmatprep.subr.mxu0 0.0
  %1623 = vmatpush1.msra.mxu0 0.0
  %1624 = vmatprep.subr.mxu0 0.0
  %1625 = vmatpush1.msra.mxu0 0.0
  %1626 = vmatprep.subr.mxu0 0.0
  %1627 = vmatpush1.msra.mxu0 0.0
  %1628 = vmatprep.subr.mxu0 0.0
  %1629 = vmatpush1.msra.mxu0 0.0
  %1630 = vmatprep.subr.mxu0 0.0
  %1631 = vmatpush1.msra.mxu0 0.0
  %1632 = vmatprep.subr.mxu0 0.0
  %1633 = vmatpush1.msra.mxu0 0.0
  %1634 = vmatprep.subr.mxu0 0.0
  %1635 = vmatpush1.msra.mxu0 0.0
  %1636 = vmatprep.subr.mxu0 0.0
  %1637 = vmatpush1.msra.mxu0 0.0
  %1638 = vmatprep.mubr.f32.mxu0 0.0
  %1639 = vmatmul.mubr.f32.gmra.mrb[0].mxu0 %v161
  %v1640 = vpop.f32.mrb[0].mxu0
  %v1641 = vadd.f32 %v1572, %v1640
  %v1642 = vpop.f32.mrb[0].mxu0
  %1643 = vdwg.mxu0
  %v1644 = vtanh.pop %v1641
  %v1645 = vld [vmem:[%s17] sm:$0xff]
  %v1646 = vld [vmem:[%s17 + $0x8] sm:$0xff]
  %v1647 = vld [vmem:[%s17 + $0x10] sm:$0xff]
  %v1648 = vld [vmem:[%s17 + $0x18] sm:$0xff]
  %v1649 = vld [vmem:[%s17 + $0x20] sm:$0xff]
  %v1650 = vld [vmem:[%s17 + $0x28] sm:$0xff]
  %v1651 = vld [vmem:[%s17 + $0x30] sm:$0xff]
  %v1652 = vld [vmem:[%s17 + $0x38] sm:$0xff]
  %v1653 = vld [vmem:[%s17 + $0x40] sm:$0xff]
  %v1654 = vld [vmem:[%s17 + $0x48] sm:$0xff]
  %v1655 = vld [vmem:[%s17 + $0x50] sm:$0xff]
  %v1656 = vld [vmem:[%s17 + $0x58] sm:$0xff]
  %v1657 = vld [vmem:[%s17 + $0x60] sm:$0xff]
  %v1658 = vld [vmem:[%s17 + $0x68] sm:$0xff]
  %v1659 = vld [vmem:[%s17 + $0x70] sm:$0xff]
  %v1660 = vld [vmem:[%s17 + $0x78] sm:$0xff]
  %v1661 = vld [vmem:[%s19] sm:$0x1]
  %v1663 = vlaneseq
  %v1664 = vshrl.u32 %v1663, 7
  %v1665 = vsub.s32 0, %v1664
  %v1666 = vrot.slane %v1661, %v1665
  %1668 = vmatprep.subr.mxu0 0.0
  %1669 = vmatpush1.msra.mxu0 %v1645
  %1670 = vmatprep.subr.mxu0 0.0
  %1671 = vmatpush1.msra.mxu0 %v1646
  %1672 = vmatprep.subr.mxu0 0.0
  %1673 = vmatpush1.msra.mxu0 %v1647
  %1674 = vmatprep.subr.mxu0 0.0
  %1675 = vmatpush1.msra.mxu0 %v1648
  %1676 = vmatprep.subr.mxu0 0.0
  %1677 = vmatpush1.msra.mxu0 %v1649
  %1678 = vmatprep.subr.mxu0 0.0
  %1679 = vmatpush1.msra.mxu0 %v1650
  %1680 = vmatprep.subr.mxu0 0.0
  %1681 = vmatpush1.msra.mxu0 %v1651
  %1682 = vmatprep.subr.mxu0 0.0
  %1683 = vmatpush1.msra.mxu0 %v1652
  %1684 = vmatprep.subr.mxu0 0.0
  %1685 = vmatpush1.msra.mxu0 %v1653
  %1686 = vmatprep.subr.mxu0 0.0
  %1687 = vmatpush1.msra.mxu0 %v1654
  %1688 = vmatprep.subr.mxu0 0.0
  %1689 = vmatpush1.msra.mxu0 %v1655
  %1690 = vmatprep.subr.mxu0 0.0
  %1691 = vmatpush1.msra.mxu0 %v1656
  %1692 = vmatprep.subr.mxu0 0.0
  %1693 = vmatpush1.msra.mxu0 %v1657
  %1694 = vmatprep.subr.mxu0 0.0
  %1695 = vmatpush1.msra.mxu0 %v1658
  %1696 = vmatprep.subr.mxu0 0.0
  %1697 = vmatpush1.msra.mxu0 %v1659
  %1698 = vmatprep.subr.mxu0 0.0
  %1699 = vmatpush1.msra.mxu0 %v1660
  %1700 = vmatprep.subr.mxu0 0.0
  %1701 = vmatpush1.msra.mxu0 0.0
  %1702 = vmatprep.subr.mxu0 0.0
  %1703 = vmatpush1.msra.mxu0 0.0
  %1704 = vmatprep.subr.mxu0 0.0
  %1705 = vmatpush1.msra.mxu0 0.0
  %1706 = vmatprep.subr.mxu0 0.0
  %1707 = vmatpush1.msra.mxu0 0.0
  %1708 = vmatprep.subr.mxu0 0.0
  %1709 = vmatpush1.msra.mxu0 0.0
  %1710 = vmatprep.subr.mxu0 0.0
  %1711 = vmatpush1.msra.mxu0 0.0
  %1712 = vmatprep.subr.mxu0 0.0
  %1713 = vmatpush1.msra.mxu0 0.0
  %1714 = vmatprep.subr.mxu0 0.0
  %1715 = vmatpush1.msra.mxu0 0.0
  %1716 = vmatprep.subr.mxu0 0.0
  %1717 = vmatpush1.msra.mxu0 0.0
  %1718 = vmatprep.subr.mxu0 0.0
  %1719 = vmatpush1.msra.mxu0 0.0
  %1720 = vmatprep.subr.mxu0 0.0
  %1721 = vmatpush1.msra.mxu0 0.0
  %1722 = vmatprep.subr.mxu0 0.0
  %1723 = vmatpush1.msra.mxu0 0.0
  %1724 = vmatprep.subr.mxu0 0.0
  %1725 = vmatpush1.msra.mxu0 0.0
  %1726 = vmatprep.subr.mxu0 0.0
  %1727 = vmatpush1.msra.mxu0 0.0
  %1728 = vmatprep.subr.mxu0 0.0
  %1729 = vmatpush1.msra.mxu0 0.0
  %1730 = vmatprep.subr.mxu0 0.0
  %1731 = vmatpush1.msra.mxu0 0.0
  %1732 = vmatprep.mubr.f32.mxu0 0.0
  %1733 = vmatmul.mubr.f32.gmra.mrb[0].mxu0 %v1644
  %v1734 = vpop.f32.mrb[0].mxu0
  %v1735 = vadd.f32 %v1666, %v1734
  %v1736 = vpop.f32.mrb[0].mxu0
  %1737 = vdwg.mxu0
  %v1738 = vtanh.pop %v1735
  %v1739 = vld [vmem:[%s53] sm:$0xff]
  %v1740 = vld [vmem:[%s53 + $0x8] sm:$0xff]
  %v1741 = vld [vmem:[%s53 + $0x10] sm:$0xff]
  %v1742 = vld [vmem:[%s53 + $0x18] sm:$0xff]
  %v1743 = vld [vmem:[%s53 + $0x20] sm:$0xff]
  %v1744 = vld [vmem:[%s53 + $0x28] sm:$0xff]
  %v1745 = vld [vmem:[%s53 + $0x30] sm:$0xff]
  %v1746 = vld [vmem:[%s53 + $0x38] sm:$0xff]
  %v1747 = vld [vmem:[%s53 + $0x40] sm:$0xff]
  %v1748 = vld [vmem:[%s53 + $0x48] sm:$0xff]
  %v1749 = vld [vmem:[%s53 + $0x50] sm:$0xff]
  %v1750 = vld [vmem:[%s53 + $0x58] sm:$0xff]
  %v1751 = vld [vmem:[%s53 + $0x60] sm:$0xff]
  %v1752 = vld [vmem:[%s53 + $0x68] sm:$0xff]
  %v1753 = vld [vmem:[%s53 + $0x70] sm:$0xff]
  %v1754 = vld [vmem:[%s53 + $0x78] sm:$0xff]
  %v1755 = vld [vmem:[%s55] sm:$0xff]
  %v1756 = vld [vmem:[%s55 + $0x8] sm:$0xff]
  %v1757 = vld [vmem:[%s55 + $0x10] sm:$0xff]
  %v1758 = vld [vmem:[%s55 + $0x18] sm:$0xff]
  %v1759 = vld [vmem:[%s55 + $0x20] sm:$0xff]
  %v1760 = vld [vmem:[%s55 + $0x28] sm:$0xff]
  %v1761 = vld [vmem:[%s55 + $0x30] sm:$0xff]
  %v1762 = vld [vmem:[%s55 + $0x38] sm:$0xff]
  %v1763 = vld [vmem:[%s55 + $0x40] sm:$0xff]
  %v1764 = vld [vmem:[%s55 + $0x48] sm:$0xff]
  %v1765 = vld [vmem:[%s55 + $0x50] sm:$0xff]
  %v1766 = vld [vmem:[%s55 + $0x58] sm:$0xff]
  %v1767 = vld [vmem:[%s55 + $0x60] sm:$0xff]
  %v1768 = vld [vmem:[%s55 + $0x68] sm:$0xff]
  %v1769 = vld [vmem:[%s55 + $0x70] sm:$0xff]
  %v1770 = vld [vmem:[%s55 + $0x78] sm:$0xff]
  %1771 = vmatprep.subr.mxu0 0.0
  %1772 = vmatpush1.msra.mxu0 %v1755
  %1773 = vmatprep.subr.mxu0 0.0
  %1774 = vmatpush1.msra.mxu0 %v1756
  %1775 = vmatprep.subr.mxu0 0.0
  %1776 = vmatpush1.msra.mxu0 %v1757
  %1777 = vmatprep.subr.mxu0 0.0
  %1778 = vmatpush1.msra.mxu0 %v1758
  %1779 = vmatprep.subr.mxu0 0.0
  %1780 = vmatpush1.msra.mxu0 %v1759
  %1781 = vmatprep.subr.mxu0 0.0
  %1782 = vmatpush1.msra.mxu0 %v1760
  %1783 = vmatprep.subr.mxu0 0.0
  %1784 = vmatpush1.msra.mxu0 %v1761
  %1785 = vmatprep.subr.mxu0 0.0
  %1786 = vmatpush1.msra.mxu0 %v1762
  %1787 = vmatprep.subr.mxu0 0.0
  %1788 = vmatpush1.msra.mxu0 %v1763
  %1789 = vmatprep.subr.mxu0 0.0
  %1790 = vmatpush1.msra.mxu0 %v1764
  %1791 = vmatprep.subr.mxu0 0.0
  %1792 = vmatpush1.msra.mxu0 %v1765
  %1793 = vmatprep.subr.mxu0 0.0
  %1794 = vmatpush1.msra.mxu0 %v1766
  %1795 = vmatprep.subr.mxu0 0.0
  %1796 = vmatpush1.msra.mxu0 %v1767
  %1797 = vmatprep.subr.mxu0 0.0
  %1798 = vmatpush1.msra.mxu0 %v1768
  %1799 = vmatprep.subr.mxu0 0.0
  %1800 = vmatpush1.msra.mxu0 %v1769
  %1801 = vmatprep.subr.mxu0 0.0
  %1802 = vmatpush1.msra.mxu0 %v1770
  %1803 = vmatprep.subr.mxu0 0.0
  %1804 = vmatpush1.msra.mxu0 0.0
  %1805 = vmatprep.subr.mxu0 0.0
  %1806 = vmatpush1.msra.mxu0 0.0
  %1807 = vmatprep.subr.mxu0 0.0
  %1808 = vmatpush1.msra.mxu0 0.0
  %1809 = vmatprep.subr.mxu0 0.0
  %1810 = vmatpush1.msra.mxu0 0.0
  %1811 = vmatprep.subr.mxu0 0.0
  %1812 = vmatpush1.msra.mxu0 0.0
  %1813 = vmatprep.subr.mxu0 0.0
  %1814 = vmatpush1.msra.mxu0 0.0
  %1815 = vmatprep.subr.mxu0 0.0
  %1816 = vmatpush1.msra.mxu0 0.0
  %1817 = vmatprep.subr.mxu0 0.0
  %1818 = vmatpush1.msra.mxu0 0.0
  %1819 = vmatprep.subr.mxu0 0.0
  %1820 = vmatpush1.msra.mxu0 0.0
  %1821 = vmatprep.subr.mxu0 0.0
  %1822 = vmatpush1.msra.mxu0 0.0
  %1823 = vmatprep.subr.mxu0 0.0
  %1824 = vmatpush1.msra.mxu0 0.0
  %1825 = vmatprep.subr.mxu0 0.0
  %1826 = vmatpush1.msra.mxu0 0.0
  %1827 = vmatprep.subr.mxu0 0.0
  %1828 = vmatpush1.msra.mxu0 0.0
  %1829 = vmatprep.subr.mxu0 0.0
  %1830 = vmatpush1.msra.mxu0 0.0
  %1831 = vmatprep.subr.mxu0 0.0
  %1832 = vmatpush1.msra.mxu0 0.0
  %1833 = vmatprep.subr.mxu0 0.0
  %1834 = vmatpush1.msra.mxu0 0.0
  %1835 = vmatprep.mubr.f32.mxu0 0.0
  %1836 = vmatmul.mubr.f32.gmra.mrb[0].mxu0 %v1738
  %v1837 = vpop.f32.mrb[0].mxu0
  %v1838 = vadd.f32 0.0, %v1837
  %v1839 = vpop.f32.mrb[0].mxu0
  %1840 = vdwg.mxu0
  %1841 = vmatprep.subr.mxu0 0.0
  %1842 = vmatpush1.msra.mxu0 %v1739
  %1843 = vmatprep.subr.mxu0 0.0
  %1844 = vmatpush1.msra.mxu0 %v1740
  %1845 = vmatprep.subr.mxu0 0.0
  %1846 = vmatpush1.msra.mxu0 %v1741
  %1847 = vmatprep.subr.mxu0 0.0
  %1848 = vmatpush1.msra.mxu0 %v1742
  %1849 = vmatprep.subr.mxu0 0.0
  %1850 = vmatpush1.msra.mxu0 %v1743
  %1851 = vmatprep.subr.mxu0 0.0
  %1852 = vmatpush1.msra.mxu0 %v1744
  %1853 = vmatprep.subr.mxu0 0.0
  %1854 = vmatpush1.msra.mxu0 %v1745
  %1855 = vmatprep.subr.mxu0 0.0
  %1856 = vmatpush1.msra.mxu0 %v1746
  %1857 = vmatprep.subr.mxu0 0.0
  %1858 = vmatpush1.msra.mxu0 %v1747
  %1859 = vmatprep.subr.mxu0 0.0
  %1860 = vmatpush1.msra.mxu0 %v1748
  %1861 = vmatprep.subr.mxu0 0.0
  %1862 = vmatpush1.msra.mxu0 %v1749
  %1863 = vmatprep.subr.mxu0 0.0
  %1864 = vmatpush1.msra.mxu0 %v1750
  %1865 = vmatprep.subr.mxu0 0.0
  %1866 = vmatpush1.msra.mxu0 %v1751
  %1867 = vmatprep.subr.mxu0 0.0
  %1868 = vmatpush1.msra.mxu0 %v1752
  %1869 = vmatprep.subr.mxu0 0.0
  %1870 = vmatpush1.msra.mxu0 %v1753
  %1871 = vmatprep.subr.mxu0 0.0
  %1872 = vmatpush1.msra.mxu0 %v1754
  %1873 = vmatprep.subr.mxu0 0.0
  %1874 = vmatpush1.msra.mxu0 0.0
  %1875 = vmatprep.subr.mxu0 0.0
  %1876 = vmatpush1.msra.mxu0 0.0
  %1877 = vmatprep.subr.mxu0 0.0
  %1878 = vmatpush1.msra.mxu0 0.0
  %1879 = vmatprep.subr.mxu0 0.0
  %1880 = vmatpush1.msra.mxu0 0.0
  %1881 = vmatprep.subr.mxu0 0.0
  %1882 = vmatpush1.msra.mxu0 0.0
  %1883 = vmatprep.subr.mxu0 0.0
  %1884 = vmatpush1.msra.mxu0 0.0
  %1885 = vmatprep.subr.mxu0 0.0
  %1886 = vmatpush1.msra.mxu0 0.0
  %1887 = vmatprep.subr.mxu0 0.0
  %1888 = vmatpush1.msra.mxu0 0.0
  %1889 = vmatprep.subr.mxu0 0.0
  %1890 = vmatpush1.msra.mxu0 0.0
  %1891 = vmatprep.subr.mxu0 0.0
  %1892 = vmatpush1.msra.mxu0 0.0
  %1893 = vmatprep.subr.mxu0 0.0
  %1894 = vmatpush1.msra.mxu0 0.0
  %1895 = vmatprep.subr.mxu0 0.0
  %1896 = vmatpush1.msra.mxu0 0.0
  %1897 = vmatprep.subr.mxu0 0.0
  %1898 = vmatpush1.msra.mxu0 0.0
  %1899 = vmatprep.subr.mxu0 0.0
  %1900 = vmatpush1.msra.mxu0 0.0
  %1901 = vmatprep.subr.mxu0 0.0
  %1902 = vmatpush1.msra.mxu0 0.0
  %1903 = vmatprep.subr.mxu0 0.0
  %1904 = vmatpush1.msra.mxu0 0.0
  %1905 = vmatprep.mubr.f32.mxu0 0.0
  %1906 = vmatmul.mubr.f32.gmra.mrb[0].mxu0 %v869
  %v1907 = vpop.f32.mrb[0].mxu0
  %v1908 = vadd.f32 %v1838, %v1907
  %v1909 = vpop.f32.mrb[0].mxu0
  %1910 = vdwg.mxu0
  %v1911 = vld [vmem:[%s57] sm:$0x1]
  %v1913 = vlaneseq
  %v1914 = vshrl.u32 %v1913, 7
  %v1915 = vsub.s32 0, %v1914
  %v1916 = vrot.slane %v1911, %v1915
  %v1918 = vadd.f32 %v1908, %v1916
  %v1919 = vmax.f32 %v1918, 0.0
  %v1920 = vld [vmem:[%s59] sm:$0xff]
  %v1921 = vld [vmem:[%s59 + $0x8] sm:$0xff]
  %v1922 = vld [vmem:[%s59 + $0x10] sm:$0xff]
  %v1923 = vld [vmem:[%s59 + $0x18] sm:$0xff]
  %v1924 = vld [vmem:[%s59 + $0x20] sm:$0xff]
  %v1925 = vld [vmem:[%s59 + $0x28] sm:$0xff]
  %v1926 = vld [vmem:[%s59 + $0x30] sm:$0xff]
  %v1927 = vld [vmem:[%s59 + $0x38] sm:$0xff]
  %v1928 = vld [vmem:[%s59 + $0x40] sm:$0xff]
  %v1929 = vld [vmem:[%s59 + $0x48] sm:$0xff]
  %v1930 = vld [vmem:[%s61] sm:$0x1]
  %v1932 = vlaneseq
  %v1933 = vshrl.u32 %v1932, 7
  %v1934 = vsub.s32 0, %v1933
  %v1935 = vrot.slane %v1930, %v1934
  %v1938 = vsel %vm1315, %v1919, 0
  %1940 = vmatprep.subr.mxu0 0.0
  %1941 = vmatpush1.msra.mxu0 %v1920
  %1942 = vmatprep.subr.mxu0 0.0
  %1943 = vmatpush1.msra.mxu0 %v1921
  %1944 = vmatprep.subr.mxu0 0.0
  %1945 = vmatpush1.msra.mxu0 %v1922
  %1946 = vmatprep.subr.mxu0 0.0
  %1947 = vmatpush1.msra.mxu0 %v1923
  %1948 = vmatprep.subr.mxu0 0.0
  %1949 = vmatpush1.msra.mxu0 %v1924
  %1950 = vmatprep.subr.mxu0 0.0
  %1951 = vmatpush1.msra.mxu0 %v1925
  %1952 = vmatprep.subr.mxu0 0.0
  %1953 = vmatpush1.msra.mxu0 %v1926
  %1954 = vmatprep.subr.mxu0 0.0
  %1955 = vmatpush1.msra.mxu0 %v1927
  %1956 = vmatprep.subr.mxu0 0.0
  %1957 = vmatpush1.msra.mxu0 %v1928
  %1958 = vmatprep.subr.mxu0 0.0
  %1959 = vmatpush1.msra.mxu0 %v1929
  %1960 = vmatprep.subr.mxu0 0.0
  %1961 = vmatpush1.msra.mxu0 0.0
  %1962 = vmatprep.subr.mxu0 0.0
  %1963 = vmatpush1.msra.mxu0 0.0
  %1964 = vmatprep.subr.mxu0 0.0
  %1965 = vmatpush1.msra.mxu0 0.0
  %1966 = vmatprep.subr.mxu0 0.0
  %1967 = vmatpush1.msra.mxu0 0.0
  %1968 = vmatprep.subr.mxu0 0.0
  %1969 = vmatpush1.msra.mxu0 0.0
  %1970 = vmatprep.subr.mxu0 0.0
  %1971 = vmatpush1.msra.mxu0 0.0
  %1972 = vmatprep.subr.mxu0 0.0
  %1973 = vmatpush1.msra.mxu0 0.0
  %1974 = vmatprep.subr.mxu0 0.0
  %1975 = vmatpush1.msra.mxu0 0.0
  %1976 = vmatprep.subr.mxu0 0.0
  %1977 = vmatpush1.msra.mxu0 0.0
  %1978 = vmatprep.subr.mxu0 0.0
  %1979 = vmatpush1.msra.mxu0 0.0
  %1980 = vmatprep.subr.mxu0 0.0
  %1981 = vmatpush1.msra.mxu0 0.0
  %1982 = vmatprep.subr.mxu0 0.0
  %1983 = vmatpush1.msra.mxu0 0.0
  %1984 = vmatprep.subr.mxu0 0.0
  %1985 = vmatpush1.msra.mxu0 0.0
  %1986 = vmatprep.subr.mxu0 0.0
  %1987 = vmatpush1.msra.mxu0 0.0
  %1988 = vmatprep.subr.mxu0 0.0
  %1989 = vmatpush1.msra.mxu0 0.0
  %1990 = vmatprep.subr.mxu0 0.0
  %1991 = vmatpush1.msra.mxu0 0.0
  %1992 = vmatprep.subr.mxu0 0.0
  %1993 = vmatpush1.msra.mxu0 0.0
  %1994 = vmatprep.subr.mxu0 0.0
  %1995 = vmatpush1.msra.mxu0 0.0
  %1996 = vmatprep.subr.mxu0 0.0
  %1997 = vmatpush1.msra.mxu0 0.0
  %1998 = vmatprep.subr.mxu0 0.0
  %1999 = vmatpush1.msra.mxu0 0.0
  %2000 = vmatprep.subr.mxu0 0.0
  %2001 = vmatpush1.msra.mxu0 0.0
  %2002 = vmatprep.subr.mxu0 0.0
  %2003 = vmatpush1.msra.mxu0 0.0
  %2004 = vmatprep.mubr.f32.mxu0 0.0
  %2005 = vmatmul.mubr.f32.gmra.mrb[0].mxu0 %v1938
  %v2006 = vpop.f32.mrb[0].mxu0
  %v2007 = vadd.f32 %v1935, %v2006
  %v2008 = vpop.f32.mrb[0].mxu0
  %2009 = vdwg.mxu0
  %v2010 = vmax.f32 %v2007, 0.0
  %v2011 = vld [vmem:[%s63] sm:$0xff]
  %v2012 = vld [vmem:[%s63 + $0x8] sm:$0xff]
  %v2013 = vld [vmem:[%s63 + $0x10] sm:$0xff]
  %v2014 = vld [vmem:[%s63 + $0x18] sm:$0xff]
  %v2015 = vld [vmem:[%s63 + $0x20] sm:$0xff]
  %v2016 = vld [vmem:[%s65] sm:$0x1]
  %v2018 = vlaneseq
  %v2019 = vshrl.u32 %v2018, 7
  %v2020 = vsub.s32 0, %v2019
  %v2021 = vrot.slane %v2016, %v2020
  %v2024 = vsel %vm1402, %v2010, 0
  %2026 = vmatprep.subr.mxu0 0.0
  %2027 = vmatpush1.msra.mxu0 %v2011
  %2028 = vmatprep.subr.mxu0 0.0
  %2029 = vmatpush1.msra.mxu0 %v2012
  %2030 = vmatprep.subr.mxu0 0.0
  %2031 = vmatpush1.msra.mxu0 %v2013
  %2032 = vmatprep.subr.mxu0 0.0
  %2033 = vmatpush1.msra.mxu0 %v2014
  %2034 = vmatprep.subr.mxu0 0.0
  %2035 = vmatpush1.msra.mxu0 %v2015
  %2036 = vmatprep.subr.mxu0 0.0
  %2037 = vmatpush1.msra.mxu0 0.0
  %2038 = vmatprep.subr.mxu0 0.0
  %2039 = vmatpush1.msra.mxu0 0.0
  %2040 = vmatprep.subr.mxu0 0.0
  %2041 = vmatpush1.msra.mxu0 0.0
  %2042 = vmatprep.subr.mxu0 0.0
  %2043 = vmatpush1.msra.mxu0 0.0
  %2044 = vmatprep.subr.mxu0 0.0
  %2045 = vmatpush1.msra.mxu0 0.0
  %2046 = vmatprep.subr.mxu0 0.0
  %2047 = vmatpush1.msra.mxu0 0.0
  %2048 = vmatprep.subr.mxu0 0.0
  %2049 = vmatpush1.msra.mxu0 0.0
  %2050 = vmatprep.subr.mxu0 0.0
  %2051 = vmatpush1.msra.mxu0 0.0
  %2052 = vmatprep.subr.mxu0 0.0
  %2053 = vmatpush1.msra.mxu0 0.0
  %2054 = vmatprep.subr.mxu0 0.0
  %2055 = vmatpush1.msra.mxu0 0.0
  %2056 = vmatprep.subr.mxu0 0.0
  %2057 = vmatpush1.msra.mxu0 0.0
  %2058 = vmatprep.subr.mxu0 0.0
  %2059 = vmatpush1.msra.mxu0 0.0
  %2060 = vmatprep.subr.mxu0 0.0
  %2061 = vmatpush1.msra.mxu0 0.0
  %2062 = vmatprep.subr.mxu0 0.0
  %2063 = vmatpush1.msra.mxu0 0.0
  %2064 = vmatprep.subr.mxu0 0.0
  %2065 = vmatpush1.msra.mxu0 0.0
  %2066 = vmatprep.subr.mxu0 0.0
  %2067 = vmatpush1.msra.mxu0 0.0
  %2068 = vmatprep.subr.mxu0 0.0
  %2069 = vmatpush1.msra.mxu0 0.0
  %2070 = vmatprep.subr.mxu0 0.0
  %2071 = vmatpush1.msra.mxu0 0.0
  %2072 = vmatprep.subr.mxu0 0.0
  %2073 = vmatpush1.msra.mxu0 0.0
  %2074 = vmatprep.subr.mxu0 0.0
  %2075 = vmatpush1.msra.mxu0 0.0
  %2076 = vmatprep.subr.mxu0 0.0
  %2077 = vmatpush1.msra.mxu0 0.0
  %2078 = vmatprep.subr.mxu0 0.0
  %2079 = vmatpush1.msra.mxu0 0.0
  %2080 = vmatprep.subr.mxu0 0.0
  %2081 = vmatpush1.msra.mxu0 0.0
  %2082 = vmatprep.subr.mxu0 0.0
  %2083 = vmatpush1.msra.mxu0 0.0
  %2084 = vmatprep.subr.mxu0 0.0
  %2085 = vmatpush1.msra.mxu0 0.0
  %2086 = vmatprep.subr.mxu0 0.0
  %2087 = vmatpush1.msra.mxu0 0.0
  %2088 = vmatprep.subr.mxu0 0.0
  %2089 = vmatpush1.msra.mxu0 0.0
  %2090 = vmatprep.mubr.f32.mxu0 0.0
  %2091 = vmatmul.mubr.f32.gmra.mrb[0].mxu0 %v2024
  %v2092 = vpop.f32.mrb[0].mxu0
  %v2093 = vadd.f32 %v2021, %v2092
  %v2094 = vpop.f32.mrb[0].mxu0
  %2095 = vdwg.mxu0
  %v2096 = vmax.f32 %v2093, 0.0
  %v2097 = vld [vmem:[%s67] sm:$0xff]
  %v2098 = vld [vmem:[%s67 + $0x8] sm:$0xff]
  %v2099 = vld [vmem:[%s67 + $0x10] sm:$0xf]
  %v2100 = vld [vmem:[%s69] sm:$0x1]
  %v2102 = vlaneseq
  %v2103 = vshrl.u32 %v2102, 7
  %v2104 = vsub.s32 0, %v2103
  %v2105 = vrot.slane %v2100, %v2104
  %v2108 = vsel %vm1487, %v2096, 0
  %v2111 = vsel %vm1491, %v2099, 0
  %2113 = vmatprep.subr.mxu0 0.0
  %2114 = vmatpush1.msra.mxu0 %v2097
  %2115 = vmatprep.subr.mxu0 0.0
  %2116 = vmatpush1.msra.mxu0 %v2098
  %2117 = vmatprep.subr.mxu0 0.0
  %2118 = vmatpush1.msra.mxu0 %v2111
  %2119 = vmatprep.subr.mxu0 0.0
  %2120 = vmatpush1.msra.mxu0 0.0
  %2121 = vmatprep.subr.mxu0 0.0
  %2122 = vmatpush1.msra.mxu0 0.0
  %2123 = vmatprep.subr.mxu0 0.0
  %2124 = vmatpush1.msra.mxu0 0.0
  %2125 = vmatprep.subr.mxu0 0.0
  %2126 = vmatpush1.msra.mxu0 0.0
  %2127 = vmatprep.subr.mxu0 0.0
  %2128 = vmatpush1.msra.mxu0 0.0
  %2129 = vmatprep.subr.mxu0 0.0
  %2130 = vmatpush1.msra.mxu0 0.0
  %2131 = vmatprep.subr.mxu0 0.0
  %2132 = vmatpush1.msra.mxu0 0.0
  %2133 = vmatprep.subr.mxu0 0.0
  %2134 = vmatpush1.msra.mxu0 0.0
  %2135 = vmatprep.subr.mxu0 0.0
  %2136 = vmatpush1.msra.mxu0 0.0
  %2137 = vmatprep.subr.mxu0 0.0
  %2138 = vmatpush1.msra.mxu0 0.0
  %2139 = vmatprep.subr.mxu0 0.0
  %2140 = vmatpush1.msra.mxu0 0.0
  %2141 = vmatprep.subr.mxu0 0.0
  %2142 = vmatpush1.msra.mxu0 0.0
  %2143 = vmatprep.subr.mxu0 0.0
  %2144 = vmatpush1.msra.mxu0 0.0
  %2145 = vmatprep.subr.mxu0 0.0
  %2146 = vmatpush1.msra.mxu0 0.0
  %2147 = vmatprep.subr.mxu0 0.0
  %2148 = vmatpush1.msra.mxu0 0.0
  %2149 = vmatprep.subr.mxu0 0.0
  %2150 = vmatpush1.msra.mxu0 0.0
  %2151 = vmatprep.subr.mxu0 0.0
  %2152 = vmatpush1.msra.mxu0 0.0
  %2153 = vmatprep.subr.mxu0 0.0
  %2154 = vmatpush1.msra.mxu0 0.0
  %2155 = vmatprep.subr.mxu0 0.0
  %2156 = vmatpush1.msra.mxu0 0.0
  %2157 = vmatprep.subr.mxu0 0.0
  %2158 = vmatpush1.msra.mxu0 0.0
  %2159 = vmatprep.subr.mxu0 0.0
  %2160 = vmatpush1.msra.mxu0 0.0
  %2161 = vmatprep.subr.mxu0 0.0
  %2162 = vmatpush1.msra.mxu0 0.0
  %2163 = vmatprep.subr.mxu0 0.0
  %2164 = vmatpush1.msra.mxu0 0.0
  %2165 = vmatprep.subr.mxu0 0.0
  %2166 = vmatpush1.msra.mxu0 0.0
  %2167 = vmatprep.subr.mxu0 0.0
  %2168 = vmatpush1.msra.mxu0 0.0
  %2169 = vmatprep.subr.mxu0 0.0
  %2170 = vmatpush1.msra.mxu0 0.0
  %2171 = vmatprep.subr.mxu0 0.0
  %2172 = vmatpush1.msra.mxu0 0.0
  %2173 = vmatprep.subr.mxu0 0.0
  %2174 = vmatpush1.msra.mxu0 0.0
  %2175 = vmatprep.subr.mxu0 0.0
  %2176 = vmatpush1.msra.mxu0 0.0
  %2177 = vmatprep.mubr.f32.mxu0 0.0
  %2178 = vmatmul.mubr.f32.gmra.mrb[0].mxu0 %v2108
  %v2179 = vpop.f32.mrb[0].mxu0
  %v2180 = vadd.f32 %v2105, %v2179
  %v2181 = vpop.f32.mrb[0].mxu0
  %2182 = vdwg.mxu0
  %vm2183 = vcmp.gt.f32.partialorder %v147, 0.0
  %v2184 = vsel %vm2183, 1, 0
  %v2185 = vcvt.s32.f32 %v2184
  %v2186 = vmax.f32 %v1562, 0.0
  %v2187 = vmul.f32 %v1562, %v2185
  %v2188 = vsub.f32 %v2186, %v2187
  %v2189 = vand.u32 2147483647, %v1562
  %v2190 = vsub.f32 0.0, %v2189
  %v2191 = vmul.f32 %v2190, 1.442695
  %v2192 = vpow.pop %v2191
  %v2193 = vadd.f32 %v2192, 1.0
  %v2194 = vlog2.pop %v2193
  %v2195 = vmul.f32 %v2194, 0.6931472
  %v2196 = vmul.f32 -0.5, %v2192
  %v2197 = vadd.f32 %v2196, 1.0
  %v2198 = vmul.f32 %v2197, %v2192
  %v2199 = vand.u32 2147483647, %v2192
  %vm2200 = vcmp.lt.f32.partialorder %v2199, 0.0004427343
  %v2201 = vsel %vm2200, %v2198, %v2195
  %v2202 = vadd.f32 %v2188, %v2201
  %vm2203 = vcmp.ne.f32.partialorder %v1562, %v1562
  %v2204 = vadd.f32 %v1562, 0.0
  %v2205 = vadd.f32 %v2186, %v2201
  %v2206 = vsel %vm2203, %v2204, %v2205
  %v2207 = vmax.f32 %v2206, 0.00034526698
  %v2208 = vmul.f32 %v2185, %v147
  %v2209 = vsub.f32 1.0, %v2185
  %v2210 = vadd.f32 %v2208, %v2209
  %v2211 = vlog2.pop %v2210
  %v2212 = vmul.f32 %v2211, 0.6931472
  %v2213 = vsub.f32 0.0, %v2212
  %v2214 = vlog2.pop %v2207
  %v2215 = vmul.f32 %v2214, 0.6931472
  %2217 = vrot.lane.b32.xlu0 %v2215, 126
  %v2218 = vpop.permute.xlu0 %2217
  %v2220 = vsub.f32 %v2213, %v2218
  %v2221 = vsub.f32 %v2220, 0.9189385
  %2223 = vrot.lane.b32.xlu0 %v1562, 127
  %v2224 = vpop.permute.xlu0 %2223
  %v2226 = vsub.f32 %v2212, %v2224
  %v2227 = vmul.f32 %v2226, %v2226
  %v2228 = vmul.f32 %v2207, %v2207
  %v2229 = vmul.f32 %v2228, 2.0
  %2231 = vrot.lane.b32.xlu0 %v2229, 126
  %v2232 = vpop.permute.xlu0 %2231
  %v2234 = vrcp.pop %v2232
  %v2235 = vmul.f32 %v2227, %v2234
  %v2236 = vsub.f32 %v2221, %v2235
  %v2237 = vsub.f32 0.0, %v2185
  %v2238 = vmul.f32 %v2237, %v2236
  %v2239 = vadd.f32 %v2202, %v2238
  %vm2240 = vcmask 3072
  %v2241 = vsel %vm2240, %v2239, 0.0
  %2242 = vadd.xlane.f32.xlu0 %v2241
  %v2243 = vpop.xlane.xlu0 %2242
  %v2244 = vrot.slane %v2243, 4
  %v2245 = vadd.f32 %v2243, %v2244
  %v2246 = vrot.slane %v2245, 2
  %v2247 = vadd.f32 %v2245, %v2246
  %v2248 = vrot.slane %v2247, 1
  %v2249 = vadd.f32 %v2247, %v2248
  %s2250 = vtos %v2249
  %v2251 = vstv %s2250
  %v2252 = vrcp.pop 4.0
  %v2253 = vmul.f32 %v2251, %v2252
  %v2254 = vmax.f32 %v2180, 0.0
  %v2255 = vmul.f32 %v2180, %v2185
  %v2256 = vsub.f32 %v2254, %v2255
  %v2257 = vand.u32 2147483647, %v2180
  %v2258 = vsub.f32 0.0, %v2257
  %v2259 = vmul.f32 %v2258, 1.442695
  %v2260 = vpow.pop %v2259
  %v2261 = vadd.f32 %v2260, 1.0
  %v2262 = vlog2.pop %v2261
  %v2263 = vmul.f32 %v2262, 0.6931472
  %v2264 = vmul.f32 -0.5, %v2260
  %v2265 = vadd.f32 %v2264, 1.0
  %v2266 = vmul.f32 %v2265, %v2260
  %v2267 = vand.u32 2147483647, %v2260
  %vm2268 = vcmp.lt.f32.partialorder %v2267, 0.0004427343
  %v2269 = vsel %vm2268, %v2266, %v2263
  %v2270 = vadd.f32 %v2256, %v2269
  %vm2271 = vcmp.ne.f32.partialorder %v2180, %v2180
  %v2272 = vadd.f32 %v2180, 0.0
  %v2273 = vadd.f32 %v2254, %v2269
  %v2274 = vsel %vm2271, %v2272, %v2273
  %v2275 = vmax.f32 %v2274, 0.00034526698
  %v2276 = vlog2.pop %v2275
  %v2277 = vmul.f32 %v2276, 0.6931472
  %2279 = vrot.lane.b32.xlu0 %v2277, 126
  %v2280 = vpop.permute.xlu0 %2279
  %v2282 = vsub.f32 %v2213, %v2280
  %v2283 = vsub.f32 %v2282, 0.9189385
  %2285 = vrot.lane.b32.xlu0 %v2180, 127
  %v2286 = vpop.permute.xlu0 %2285
  %v2288 = vsub.f32 %v2212, %v2286
  %v2289 = vmul.f32 %v2288, %v2288
  %v2290 = vmul.f32 %v2275, %v2275
  %v2291 = vmul.f32 %v2290, 2.0
  %2293 = vrot.lane.b32.xlu0 %v2291, 126
  %v2294 = vpop.permute.xlu0 %2293
  %v2296 = vrcp.pop %v2294
  %v2297 = vmul.f32 %v2289, %v2296
  %v2298 = vsub.f32 %v2283, %v2297
  %v2299 = vmul.f32 %v2237, %v2298
  %v2300 = vadd.f32 %v2270, %v2299
  %v2301 = vsel %vm2240, %v2300, 0.0
  %2302 = vadd.xlane.f32.xlu0 %v2301
  %v2303 = vpop.xlane.xlu0 %2302
  %v2304 = vrot.slane %v2303, 4
  %v2305 = vadd.f32 %v2303, %v2304
  %v2306 = vrot.slane %v2305, 2
  %v2307 = vadd.f32 %v2305, %v2306
  %v2308 = vrot.slane %v2307, 1
  %v2309 = vadd.f32 %v2307, %v2308
  %s2310 = vtos %v2309
  %v2311 = vstv %s2310
  %v2312 = vmul.f32 %v2311, %v2252
  %v2313 = vmul.f32 %v2312, 0.5
  %v2314 = vadd.f32 %v2253, %v2313
  %v2315 = vxor.u32 %v1562, 2147483648
  %v2316 = vmul.f32 %v2315, 1.442695
  %v2317 = vpow.pop %v2316
  %v2318 = vadd.f32 %v2317, 1.0
  %v2319 = vrcp.pop %v2318
  %v2320 = vmul.f32 1.0, %v2319
  %v2321 = vmul.f32 %v2206, %v2206
  %v2322 = vmul.f32 %v2321, 0.5
  %2324 = vrot.lane.b32.xlu0 %v2322, 127
  %v2325 = vpop.permute.xlu0 %2324
  %v2327 = vadd.f32 %v1562, %v2325
  %v2328 = vmul.f32 %v2327, 1.442695
  %v2329 = vpow.pop %v2328
  %2331 = vrot.lane.b32.xlu0 %v2329, 127
  %v2332 = vpop.permute.xlu0 %2331
  %v2334 = vmul.f32 %v2320, %v2332
  %v2335 = vsub.f32 %v149, %v148
  %v2336 = vsub.f32 %v147, %v149
  %2338 = vrot.lane.b32.xlu0 %v148, 1
  %v2339 = vpop.permute.xlu0 %2338
  %2342 = vrot.lane.b32.xlu0 %v2335, 2
  %v2343 = vpop.permute.xlu0 %2342
  %2346 = vrot.lane.b32.xlu0 %v2336, 3
  %v2347 = vpop.permute.xlu0 %2346
  %vm2349 = vcmask 7168
  %v2350 = vsel %vm2349, 0.0, %v2339
  %vm2351 = vcmask 15360
  %v2352 = vsel %vm2351, %v2350, %v2343
  %vm2353 = vcmask 23552
  %v2354 = vsel %vm2353, %v2352, %v2347
  %v2355 = vmax.f32 %v2354, 0.0
  %vm2356 = vcmask 27648
  %v2357 = vsel %vm2356, %v2355, -inf
  %2358 = vmax.xlane.f32.xlu0 %v2357
  %v2359 = vpop.xlane.xlu0 %2358
  %v2360 = vlaneseq
  %v2361 = vand.u32 %v2360, 127
  %vm2362 = vcmp.eq.f32.partialorder %v2355, %v2359
  %v2363 = vsel %vm2362, %v2361, 4
  %v2364 = vsel %vm2356, %v2363, 2147483647
  %v2365 = vand.u32 %v2364, 65535
  %v2366 = vshra.s32 %v2364, 16
  %v2367 = vcvt.s32.f32 %v2365
  %v2368 = vcvt.s32.f32 %v2366
  %2369 = vmin.xlane.f32.xlu0 %v2368
  %v2370 = vpop.xlane.xlu0 %2369
  %vm2371 = vcmp.eq.f32.partialorder %v2368, %v2370
  %v2372 = vsel %vm2371, %v2367, inf
  %2373 = vmin.xlane.f32.xlu0 %v2372
  %v2374 = vpop.xlane.xlu0 %2373
  %v2375 = vcvt.f32.s32 %v2374
  %v2376 = vcvt.f32.s32 %v2370
  %v2377 = vshll.u32 %v2376, 16
  %v2378 = vadd.s32 %v2377, %v2375
  %vm2379 = vcmp.eq.s32.totalorder %v2361, %v2378
  %v2380 = vsel %vm2379, 1, 0
  %v2381 = vcvt.s32.f32 %v2380
  %v2382 = vsel %vm2356, %v499, -inf
  %2383 = vmax.xlane.f32.xlu0 %v2382
  %v2384 = vpop.xlane.xlu0 %2383
  %v2385 = vsub.f32 %v499, %v2384
  %v2386 = vmul.f32 %v2385, 1.442695
  %v2387 = vpow.pop %v2386
  %v2388 = vsel %vm2356, %v2387, 0.0
  %2389 = vadd.xlane.f32.xlu0 %v2388
  %v2390 = vpop.xlane.xlu0 %2389
  %v2391 = vlog2.pop %v2390
  %v2392 = vmul.f32 %v2391, 0.6931472
  %v2393 = vadd.f32 %v2384, %v2392
  %v2394 = vsub.f32 %v2393, %v499
  %v2395 = vmul.f32 %v2381, %v2394
  %v2396 = vsel %vm2356, %v2395, 0.0
  %2397 = vadd.xlane.f32.xlu0 %v2396
  %v2398 = vpop.xlane.xlu0 %2397
  %v2399 = vsel %vm2240, %v2398, 0.0
  %2400 = vadd.xlane.f32.xlu0 %v2399
  %v2401 = vpop.xlane.xlu0 %2400
  %v2402 = vrot.slane %v2401, 4
  %v2403 = vadd.f32 %v2401, %v2402
  %v2404 = vrot.slane %v2403, 2
  %v2405 = vadd.f32 %v2403, %v2404
  %v2406 = vrot.slane %v2405, 1
  %v2407 = vadd.f32 %v2405, %v2406
  %s2408 = vtos %v2407
  %v2409 = vstv %s2408
  %v2410 = vmul.f32 %v2409, %v2252
  %v2411 = vmul.f32 %v2410, 0.5
  %v2412 = vadd.f32 %v2314, %v2411
  %v2413 = vsel %vm2356, %v771, -inf
  %2414 = vmax.xlane.f32.xlu0 %v2413
  %v2415 = vpop.xlane.xlu0 %2414
  %v2416 = vsub.f32 %v771, %v2415
  %v2417 = vmul.f32 %v2416, 1.442695
  %v2418 = vpow.pop %v2417
  %v2419 = vsel %vm2356, %v2418, 0.0
  %2420 = vadd.xlane.f32.xlu0 %v2419
  %v2421 = vpop.xlane.xlu0 %2420
  %v2422 = vlog2.pop %v2421
  %v2423 = vmul.f32 %v2422, 0.6931472
  %v2424 = vadd.f32 %v2415, %v2423
  %v2425 = vsub.f32 %v2424, %v771
  %v2426 = vmul.f32 %v2381, %v2425
  %v2427 = vsel %vm2356, %v2426, 0.0
  %2428 = vadd.xlane.f32.xlu0 %v2427
  %v2429 = vpop.xlane.xlu0 %2428
  %v2430 = vsel %vm2240, %v2429, 0.0
  %2431 = vadd.xlane.f32.xlu0 %v2430
  %v2432 = vpop.xlane.xlu0 %2431
  %v2433 = vrot.slane %v2432, 4
  %v2434 = vadd.f32 %v2432, %v2433
  %v2435 = vrot.slane %v2434, 2
  %v2436 = vadd.f32 %v2434, %v2435
  %v2437 = vrot.slane %v2436, 1
  %v2438 = vadd.f32 %v2436, %v2437
  %s2439 = vtos %v2438
  %v2440 = vstv %s2439
  %v2441 = vmul.f32 %v2440, %v2252
  %v2442 = vmul.f32 %v2441, 0.5
  %v2443 = vadd.f32 %v2412, %v2442
  %v2444 = vsel %vm2356, %v1043, -inf
  %2445 = vmax.xlane.f32.xlu0 %v2444
  %v2446 = vpop.xlane.xlu0 %2445
  %v2447 = vsub.f32 %v1043, %v2446
  %v2448 = vmul.f32 %v2447, 1.442695
  %v2449 = vpow.pop %v2448
  %v2450 = vsel %vm2356, %v2449, 0.0
  %2451 = vadd.xlane.f32.xlu0 %v2450
  %v2452 = vpop.xlane.xlu0 %2451
  %v2453 = vlog2.pop %v2452
  %v2454 = vmul.f32 %v2453, 0.6931472
  %v2455 = vadd.f32 %v2446, %v2454
  %v2456 = vsub.f32 %v2455, %v1043
  %v2457 = vmul.f32 %v2381, %v2456
  %v2458 = vsel %vm2356, %v2457, 0.0
  %2459 = vadd.xlane.f32.xlu0 %v2458
  %v2460 = vpop.xlane.xlu0 %2459
  %v2461 = vsel %vm2240, %v2460, 0.0
  %2462 = vadd.xlane.f32.xlu0 %v2461
  %v2463 = vpop.xlane.xlu0 %2462
  %v2464 = vrot.slane %v2463, 4
  %v2465 = vadd.f32 %v2463, %v2464
  %v2466 = vrot.slane %v2465, 2
  %v2467 = vadd.f32 %v2465, %v2466
  %v2468 = vrot.slane %v2467, 1
  %v2469 = vadd.f32 %v2467, %v2468
  %s2470 = vtos %v2469
  %v2471 = vstv %s2470
  %v2472 = vmul.f32 %v2471, %v2252
  %v2473 = vmul.f32 %v2472, 0.5
  %v2474 = vadd.f32 %v2443, %v2473
  %2476 = vrot.lane.b32.xlu0 %v2320, 3
  %v2477 = vpop.permute.xlu0 %2476
  %2480 = vrot.lane.b32.xlu0 %v2334, 4
  %v2481 = vpop.permute.xlu0 %2480
  %v2483 = vsel %vm2353, %v1562, %v2477
  %vm2484 = vcmask 31744
  %v2485 = vsel %vm2484, %v2483, %v2481
  %vm2486 = vcmask 39936
  %v2487 = vsel %vm2486, %v2485, %v2474
  %vm2488 = vcmask 48128
  %v2489 = vsel %vm2488, %v2487, 0.0
  %2490 = vst [vmem:[%s71] sm:$0xf] %v2489
  // Predicated region
  $region142: #{trtg_cls_forward.1} parent=0 // pred_check
    _
  $region143: #{trtg_cls_forward.1} parent=0 // pred_check_branch
    %2492 = sbr.rel (0) target = $region145
  $region144: #{trtg_cls_forward.1} parent=0 // pred_region
    _
  $region145: #{trtg_cls_forward.1} parent=0 // pred_fallthru
    _
  // Predicated region
  $region146: #{trtg_cls_forward.1} parent=0 // pred_check
    _
  $region147: #{trtg_cls_forward.1} parent=0 // pred_check_branch
    %2494 = sbr.rel (0) target = $region149
  $region148: #{trtg_cls_forward.1} parent=0 // pred_region
    _
  $region149: #{trtg_cls_forward.1} parent=0 // pred_fallthru
    _

</llo_original>
